<compile_context>
chip_gen: v7x
topology: tpu7x:2x2x1
jax: 0.10.0
libtpu: 0.0.40
codegen_flags: <defaults>
</compile_context>

<pallas_src>
import functools

import jax
import jax.numpy as jnp
from jax.experimental import pallas as pl
from jax.experimental.pallas import tpu as pltpu

# ----------------------- model hyper-parameters (small) ---------------------
C_IN = 3           # input image channels
C_BB = 64          # backbone output channels
EMBED = 128        # embed dims (lane-dense; production BEVFormer uses 256)
FFN_DIM = 256      # FFN hidden dims
BEV_H = 8
BEV_W = 8
FRAMES = (-1, 0)   # history frame -1, current frame 0 (module arg `frames`)
LN_EPS = 1e-5


def _cdiv(a, b):
    return -(-a // b)


def _round_up(a, b):
    return _cdiv(a, b) * b


# --------------------- Pallas kernel: bias + ReLU + neck ---------------------
def _neck_kernel(x_ref, bb_ref, w_ref, bn_ref, o_ref):
    """Fused backbone-conv bias + ReLU + neck 1x1 conv (as matmul)."""
    h = jnp.maximum(x_ref[...] + bb_ref[...], 0.0)               # f32
    o = jnp.dot(h.astype(jnp.bfloat16), w_ref[...],
                preferred_element_type=jnp.float32)
    o_ref[...] = (o + bn_ref[...]).astype(o_ref.dtype)


def fused_bias_relu_neck(x, p, tm=2048):
    """x: (M, C_BB) f32 conv output -> (M, EMBED) bf16 lane-dense features."""
    M, K = x.shape
    # Large tiles (per-step overhead ~0.35us) but keep >=2 parallel grid steps
    # so the v7x megacore has work on both TensorCores.
    tm = min(tm, _round_up(_cdiv(M, 2), 8))
    Mp = _round_up(M, tm)
    if Mp != M:
        x = jnp.pad(x, ((0, Mp - M), (0, 0)))
    D = p["w_neck"].shape[1]
    out = pl.pallas_call(
        _neck_kernel,
        out_shape=jax.ShapeDtypeStruct((Mp, D), jnp.bfloat16),
        grid=(Mp // tm,),
        in_specs=[
            pl.BlockSpec((tm, K), lambda i: (i, 0)),
            pl.BlockSpec((1, K), lambda i: (0, 0)),
            pl.BlockSpec((K, D), lambda i: (0, 0)),
            pl.BlockSpec((1, D), lambda i: (0, 0)),
        ],
        out_specs=pl.BlockSpec((tm, D), lambda i: (i, 0)),
        compiler_params=pltpu.CompilerParams(
            dimension_semantics=("parallel",)),
    )(x, p["b_bb"].reshape(1, K), p["w_neck"].astype(jnp.bfloat16),
      p["b_neck"].reshape(1, D))
    return out[:M]


# ------------------- Pallas kernel: fused flash-style BEV head ----------------
def _head_kernel(q_ref, f_ref, wdd_ref, vec_ref, w1_ref, b1_ref, w2_ref,
                 o_ref, qk_sc, m_sc, l_sc, acc_sc, *, scale, eps, lk_true, tk):
    """Online-softmax cross-attention + out-proj + LN + FFN + LN.

    Grid: (batch [parallel], Lk tiles [arbitrary, innermost]).
    wdd_ref: (4, D, D) bf16 slab = [Wq, Wk^T, Wv, Wo]
    vec_ref: (8, D)   f32 slab = [bq, bv, bo, ln1_g, ln1_b, b_ffn2, ln2_g, ln2_b]
    """
    k = pl.program_id(1)
    nk = pl.num_programs(1)

    @pl.when(k == 0)
    def _init():
        # Hoisted Q projection; also fold Wk and the 1/sqrt(D) scale into the
        # query side so the inner loop touches only the raw feature tiles.
        q = q_ref[0].astype(jnp.bfloat16)                            # (Lq, D)
        qp = (jnp.dot(q, wdd_ref[0], preferred_element_type=jnp.float32)
              + vec_ref[0:1, :]) * scale
        qk_sc[...] = jnp.dot(qp.astype(jnp.bfloat16), wdd_ref[1],
                             preferred_element_type=jnp.float32
                             ).astype(jnp.bfloat16)
        m_sc[...] = jnp.full_like(m_sc, -jnp.inf)
        l_sc[...] = jnp.zeros_like(l_sc)
        acc_sc[...] = jnp.zeros_like(acc_sc)

    # -------- inner Lk loop body: scores + online softmax + P@feats ----------
    fb = f_ref[0]                                                    # (tk, D) bf16
    s = jax.lax.dot_general(qk_sc[...], fb,
                            dimension_numbers=(((1,), (1,)), ((), ())),
                            preferred_element_type=jnp.float32)      # (Lq, tk)
    if lk_true % tk != 0:
        # mask zero-padded key positions (only the last tile has any)
        kid = jax.lax.broadcasted_iota(jnp.int32, s.shape, 1) + k * tk
        s = jnp.where(kid < lk_true, s, -jnp.inf)
    m_prev = m_sc[...]
    m_new = jnp.maximum(m_prev, jnp.max(s, axis=-1, keepdims=True))
    alpha = jnp.exp(m_prev - m_new)
    p = jnp.exp(s - m_new)
    l_sc[...] = alpha * l_sc[...] + jnp.sum(p, axis=-1, keepdims=True)
    acc_sc[...] = alpha * acc_sc[...] + jnp.dot(
        p.astype(jnp.bfloat16), fb, preferred_element_type=jnp.float32)
    m_sc[...] = m_new

    # ------------------- finalize: V/out proj, LN, FFN, LN -------------------
    @pl.when(k == nk - 1)
    def _finish():
        q_in = q_ref[0]                                              # f32 residual
        inv_l = pl.reciprocal(l_sc[...], approx=True)                # EUP divide
        # V projection hoisted out of the loop; exact because sum_k p == 1.
        attn = (jnp.dot(acc_sc[...].astype(jnp.bfloat16), wdd_ref[2],
                        preferred_element_type=jnp.float32) * inv_l
                + vec_ref[1:2, :])
        proj = jnp.dot(attn.astype(jnp.bfloat16), wdd_ref[3],
                       preferred_element_type=jnp.float32) + vec_ref[2:3, :]

        # residual + LayerNorm 1 (f32)
        x = proj + q_in
        mu = jnp.mean(x, axis=-1, keepdims=True)
        xc = x - mu
        var = jnp.mean(xc * xc, axis=-1, keepdims=True)
        x = xc * jax.lax.rsqrt(var + eps) * vec_ref[3:4, :] + vec_ref[4:5, :]

        # FFN
        h = jnp.dot(x.astype(jnp.bfloat16), w1_ref[...],
                    preferred_element_type=jnp.float32) + b1_ref[...]
        h = jnp.maximum(h, 0.0)
        h = jnp.dot(h.astype(jnp.bfloat16), w2_ref[...],
                    preferred_element_type=jnp.float32) + vec_ref[5:6, :]

        # residual + LayerNorm 2 (f32)
        y = h + x
        mu = jnp.mean(y, axis=-1, keepdims=True)
        yc = y - mu
        var = jnp.mean(yc * yc, axis=-1, keepdims=True)
        o_ref[0] = (yc * jax.lax.rsqrt(var + eps) * vec_ref[6:7, :]
                    + vec_ref[7:8, :]).astype(o_ref.dtype)


def bev_head(q, feats, lk_true, p, tk=256):
    """Fused pts_bbox_head(..., only_bev=True).

    q: (Bh, Lq, D) f32 (query + pos [+ temporal fusion]);
    feats: (Bh, Lk_pad, D) bf16, Lk_pad a multiple of tk (padding masked).
    Returns (Bh, Lq, D) f32.
    """
    Bh, Lq, D = q.shape
    _, Lk_pad, _ = feats.shape
    assert Lk_pad % tk == 0
    nk = Lk_pad // tk
    F = p["w_ffn1"].shape[1]

    kernel = functools.partial(_head_kernel, scale=1.0 / (D ** 0.5),
                               eps=LN_EPS, lk_true=lk_true, tk=tk)
    # pack the many tiny operands into two slabs + 3 FFN operands
    wdd = jnp.stack([p["wq"], p["wk"].T, p["wv"], p["wo"]]).astype(jnp.bfloat16)
    vecs = jnp.stack([p["bq"], p["bv"], p["bo"], p["ln1_g"], p["ln1_b"],
                      p["b_ffn2"], p["ln2_g"], p["ln2_b"]])
    c2 = lambda b, k: (0, 0)
    c3 = lambda b, k: (0, 0, 0)

    return pl.pallas_call(
        kernel,
        out_shape=jax.ShapeDtypeStruct((Bh, Lq, D), jnp.float32),
        grid=(Bh, nk),
        in_specs=[
            pl.BlockSpec((1, Lq, D), lambda b, k: (b, 0, 0)),   # query (resident)
            pl.BlockSpec((1, tk, D), lambda b, k: (b, k, 0)),   # feats Lk tile
            pl.BlockSpec((4, D, D), c3),                        # weight slab
            pl.BlockSpec((8, D), c2),                           # bias / LN slab
            pl.BlockSpec((D, F), c2),                           # ffn w1
            pl.BlockSpec((1, F), c2),                           # ffn b1
            pl.BlockSpec((F, D), c2),                           # ffn w2
        ],
        out_specs=pl.BlockSpec((1, Lq, D), lambda b, k: (b, 0, 0)),
        scratch_shapes=[
            pltpu.VMEM((Lq, D), jnp.bfloat16),                  # q_k (hoisted)
            pltpu.VMEM((Lq, 1), jnp.float32),                   # m
            pltpu.VMEM((Lq, 1), jnp.float32),                   # l
            pltpu.VMEM((Lq, D), jnp.float32),                   # acc
        ],
        compiler_params=pltpu.CompilerParams(
            dimension_semantics=("parallel", "arbitrary"),
            vmem_limit_bytes=48 * 1024 * 1024),
    )(q, feats, wdd, vecs, p["w_ffn1"].astype(jnp.bfloat16),
      p["b_ffn1"].reshape(1, F), p["w_ffn2"].astype(jnp.bfloat16))


# ------------------------------- parameters ----------------------------------
def init_params(key):
    ks = jax.random.split(key, 12)
    w = lambda k, shape, s: jax.random.normal(k, shape, jnp.float32) * s
    z = lambda n: jnp.zeros((n,), jnp.float32)
    return {
        # backbone: 3x3 stride-2 conv (HWIO) + bias
        "w_bb": w(ks[0], (3, 3, C_IN, C_BB), 0.1), "b_bb": z(C_BB),
        # neck: 1x1 conv
        "w_neck": w(ks[1], (C_BB, EMBED), 0.05), "b_neck": z(EMBED),
        # BEV head (K bias omitted: it is a softmax-invariant per-row constant)
        "bev_query": w(ks[2], (BEV_H * BEV_W, EMBED), 0.02),
        "bev_pos": w(ks[3], (BEV_H * BEV_W, EMBED), 0.02),
        "wq": w(ks[4], (EMBED, EMBED), 0.05), "bq": z(EMBED),
        "wk": w(ks[5], (EMBED, EMBED), 0.05),
        "wv": w(ks[6], (EMBED, EMBED), 0.05), "bv": z(EMBED),
        "wo": w(ks[7], (EMBED, EMBED), 0.05), "bo": z(EMBED),
        "ln1_g": jnp.ones((EMBED,), jnp.float32), "ln1_b": z(EMBED),
        "w_ffn1": w(ks[8], (EMBED, FFN_DIM), 0.05), "b_ffn1": z(FFN_DIM),
        "w_ffn2": w(ks[9], (FFN_DIM, EMBED), 0.05), "b_ffn2": z(EMBED),
        "ln2_g": jnp.ones((EMBED,), jnp.float32), "ln2_b": z(EMBED),
    }


# ----------------------------- model components -------------------------------
def extract_img_feat_all(img_all, p):
    """img_all: (Mi, C, H, W) NCHW -> (Mi, Ho*Wo, EMBED) bf16 features.

    All frames / cameras are batched through a single conv + one fused Pallas
    bias+ReLU+neck kernel (no HBM im2col blow-up).
    """
    Mi, C, H, W = img_all.shape
    x = jnp.transpose(img_all, (0, 2, 3, 1))                     # NCHW -> NHWC
    y = jax.lax.conv_general_dilated(
        x, p["w_bb"], window_strides=(2, 2), padding="SAME",
        dimension_numbers=("NHWC", "HWIO", "NHWC"))              # (Mi,Ho,Wo,C_BB)
    _, Ho, Wo, Cb = y.shape
    feat = fused_bias_relu_neck(y.reshape(Mi * Ho * Wo, Cb), p)
    return feat.reshape(Mi, Ho * Wo, EMBED), Ho, Wo


def bevformer_v2_forward(img, params, frames=FRAMES, tk=256):
    """img: (B, T, N, C, H, W) with T frames ordered by sorted(frames)."""
    B, T, N, C, H, W = img.shape
    keys = sorted(frames)
    assert len(keys) == T and 0 in keys
    cur_idx = keys.index(0)
    hist_idx = [i for i, t in enumerate(keys) if t != 0]

    # --- feature extraction: every frame / camera in one conv + one neck pass
    # TODO(synk): GridMask augmentation (use_grid_mask=False default) and the
    # 'aug_param' horizontal flip (no aug metadata here) are omitted.
    feats, Ho, Wo = extract_img_feat_all(img.reshape(B * T * N, C, H, W),
                                         params)
    Lk = N * Ho * Wo
    Lq = BEV_H * BEV_W
    feats = feats.reshape(B, T, Lk, EMBED)

    # pad the key axis once for all frames (padded keys masked inside kernel)
    tk = min(tk, _round_up(Lk, 128))
    lk_pad = _round_up(Lk, tk)
    if lk_pad != Lk:
        feats = jnp.pad(feats, ((0, 0), (0, 0), (0, lk_pad - Lk), (0, 0)))

    q_base = (params["bev_query"] + params["bev_pos"])[None]     # (1, Lq, D)

    # --- obtain_history_bev: all history frames batched into ONE head call
    # (each history frame uses prev_bev=None; no-grad in the original module).
    prev_mean = None
    if hist_idx:
        Th = len(hist_idx)
        feats_hist = feats[:, hist_idx].reshape(B * Th, lk_pad, EMBED)
        q_hist = jnp.broadcast_to(q_base, (B * Th, Lq, EMBED))
        bev_hist = bev_head(q_hist, feats_hist, Lk, params, tk=tk)
        bev_hist = jax.lax.stop_gradient(bev_hist)               # torch.no_grad
        prev_mean = jnp.mean(bev_hist.reshape(B, Th, Lq, EMBED), axis=1)

    # --- current frame with temporal fusion of history BEVs
    q_cur = jnp.broadcast_to(q_base, (B, Lq, EMBED))
    if prev_mean is not None:
        q_cur = q_cur + prev_mean
    bev = bev_head(q_cur, feats[:, cur_idx], Lk, params, tk=tk)  # (B, Lq, D)
    return jnp.transpose(bev, (1, 0, 2))                         # (Lq, B, D)


# ----------------------------------- main -------------------------------------
if __name__ == "__main__":
    key = jax.random.PRNGKey(0)
    k_param, k_img = jax.random.split(key)
    params = init_params(k_param)

    # W=24 -> Lk = 2*16*12 = 384, which exercises the padded/masked last Lk
    # tile (tk=256) of the online-softmax loop as well as the multi-tile path.
    B, T, N_CAMS, H, W = 2, len(FRAMES), 2, 32, 24
    img = jax.random.normal(k_img, (B, T, N_CAMS, C_IN, H, W), jnp.float32)

    fwd = jax.jit(bevformer_v2_forward)
    bev = jax.block_until_ready(fwd(img, params))
    assert bev.shape == (BEV_H * BEV_W, B, EMBED)
    assert bool(jnp.all(jnp.isfinite(bev)))
    print("KERNEL_OK")
</pallas_src>

<mosaic_0001>
module attributes {stable_mosaic.version = 11 : i64} {
  func.func @_neck_kernel(%arg0: i32, %arg1: memref<768x64xf32, #tpu.memory_space<vmem>>, %arg2: memref<1x64xf32, #tpu.memory_space<vmem>>, %arg3: memref<64x128xbf16, #tpu.memory_space<vmem>>, %arg4: memref<1x128xf32, #tpu.memory_space<vmem>>, %arg5: memref<768x128xbf16, #tpu.memory_space<vmem>>) attributes {dimension_semantics = [#tpu.dimension_semantics<parallel>], iteration_bounds = array<i64: 2>, scalar_prefetch = 0 : i64, scratch_operands = 0 : i64, tpu.core_type = #tpu.core_type<tc>, window_params = [{transform_indices = @transform_0, window_bounds = array<i64: 768, 64>}, {pipeline_mode = #tpu.pipeline_mode<synchronous>, transform_indices = @transform_1, window_bounds = array<i64: 1, 64>}, {pipeline_mode = #tpu.pipeline_mode<synchronous>, transform_indices = @transform_2, window_bounds = array<i64: 64, 128>}, {pipeline_mode = #tpu.pipeline_mode<synchronous>, transform_indices = @transform_3, window_bounds = array<i64: 1, 128>}, {transform_indices = @transform_4, window_bounds = array<i64: 768, 128>}]} {
    %c0 = arith.constant 0 : index
    %c0_0 = arith.constant 0 : index
    %0 = vector.load %arg1[%c0, %c0_0] : memref<768x64xf32, #tpu.memory_space<vmem>>, vector<768x64xf32>
    %c0_1 = arith.constant 0 : index
    %c0_2 = arith.constant 0 : index
    %1 = vector.load %arg2[%c0_1, %c0_2] : memref<1x64xf32, #tpu.memory_space<vmem>>, vector<1x64xf32>
    %2 = vector.broadcast %1 : vector<1x64xf32> to vector<768x64xf32>
    %3 = arith.addf %0, %2 : vector<768x64xf32>
    %cst = arith.constant 0.000000e+00 : f32
    %4 = vector.broadcast %cst : f32 to vector<768x64xf32>
    %5 = arith.maximumf %3, %4 : vector<768x64xf32>
    %6 = arith.truncf %5 : vector<768x64xf32> to vector<768x64xbf16>
    %c0_3 = arith.constant 0 : index
    %c0_4 = arith.constant 0 : index
    %7 = vector.load %arg3[%c0_3, %c0_4] : memref<64x128xbf16, #tpu.memory_space<vmem>>, vector<64x128xbf16>
    %cst_5 = arith.constant dense<0.000000e+00> : vector<768x128xf32>
    %8 = tpu.matmul %6, %7, %cst_5 {dimension_numbers = #tpu.dot_dimension_numbers<[1], [0], [0], [1], [0, 0, 1, 1], [], []>} : vector<768x64xbf16>, vector<64x128xbf16>, vector<768x128xf32> -> vector<768x128xf32>
    %c0_6 = arith.constant 0 : index
    %c0_7 = arith.constant 0 : index
    %9 = vector.load %arg4[%c0_6, %c0_7] : memref<1x128xf32, #tpu.memory_space<vmem>>, vector<1x128xf32>
    %10 = vector.broadcast %9 : vector<1x128xf32> to vector<768x128xf32>
    %11 = arith.addf %8, %10 : vector<768x128xf32>
    %12 = arith.truncf %11 : vector<768x128xf32> to vector<768x128xbf16>
    %c0_8 = arith.constant 0 : index
    %c0_9 = arith.constant 0 : index
    %13 = vector.load %arg5[%c0_8, %c0_9] : memref<768x128xbf16, #tpu.memory_space<vmem>>, vector<768x128xbf16>
    tpu.vector_store %arg5[%c0_8, %c0_9], %12 {strides = array<i32>} : memref<768x128xbf16, #tpu.memory_space<vmem>>, vector<768x128xbf16>,
    return
  }
  func.func @transform_0(%arg0: i32) -> (i32, i32) {
    %c0_i32 = arith.constant 0 : i32
    %c0_i32_0 = arith.constant 0 : i32
    return %arg0, %c0_i32 : i32, i32
  }
  func.func @transform_1(%arg0: i32) -> (i32, i32) {
    %c0_i32 = arith.constant 0 : i32
    %c0_i32_0 = arith.constant 0 : i32
    %c0_i32_1 = arith.constant 0 : i32
    return %c0_i32, %c0_i32_0 : i32, i32
  }
  func.func @transform_2(%arg0: i32) -> (i32, i32) {
    %c0_i32 = arith.constant 0 : i32
    %c0_i32_0 = arith.constant 0 : i32
    %c0_i32_1 = arith.constant 0 : i32
    return %c0_i32, %c0_i32_0 : i32, i32
  }
  func.func @transform_3(%arg0: i32) -> (i32, i32) {
    %c0_i32 = arith.constant 0 : i32
    %c0_i32_0 = arith.constant 0 : i32
    %c0_i32_1 = arith.constant 0 : i32
    return %c0_i32, %c0_i32_0 : i32, i32
  }
  func.func @transform_4(%arg0: i32) -> (i32, i32) {
    %c0_i32 = arith.constant 0 : i32
    %c0_i32_0 = arith.constant 0 : i32
    return %arg0, %c0_i32 : i32, i32
  }
}

module attributes {stable_mosaic.version = 11 : i64} {
  func.func @_head_kernel(%arg0: i32, %arg1: i32, %arg2: memref<1x64x128xf32, #tpu.memory_space<vmem>>, %arg3: memref<1x256x128xbf16, #tpu.memory_space<vmem>>, %arg4: memref<4x128x128xbf16, #tpu.memory_space<vmem>>, %arg5: memref<8x128xf32, #tpu.memory_space<vmem>>, %arg6: memref<128x256xbf16, #tpu.memory_space<vmem>>, %arg7: memref<1x256xf32, #tpu.memory_space<vmem>>, %arg8: memref<256x128xbf16, #tpu.memory_space<vmem>>, %arg9: memref<1x64x128xf32, #tpu.memory_space<vmem>>, %arg10: memref<64x128xbf16, #tpu.memory_space<vmem>>, %arg11: memref<64x1xf32, #tpu.memory_space<vmem>>, %arg12: memref<64x1xf32, #tpu.memory_space<vmem>>, %arg13: memref<64x128xf32, #tpu.memory_space<vmem>>) attributes {dimension_semantics = [#tpu.dimension_semantics<parallel>, #tpu.dimension_semantics<arbitrary>], iteration_bounds = array<i64: 2, 2>, scalar_prefetch = 0 : i64, scratch_operands = 4 : i64, tpu.core_type = #tpu.core_type<tc>, window_params = [{transform_indices = @transform_0, window_bounds = array<i64: 1, 64, 128>}, {transform_indices = @transform_1, window_bounds = array<i64: 1, 256, 128>}, {pipeline_mode = #tpu.pipeline_mode<synchronous>, transform_indices = @transform_2, window_bounds = array<i64: 4, 128, 128>}, {pipeline_mode = #tpu.pipeline_mode<synchronous>, transform_indices = @transform_3, window_bounds = array<i64: 8, 128>}, {pipeline_mode = #tpu.pipeline_mode<synchronous>, transform_indices = @transform_4, window_bounds = array<i64: 128, 256>}, {pipeline_mode = #tpu.pipeline_mode<synchronous>, transform_indices = @transform_5, window_bounds = array<i64: 1, 256>}, {pipeline_mode = #tpu.pipeline_mode<synchronous>, transform_indices = @transform_6, window_bounds = array<i64: 256, 128>}, {transform_indices = @transform_7, window_bounds = array<i64: 1, 64, 128>}]} {
    %c0_i32 = arith.constant 0 : i32
    %0 = arith.cmpi eq, %arg1, %c0_i32 : i32
    %1 = arith.extui %0 : i1 to i32
    %c0_i32_0 = arith.constant 0 : i32
    %2 = arith.cmpi ne, %1, %c0_i32_0 : i32
    scf.if %2 {
      %c0_22 = arith.constant 0 : index
      %c0_23 = arith.constant 0 : index
      %c0_24 = arith.constant 0 : index
      %41 = vector.load %arg2[%c0_22, %c0_23, %c0_24] : memref<1x64x128xf32, #tpu.memory_space<vmem>>, vector<1x64x128xf32>
      %42 = vector.shape_cast %41 : vector<1x64x128xf32> to vector<64x128xf32>
      %43 = arith.truncf %42 : vector<64x128xf32> to vector<64x128xbf16>
      %c0_25 = arith.constant 0 : index
      %c0_26 = arith.constant 0 : index
      %c0_27 = arith.constant 0 : index
      %44 = vector.load %arg4[%c0_25, %c0_26, %c0_27] : memref<4x128x128xbf16, #tpu.memory_space<vmem>>, vector<1x128x128xbf16>
      %45 = vector.shape_cast %44 : vector<1x128x128xbf16> to vector<128x128xbf16>
      %cst_28 = arith.constant dense<0.000000e+00> : vector<64x128xf32>
      %46 = tpu.matmul %43, %45, %cst_28 {dimension_numbers = #tpu.dot_dimension_numbers<[1], [0], [0], [1], [0, 0, 1, 1], [], []>} : vector<64x128xbf16>, vector<128x128xbf16>, vector<64x128xf32> -> vector<64x128xf32>
      %c0_29 = arith.constant 0 : index
      %c0_30 = arith.constant 0 : index
      %47 = vector.load %arg5[%c0_29, %c0_30] : memref<8x128xf32, #tpu.memory_space<vmem>>, vector<1x128xf32>
      %48 = vector.broadcast %47 : vector<1x128xf32> to vector<64x128xf32>
      %49 = arith.addf %46, %48 : vector<64x128xf32>
      %cst_31 = arith.constant 0.0883883461 : f32
      %50 = vector.broadcast %cst_31 : f32 to vector<64x128xf32>
      %51 = arith.mulf %49, %50 : vector<64x128xf32>
      %52 = arith.truncf %51 : vector<64x128xf32> to vector<64x128xbf16>
      %c1 = arith.constant 1 : index
      %c0_32 = arith.constant 0 : index
      %c0_33 = arith.constant 0 : index
      %53 = vector.load %arg4[%c1, %c0_32, %c0_33] : memref<4x128x128xbf16, #tpu.memory_space<vmem>>, vector<1x128x128xbf16>
      %54 = vector.shape_cast %53 : vector<1x128x128xbf16> to vector<128x128xbf16>
      %cst_34 = arith.constant dense<0.000000e+00> : vector<64x128xf32>
      %55 = tpu.matmul %52, %54, %cst_34 {dimension_numbers = #tpu.dot_dimension_numbers<[1], [0], [0], [1], [0, 0, 1, 1], [], []>} : vector<64x128xbf16>, vector<128x128xbf16>, vector<64x128xf32> -> vector<64x128xf32>
      %56 = arith.truncf %55 : vector<64x128xf32> to vector<64x128xbf16>
      %c0_35 = arith.constant 0 : index
      %c0_36 = arith.constant 0 : index
      %57 = vector.load %arg10[%c0_35, %c0_36] : memref<64x128xbf16, #tpu.memory_space<vmem>>, vector<64x128xbf16>
      tpu.vector_store %arg10[%c0_35, %c0_36], %56 {strides = array<i32>} : memref<64x128xbf16, #tpu.memory_space<vmem>>, vector<64x128xbf16>,
      %cst_37 = arith.constant 0xFF800000 : f32
      %58 = vector.broadcast %cst_37 : f32 to vector<64x1xf32>
      %c0_38 = arith.constant 0 : index
      %c0_39 = arith.constant 0 : index
      %59 = vector.load %arg11[%c0_38, %c0_39] : memref<64x1xf32, #tpu.memory_space<vmem>>, vector<64x1xf32>
      tpu.vector_store %arg11[%c0_38, %c0_39], %58 {strides = array<i32>} : memref<64x1xf32, #tpu.memory_space<vmem>>, vector<64x1xf32>,
      %cst_40 = arith.constant 0.000000e+00 : f32
      %60 = vector.broadcast %cst_40 : f32 to vector<64x1xf32>
      %c0_41 = arith.constant 0 : index
      %c0_42 = arith.constant 0 : index
      %61 = vector.load %arg12[%c0_41, %c0_42] : memref<64x1xf32, #tpu.memory_space<vmem>>, vector<64x1xf32>
      tpu.vector_store %arg12[%c0_41, %c0_42], %60 {strides = array<i32>} : memref<64x1xf32, #tpu.memory_space<vmem>>, vector<64x1xf32>,
      %cst_43 = arith.constant 0.000000e+00 : f32
      %62 = vector.broadcast %cst_43 : f32 to vector<64x128xf32>
      %c0_44 = arith.constant 0 : index
      %c0_45 = arith.constant 0 : index
      %63 = vector.load %arg13[%c0_44, %c0_45] : memref<64x128xf32, #tpu.memory_space<vmem>>, vector<64x128xf32>
      tpu.vector_store %arg13[%c0_44, %c0_45], %62 {strides = array<i32>} : memref<64x128xf32, #tpu.memory_space<vmem>>, vector<64x128xf32>,
    } else {
    }
    %c0 = arith.constant 0 : index
    %c0_1 = arith.constant 0 : index
    %c0_2 = arith.constant 0 : index
    %3 = vector.load %arg3[%c0, %c0_1, %c0_2] : memref<1x256x128xbf16, #tpu.memory_space<vmem>>, vector<1x256x128xbf16>
    %4 = vector.shape_cast %3 : vector<1x256x128xbf16> to vector<256x128xbf16>
    %c0_3 = arith.constant 0 : index
    %c0_4 = arith.constant 0 : index
    %5 = vector.load %arg10[%c0_3, %c0_4] : memref<64x128xbf16, #tpu.memory_space<vmem>>, vector<64x128xbf16>
    %cst = arith.constant dense<0.000000e+00> : vector<64x256xf32>
    %6 = tpu.matmul %5, %4, %cst {dimension_numbers = #tpu.dot_dimension_numbers<[1], [1], [0], [0], [0, 0, 1, 0], [], []>} : vector<64x128xbf16>, vector<256x128xbf16>, vector<64x256xf32> -> vector<64x256xf32>
    %7 = tpu.iota {dimensions = array<i32: 1>} : vector<64x256xi32>
    %c256_i32 = arith.constant 256 : i32
    %8 = arith.muli %arg1, %c256_i32 : i32
    %9 = vector.broadcast %8 : i32 to vector<64x256xi32>
    %10 = arith.addi %7, %9 : vector<64x256xi32>
    %c384_i32 = arith.constant 384 : i32
    %11 = vector.broadcast %c384_i32 : i32 to vector<64x256xi32>
    %12 = arith.cmpi slt, %10, %11 : vector<64x256xi32>
    %cst_5 = arith.constant 0xFF800000 : f32
    %13 = vector.broadcast %cst_5 : f32 to vector<64x256xf32>
    %14 = arith.select %12, %6, %13 : vector<64x256xi1>, vector<64x256xf32>
    %c0_6 = arith.constant 0 : index
    %c0_7 = arith.constant 0 : index
    %15 = vector.load %arg11[%c0_6, %c0_7] : memref<64x1xf32, #tpu.memory_space<vmem>>, vector<64x1xf32>
    %cst_8 = arith.constant dense<0xFF800000> : vector<64xf32>
    %16 = vector.multi_reduction <maximumf>, %14, %cst_8 [1] : vector<64x256xf32> to vector<64xf32>
    %17 = vector.shape_cast %16 : vector<64xf32> to vector<64x1xf32>
    %18 = arith.maximumf %15, %17 : vector<64x1xf32>
    %19 = arith.subf %15, %18 : vector<64x1xf32>
    %20 = math.exp %19 : vector<64x1xf32>
    %21 = vector.broadcast %18 : vector<64x1xf32> to vector<64x256xf32>
    %22 = arith.subf %14, %21 : vector<64x256xf32>
    %23 = math.exp %22 : vector<64x256xf32>
    %c0_9 = arith.constant 0 : index
    %c0_10 = arith.constant 0 : index
    %24 = vector.load %arg12[%c0_9, %c0_10] : memref<64x1xf32, #tpu.memory_space<vmem>>, vector<64x1xf32>
    %25 = arith.mulf %20, %24 : vector<64x1xf32>
    %cst_11 = arith.constant dense<0.000000e+00> : vector<64xf32>
    %26 = vector.multi_reduction <add>, %23, %cst_11 [1] : vector<64x256xf32> to vector<64xf32>
    %27 = vector.shape_cast %26 : vector<64xf32> to vector<64x1xf32>
    %28 = arith.addf %25, %27 : vector<64x1xf32>
    %c0_12 = arith.constant 0 : index
    %c0_13 = arith.constant 0 : index
    %29 = vector.load %arg12[%c0_12, %c0_13] : memref<64x1xf32, #tpu.memory_space<vmem>>, vector<64x1xf32>
    tpu.vector_store %arg12[%c0_12, %c0_13], %28 {strides = array<i32>} : memref<64x1xf32, #tpu.memory_space<vmem>>, vector<64x1xf32>,
    %c0_14 = arith.constant 0 : index
    %c0_15 = arith.constant 0 : index
    %30 = vector.load %arg13[%c0_14, %c0_15] : memref<64x128xf32, #tpu.memory_space<vmem>>, vector<64x128xf32>
    %31 = vector.broadcast %20 : vector<64x1xf32> to vector<64x128xf32>
    %32 = arith.mulf %31, %30 : vector<64x128xf32>
    %33 = arith.truncf %23 : vector<64x256xf32> to vector<64x256xbf16>
    %cst_16 = arith.constant dense<0.000000e+00> : vector<64x128xf32>
    %34 = tpu.matmul %33, %4, %cst_16 {dimension_numbers = #tpu.dot_dimension_numbers<[1], [0], [0], [1], [0, 0, 1, 1], [], []>} : vector<64x256xbf16>, vector<256x128xbf16>, vector<64x128xf32> -> vector<64x128xf32>
    %35 = arith.addf %32, %34 : vector<64x128xf32>
    %c0_17 = arith.constant 0 : index
    %c0_18 = arith.constant 0 : index
    %36 = vector.load %arg13[%c0_17, %c0_18] : memref<64x128xf32, #tpu.memory_space<vmem>>, vector<64x128xf32>
    tpu.vector_store %arg13[%c0_17, %c0_18], %35 {strides = array<i32>} : memref<64x128xf32, #tpu.memory_space<vmem>>, vector<64x128xf32>,
    %c0_19 = arith.constant 0 : index
    %c0_20 = arith.constant 0 : index
    %37 = vector.load %arg11[%c0_19, %c0_20] : memref<64x1xf32, #tpu.memory_space<vmem>>, vector<64x1xf32>
    tpu.vector_store %arg11[%c0_19, %c0_20], %18 {strides = array<i32>} : memref<64x1xf32, #tpu.memory_space<vmem>>, vector<64x1xf32>,
    %c1_i32 = arith.constant 1 : i32
    %38 = arith.cmpi eq, %arg1, %c1_i32 : i32
    %39 = arith.extui %38 : i1 to i32
    %c0_i32_21 = arith.constant 0 : i32
    %40 = arith.cmpi ne, %39, %c0_i32_21 : i32
    scf.if %40 {
      %c0_22 = arith.constant 0 : index
      %c0_23 = arith.constant 0 : index
      %c0_24 = arith.constant 0 : index
      %41 = vector.load %arg2[%c0_22, %c0_23, %c0_24] : memref<1x64x128xf32, #tpu.memory_space<vmem>>, vector<1x64x128xf32>
      %42 = vector.shape_cast %41 : vector<1x64x128xf32> to vector<64x128xf32>
      %c0_25 = arith.constant 0 : index
      %c0_26 = arith.constant 0 : index
      %43 = vector.load %arg12[%c0_25, %c0_26] : memref<64x1xf32, #tpu.memory_space<vmem>>, vector<64x1xf32>
      %44 = tpu.reciprocal %43 {approx = true} : vector<64x1xf32> -> vector<64x1xf32>
      %c0_27 = arith.constant 0 : index
      %c0_28 = arith.constant 0 : index
      %45 = vector.load %arg13[%c0_27, %c0_28] : memref<64x128xf32, #tpu.memory_space<vmem>>, vector<64x128xf32>
      %46 = arith.truncf %45 : vector<64x128xf32> to vector<64x128xbf16>
      %c2 = arith.constant 2 : index
      %c0_29 = arith.constant 0 : index
      %c0_30 = arith.constant 0 : index
      %47 = vector.load %arg4[%c2, %c0_29, %c0_30] : memref<4x128x128xbf16, #tpu.memory_space<vmem>>, vector<1x128x128xbf16>
      %48 = vector.shape_cast %47 : vector<1x128x128xbf16> to vector<128x128xbf16>
      %cst_31 = arith.constant dense<0.000000e+00> : vector<64x128xf32>
      %49 = tpu.matmul %46, %48, %cst_31 {dimension_numbers = #tpu.dot_dimension_numbers<[1], [0], [0], [1], [0, 0, 1, 1], [], []>} : vector<64x128xbf16>, vector<128x128xbf16>, vector<64x128xf32> -> vector<64x128xf32>
      %50 = vector.broadcast %44 : vector<64x1xf32> to vector<64x128xf32>
      %51 = arith.mulf %49, %50 : vector<64x128xf32>
      %c1 = arith.constant 1 : index
      %c0_32 = arith.constant 0 : index
      %52 = vector.load %arg5[%c1, %c0_32] : memref<8x128xf32, #tpu.memory_space<vmem>>, vector<1x128xf32>
      %53 = vector.broadcast %52 : vector<1x128xf32> to vector<64x128xf32>
      %54 = arith.addf %51, %53 : vector<64x128xf32>
      %55 = arith.truncf %54 : vector<64x128xf32> to vector<64x128xbf16>
      %c3 = arith.constant 3 : index
      %c0_33 = arith.constant 0 : index
      %c0_34 = arith.constant 0 : index
      %56 = vector.load %arg4[%c3, %c0_33, %c0_34] : memref<4x128x128xbf16, #tpu.memory_space<vmem>>, vector<1x128x128xbf16>
      %57 = vector.shape_cast %56 : vector<1x128x128xbf16> to vector<128x128xbf16>
      %cst_35 = arith.constant dense<0.000000e+00> : vector<64x128xf32>
      %58 = tpu.matmul %55, %57, %cst_35 {dimension_numbers = #tpu.dot_dimension_numbers<[1], [0], [0], [1], [0, 0, 1, 1], [], []>} : vector<64x128xbf16>, vector<128x128xbf16>, vector<64x128xf32> -> vector<64x128xf32>
      %c2_36 = arith.constant 2 : index
      %c0_37 = arith.constant 0 : index
      %59 = vector.load %arg5[%c2_36, %c0_37] : memref<8x128xf32, #tpu.memory_space<vmem>>, vector<1x128xf32>
      %60 = vector.broadcast %59 : vector<1x128xf32> to vector<64x128xf32>
      %61 = arith.addf %58, %60 : vector<64x128xf32>
      %62 = arith.addf %61, %42 : vector<64x128xf32>
      %cst_38 = arith.constant dense<0.000000e+00> : vector<64xf32>
      %63 = vector.multi_reduction <add>, %62, %cst_38 [1] : vector<64x128xf32> to vector<64xf32>
      %64 = vector.shape_cast %63 : vector<64xf32> to vector<64x1xf32>
      %cst_39 = arith.constant 1.280000e+02 : f32
      %65 = vector.broadcast %cst_39 : f32 to vector<64x1xf32>
      %66 = arith.divf %64, %65 : vector<64x1xf32>
      %67 = vector.broadcast %66 : vector<64x1xf32> to vector<64x128xf32>
      %68 = arith.subf %62, %67 : vector<64x128xf32>
      %69 = arith.mulf %68, %68 : vector<64x128xf32>
      %cst_40 = arith.constant dense<0.000000e+00> : vector<64xf32>
      %70 = vector.multi_reduction <add>, %69, %cst_40 [1] : vector<64x128xf32> to vector<64xf32>
      %71 = vector.shape_cast %70 : vector<64xf32> to vector<64x1xf32>
      %cst_41 = arith.constant 1.280000e+02 : f32
      %72 = vector.broadcast %cst_41 : f32 to vector<64x1xf32>
      %73 = arith.divf %71, %72 : vector<64x1xf32>
      %cst_42 = arith.constant 9.99999974E-6 : f32
      %74 = vector.broadcast %cst_42 : f32 to vector<64x1xf32>
      %75 = arith.addf %73, %74 : vector<64x1xf32>
      %76 = math.rsqrt %75 : vector<64x1xf32>
      %77 = vector.broadcast %76 : vector<64x1xf32> to vector<64x128xf32>
      %78 = arith.mulf %68, %77 : vector<64x128xf32>
      %c3_43 = arith.constant 3 : index
      %c0_44 = arith.constant 0 : index
      %79 = vector.load %arg5[%c3_43, %c0_44] : memref<8x128xf32, #tpu.memory_space<vmem>>, vector<1x128xf32>
      %80 = vector.broadcast %79 : vector<1x128xf32> to vector<64x128xf32>
      %81 = arith.mulf %78, %80 : vector<64x128xf32>
      %c4 = arith.constant 4 : index
      %c0_45 = arith.constant 0 : index
      %82 = vector.load %arg5[%c4, %c0_45] : memref<8x128xf32, #tpu.memory_space<vmem>>, vector<1x128xf32>
      %83 = vector.broadcast %82 : vector<1x128xf32> to vector<64x128xf32>
      %84 = arith.addf %81, %83 : vector<64x128xf32>
      %85 = arith.truncf %84 : vector<64x128xf32> to vector<64x128xbf16>
      %c0_46 = arith.constant 0 : index
      %c0_47 = arith.constant 0 : index
      %86 = vector.load %arg6[%c0_46, %c0_47] : memref<128x256xbf16, #tpu.memory_space<vmem>>, vector<128x256xbf16>
      %cst_48 = arith.constant dense<0.000000e+00> : vector<64x256xf32>
      %87 = tpu.matmul %85, %86, %cst_48 {dimension_numbers = #tpu.dot_dimension_numbers<[1], [0], [0], [1], [0, 0, 1, 1], [], []>} : vector<64x128xbf16>, vector<128x256xbf16>, vector<64x256xf32> -> vector<64x256xf32>
      %c0_49 = arith.constant 0 : index
      %c0_50 = arith.constant 0 : index
      %88 = vector.load %arg7[%c0_49, %c0_50] : memref<1x256xf32, #tpu.memory_space<vmem>>, vector<1x256xf32>
      %89 = vector.broadcast %88 : vector<1x256xf32> to vector<64x256xf32>
      %90 = arith.addf %87, %89 : vector<64x256xf32>
      %cst_51 = arith.constant 0.000000e+00 : f32
      %91 = vector.broadcast %cst_51 : f32 to vector<64x256xf32>
      %92 = arith.maximumf %90, %91 : vector<64x256xf32>
      %93 = arith.truncf %92 : vector<64x256xf32> to vector<64x256xbf16>
      %c0_52 = arith.constant 0 : index
      %c0_53 = arith.constant 0 : index
      %94 = vector.load %arg8[%c0_52, %c0_53] : memref<256x128xbf16, #tpu.memory_space<vmem>>, vector<256x128xbf16>
      %cst_54 = arith.constant dense<0.000000e+00> : vector<64x128xf32>
      %95 = tpu.matmul %93, %94, %cst_54 {dimension_numbers = #tpu.dot_dimension_numbers<[1], [0], [0], [1], [0, 0, 1, 1], [], []>} : vector<64x256xbf16>, vector<256x128xbf16>, vector<64x128xf32> -> vector<64x128xf32>
      %c5 = arith.constant 5 : index
      %c0_55 = arith.constant 0 : index
      %96 = vector.load %arg5[%c5, %c0_55] : memref<8x128xf32, #tpu.memory_space<vmem>>, vector<1x128xf32>
      %97 = vector.broadcast %96 : vector<1x128xf32> to vector<64x128xf32>
      %98 = arith.addf %95, %97 : vector<64x128xf32>
      %99 = arith.addf %98, %84 : vector<64x128xf32>
      %cst_56 = arith.constant dense<0.000000e+00> : vector<64xf32>
      %100 = vector.multi_reduction <add>, %99, %cst_56 [1] : vector<64x128xf32> to vector<64xf32>
      %101 = vector.shape_cast %100 : vector<64xf32> to vector<64x1xf32>
      %cst_57 = arith.constant 1.280000e+02 : f32
      %102 = vector.broadcast %cst_57 : f32 to vector<64x1xf32>
      %103 = arith.divf %101, %102 : vector<64x1xf32>
      %104 = vector.broadcast %103 : vector<64x1xf32> to vector<64x128xf32>
      %105 = arith.subf %99, %104 : vector<64x128xf32>
      %106 = arith.mulf %105, %105 : vector<64x128xf32>
      %cst_58 = arith.constant dense<0.000000e+00> : vector<64xf32>
      %107 = vector.multi_reduction <add>, %106, %cst_58 [1] : vector<64x128xf32> to vector<64xf32>
      %108 = vector.shape_cast %107 : vector<64xf32> to vector<64x1xf32>
      %cst_59 = arith.constant 1.280000e+02 : f32
      %109 = vector.broadcast %cst_59 : f32 to vector<64x1xf32>
      %110 = arith.divf %108, %109 : vector<64x1xf32>
      %cst_60 = arith.constant 9.99999974E-6 : f32
      %111 = vector.broadcast %cst_60 : f32 to vector<64x1xf32>
      %112 = arith.addf %110, %111 : vector<64x1xf32>
      %113 = math.rsqrt %112 : vector<64x1xf32>
      %114 = vector.broadcast %113 : vector<64x1xf32> to vector<64x128xf32>
      %115 = arith.mulf %105, %114 : vector<64x128xf32>
      %c6 = arith.constant 6 : index
      %c0_61 = arith.constant 0 : index
      %116 = vector.load %arg5[%c6, %c0_61] : memref<8x128xf32, #tpu.memory_space<vmem>>, vector<1x128xf32>
      %117 = vector.broadcast %116 : vector<1x128xf32> to vector<64x128xf32>
      %118 = arith.mulf %115, %117 : vector<64x128xf32>
      %c7 = arith.constant 7 : index
      %c0_62 = arith.constant 0 : index
      %119 = vector.load %arg5[%c7, %c0_62] : memref<8x128xf32, #tpu.memory_space<vmem>>, vector<1x128xf32>
      %120 = vector.broadcast %119 : vector<1x128xf32> to vector<64x128xf32>
      %121 = arith.addf %118, %120 : vector<64x128xf32>
      %c0_63 = arith.constant 0 : index
      %c0_64 = arith.constant 0 : index
      %c0_65 = arith.constant 0 : index
      %122 = vector.load %arg9[%c0_63, %c0_64, %c0_65] : memref<1x64x128xf32, #tpu.memory_space<vmem>>, vector<1x64x128xf32>
      %123 = vector.shape_cast %122 : vector<1x64x128xf32> to vector<64x128xf32>
      %124 = vector.shape_cast %121 : vector<64x128xf32> to vector<1x64x128xf32>
      tpu.vector_store %arg9[%c0_63, %c0_64, %c0_65], %124 {strides = array<i32>} : memref<1x64x128xf32, #tpu.memory_space<vmem>>, vector<1x64x128xf32>,
    } else {
    }
    return
  }
  func.func @transform_0(%arg0: i32, %arg1: i32) -> (i32, i32, i32) {
    %c0_i32 = arith.constant 0 : i32
    %c0_i32_0 = arith.constant 0 : i32
    %c0_i32_1 = arith.constant 0 : i32
    return %arg0, %c0_i32, %c0_i32_0 : i32, i32, i32
  }
  func.func @transform_1(%arg0: i32, %arg1: i32) -> (i32, i32, i32) {
    %c0_i32 = arith.constant 0 : i32
    %c0_i32_0 = arith.constant 0 : i32
    return %arg0, %arg1, %c0_i32 : i32, i32, i32
  }
  func.func @transform_2(%arg0: i32, %arg1: i32) -> (i32, i32, i32) {
    %c0_i32 = arith.constant 0 : i32
    %c0_i32_0 = arith.constant 0 : i32
    %c0_i32_1 = arith.constant 0 : i32
    %c0_i32_2 = arith.constant 0 : i32
    return %c0_i32, %c0_i32_0, %c0_i32_1 : i32, i32, i32
  }
  func.func @transform_3(%arg0: i32, %arg1: i32) -> (i32, i32) {
    %c0_i32 = arith.constant 0 : i32
    %c0_i32_0 = arith.constant 0 : i32
    %c0_i32_1 = arith.constant 0 : i32
    return %c0_i32, %c0_i32_0 : i32, i32
  }
  func.func @transform_4(%arg0: i32, %arg1: i32) -> (i32, i32) {
    %c0_i32 = arith.constant 0 : i32
    %c0_i32_0 = arith.constant 0 : i32
    %c0_i32_1 = arith.constant 0 : i32
    return %c0_i32, %c0_i32_0 : i32, i32
  }
  func.func @transform_5(%arg0: i32, %arg1: i32) -> (i32, i32) {
    %c0_i32 = arith.constant 0 : i32
    %c0_i32_0 = arith.constant 0 : i32
    %c0_i32_1 = arith.constant 0 : i32
    return %c0_i32, %c0_i32_0 : i32, i32
  }
  func.func @transform_6(%arg0: i32, %arg1: i32) -> (i32, i32) {
    %c0_i32 = arith.constant 0 : i32
    %c0_i32_0 = arith.constant 0 : i32
    %c0_i32_1 = arith.constant 0 : i32
    return %c0_i32, %c0_i32_0 : i32, i32
  }
  func.func @transform_7(%arg0: i32, %arg1: i32) -> (i32, i32, i32) {
    %c0_i32 = arith.constant 0 : i32
    %c0_i32_0 = arith.constant 0 : i32
    %c0_i32_1 = arith.constant 0 : i32
    return %arg0, %c0_i32, %c0_i32_0 : i32, i32, i32
  }
}

</mosaic_0001>

<llo_original>
// kernel: bevformer_v2_forward.3
$region0: #{bevformer_v2_forward.3}
  #allocation0 [shape = 'u32[]', space=smem, size = 0x4, offset = 0x4, fixed_abs, tag = 'smem constant byte address 0x4 - core index']
  #allocation1 [shape = 'u32[144,128]{1,0:T(1,128)}', space=vmem, size = 0x12000, scoped, tag = 'internal scratch']
  %s0 = inlined_call_operand.vmem [shape: f32[1536,64], index: 0, kind: input, shape index: {}]
  %s1 = inlined_call_operand.vmem [shape: f32[1,64], index: 1, kind: input, shape index: {}]
  %s2 = inlined_call_operand.vmem [shape: bf16[64,128], index: 2, kind: input, shape index: {}]
  %s3 = inlined_call_operand.vmem [shape: f32[1,128], index: 3, kind: input, shape index: {}]
  %s4 = inlined_call_operand.vmem [shape: bf16[1536,128], index: 4, kind: output, shape index: {}]
  %s5 = sld [smem:[#allocation0]]
  $region49: #{bevformer_v2_forward.3} parent=0
    _
  %s7 = ssub.s32 1, %s5
  %s8 = scalar_select 0, %s7, %s5
  loop: start=0, step=1, limit=4
  $region2: #{bevformer_v2_forward.3} parent=0 // loop_pre_header
    _
  $region3: #{bevformer_v2_forward.3} parent=0 // loop_header
    %s10 = sphi 0, %s14
    %p11 = scmp.ge.s32.totalorder %s10, 4
    %s20 = sphi 0, %s22
    %s23 = sphi 0, %s20
    %s24 = sphi 0, %s23
    %s40 = sphi 0, %s24
    %s44 = sphi 0, %s44
    %s46 = sphi 0, %s44
    %s47 = sphi 0, %s46
    %s61 = sphi 0, %s47
    %s65 = sphi 0, %s65
    %s67 = sphi 0, %s65
    %s68 = sphi 0, %s67
    %s82 = sphi 0, %s68
    %s86 = sphi 0, %s86
    %s88 = sphi 0, %s86
    %s89 = sphi 0, %s88
    %s103 = sphi 0, %s89
    %s109 = sphi 0, %s111
    %s112 = sphi 0, %s109
    %s113 = sphi 0, %s112
    %s129 = sphi 0, %s113
  $region4: #{bevformer_v2_forward.3} parent=0 // loop_header_branch
    %13 = sbr.rel (%p11) target = $region8
  $region5: #{bevformer_v2_forward.3} parent=0 // loop_body
    %s15 = ssub.s32 %s10, 1
    %s16 = ssub.s32 %s10, 2
    %s17 = sadd.s32 %s10, 1
    %s18 = ssub.s32 %s10, %s17
    %p19 = scmp.eq.s32.totalorder %s18, 0
    %s21 = sadd.s32 %s20, 1
    %s22 = scalar_select %p19, %s20, %s21
    %p25 = pneg %p19
    %p26 = scmp.eq.s32.totalorder %s10, 1
    %p27 = por %p25, %p26
    %p28 = scmp.ne.s32.totalorder %s20, %s23
    %p29 = scmp.eq.s32.totalorder %s10, 0
    %p30 = por %p28, %p29
    %p31 = scmp.ne.s32.totalorder %s20, %s23
    %p32 = scmp.eq.s32.totalorder %s15, 1
    %p33 = por %p31, %p32
    %p34 = scmp.ne.s32.totalorder %s23, %s24
    %p35 = scmp.eq.s32.totalorder %s15, 0
    %p36 = por %p34, %p35
    %p37 = scmp.ne.s32.totalorder %s23, %s24
    %p38 = scmp.eq.s32.totalorder %s16, 1
    %p39 = por %p37, %p38
    %p41 = scmp.ne.s32.totalorder %s24, %s40
    %p42 = scmp.eq.s32.totalorder %s16, 0
    %p43 = por %p41, %p42
    %s45 = sadd.s32 %s44, 1
    %p48 = scmp.eq.s32.totalorder %s10, 1
    %p49 = scmp.ne.s32.totalorder %s44, %s46
    %p50 = scmp.eq.s32.totalorder %s10, 0
    %p51 = por %p49, %p50
    %p52 = scmp.ne.s32.totalorder %s44, %s46
    %p53 = scmp.eq.s32.totalorder %s15, 1
    %p54 = por %p52, %p53
    %p55 = scmp.ne.s32.totalorder %s46, %s47
    %p56 = scmp.eq.s32.totalorder %s15, 0
    %p57 = por %p55, %p56
    %p58 = scmp.ne.s32.totalorder %s46, %s47
    %p59 = scmp.eq.s32.totalorder %s16, 1
    %p60 = por %p58, %p59
    %p62 = scmp.ne.s32.totalorder %s47, %s61
    %p63 = scmp.eq.s32.totalorder %s16, 0
    %p64 = por %p62, %p63
    %s66 = sadd.s32 %s65, 1
    %p69 = scmp.eq.s32.totalorder %s10, 1
    %p70 = scmp.ne.s32.totalorder %s65, %s67
    %p71 = scmp.eq.s32.totalorder %s10, 0
    %p72 = por %p70, %p71
    %p73 = scmp.ne.s32.totalorder %s65, %s67
    %p74 = scmp.eq.s32.totalorder %s15, 1
    %p75 = por %p73, %p74
    %p76 = scmp.ne.s32.totalorder %s67, %s68
    %p77 = scmp.eq.s32.totalorder %s15, 0
    %p78 = por %p76, %p77
    %p79 = scmp.ne.s32.totalorder %s67, %s68
    %p80 = scmp.eq.s32.totalorder %s16, 1
    %p81 = por %p79, %p80
    %p83 = scmp.ne.s32.totalorder %s68, %s82
    %p84 = scmp.eq.s32.totalorder %s16, 0
    %p85 = por %p83, %p84
    %s87 = sadd.s32 %s86, 1
    %p90 = scmp.eq.s32.totalorder %s10, 1
    %p91 = scmp.ne.s32.totalorder %s86, %s88
    %p92 = scmp.eq.s32.totalorder %s10, 0
    %p93 = por %p91, %p92
    %p94 = scmp.ne.s32.totalorder %s86, %s88
    %p95 = scmp.eq.s32.totalorder %s15, 1
    %p96 = por %p94, %p95
    %p97 = scmp.ne.s32.totalorder %s88, %s89
    %p98 = scmp.eq.s32.totalorder %s15, 0
    %p99 = por %p97, %p98
    %p100 = scmp.ne.s32.totalorder %s88, %s89
    %p101 = scmp.eq.s32.totalorder %s16, 1
    %p102 = por %p100, %p101
    %p104 = scmp.ne.s32.totalorder %s89, %s103
    %p105 = scmp.eq.s32.totalorder %s16, 0
    %p106 = por %p104, %p105
    %s107 = ssub.s32 %s10, %s17
    %p108 = scmp.eq.s32.totalorder %s107, 0
    %s110 = sadd.s32 %s109, 1
    %s111 = scalar_select %p108, %s109, %s110
    %p114 = pneg %p108
    %p115 = scmp.eq.s32.totalorder %s10, 1
    %p116 = por %p114, %p115
    %p117 = scmp.ne.s32.totalorder %s109, %s112
    %p118 = scmp.eq.s32.totalorder %s10, 0
    %p119 = por %p117, %p118
    %p120 = scmp.ne.s32.totalorder %s109, %s112
    %p121 = scmp.eq.s32.totalorder %s15, 1
    %p122 = por %p120, %p121
    %p123 = scmp.ne.s32.totalorder %s112, %s113
    %p124 = scmp.eq.s32.totalorder %s15, 0
    %p125 = por %p123, %p124
    %p126 = scmp.ne.s32.totalorder %s112, %s113
    %p127 = scmp.eq.s32.totalorder %s16, 1
    %p128 = por %p126, %p127
    %p130 = scmp.ne.s32.totalorder %s113, %s129
    %p131 = scmp.eq.s32.totalorder %s16, 0
    %p132 = por %p130, %p131
    %p133 = scmp.le.s32.totalorder 1, %s10
    %p134 = scmp.lt.s32.totalorder %s10, 3
    %p135 = pnand %p133, %p134
    %p136 = pneg %p135
    // Predicated region
    $region9: #{bevformer_v2_forward.3} parent=5 // pred_check
      _
    $region10: #{bevformer_v2_forward.3} parent=5 // pred_check_branch
      %138 = sbr.rel (%p135) target = $region12
    $region11: #{bevformer_v2_forward.3} parent=5 // pred_region
      %s139 = ssub.s32 %s10, 1
      // Predicated region
      $region13: #{bevformer_v2_forward.3} parent=11 // pred_check
        %p140 = pneg %p57
      $region14: #{bevformer_v2_forward.3} parent=11 // pred_check_branch
        %142 = sbr.rel (%p140) target = $region16
      $region15: #{bevformer_v2_forward.3} parent=11 // pred_region
        _
      $region16: #{bevformer_v2_forward.3} parent=11 // pred_fallthru
        _
      // Predicated region
      $region17: #{bevformer_v2_forward.3} parent=11 // pred_check
        %p143 = pneg %p78
      $region18: #{bevformer_v2_forward.3} parent=11 // pred_check_branch
        %145 = sbr.rel (%p143) target = $region20
      $region19: #{bevformer_v2_forward.3} parent=11 // pred_region
        _
      $region20: #{bevformer_v2_forward.3} parent=11 // pred_fallthru
        _
      // Predicated region
      $region21: #{bevformer_v2_forward.3} parent=11 // pred_check
        %p146 = pneg %p99
      $region22: #{bevformer_v2_forward.3} parent=11 // pred_check_branch
        %148 = sbr.rel (%p146) target = $region24
      $region23: #{bevformer_v2_forward.3} parent=11 // pred_region
        _
      $region24: #{bevformer_v2_forward.3} parent=11 // pred_fallthru
        _
    $region12: #{bevformer_v2_forward.3} parent=5 // pred_fallthru
      _
    %p149 = scmp.lt.s32.totalorder %s10, 2
    // Predicated region
    $region25: #{bevformer_v2_forward.3} parent=5 // pred_check
      %p150 = pneg %p149
    $region26: #{bevformer_v2_forward.3} parent=5 // pred_check_branch
      %152 = sbr.rel (%p150) target = $region28
    $region27: #{bevformer_v2_forward.3} parent=5 // pred_region
      // Predicated region
      $region29: #{bevformer_v2_forward.3} parent=27 // pred_check
        %p153 = pneg %p30
      $region30: #{bevformer_v2_forward.3} parent=27 // pred_check_branch
        %155 = sbr.rel (%p153) target = $region32
      $region31: #{bevformer_v2_forward.3} parent=27 // pred_region
        %s156 = smul.u32 96, %s10
        %p157 = scmp.lt.s32.totalorder %s156, 191
        %s158 = scalar_select %p157, %s156, 191
        %s159 = smul.addr %s158, 8
        %s160 = scalar_lea.vmem %s0, %s159
        %s161 = smul.u32 96, %s10
      $region32: #{bevformer_v2_forward.3} parent=27 // pred_fallthru
        _
    $region28: #{bevformer_v2_forward.3} parent=5 // pred_fallthru
      _
    %p162 = scmp.le.s32.totalorder 1, %s10
    %p163 = scmp.lt.s32.totalorder %s10, 3
    %p164 = pnand %p162, %p163
    %p165 = pneg %p164
    // Predicated region
    $region33: #{bevformer_v2_forward.3} parent=5 // pred_check
      _
    $region34: #{bevformer_v2_forward.3} parent=5 // pred_check_branch
      %167 = sbr.rel (%p164) target = $region36
    $region35: #{bevformer_v2_forward.3} parent=5 // pred_region
      %s168 = ssub.s32 %s10, 1
      %s169 = smul.u32 96, %s15
      %p170 = scmp.lt.s32.totalorder %s169, 191
      %s171 = scalar_select %p170, %s169, 191
      %s172 = smul.addr %s171, 8
      %s173 = scalar_lea.vmem %s0, %s172
      %p174 = pneg %p36
      %p175 = pneg %p33
      %p176 = pneg %p57
      %p177 = pneg %p54
      %p178 = pneg %p78
      %p179 = pneg %p75
      %p180 = pneg %p99
      %p181 = pneg %p96
      %p182 = pneg %p125
      %p183 = pneg %p122
      %s184 = smul.u32 96, %s15
      %p185 = scmp.lt.s32.totalorder %s184, 191
      %s186 = scalar_select %p185, %s184, 191
      %s187 = smul.addr %s186, 4
      %s188 = scalar_lea.vmem %s4, %s187
      %s189 = smul.u32 96, %s15
      %p190 = scmp.lt.s32.totalorder %s189, 191
      %s191 = scalar_select %p190, %s189, 191
      %s192 = smul.addr %s191, 8
      %s193 = scalar_lea.vmem %s0, %s192
      %s194 = smul.u32 96, %s15
      %s195 = smul.u32 96, %s15
      %p196 = scmp.lt.s32.totalorder %s195, 191
      %s197 = scalar_select %p196, %s195, 191
      %s198 = smul.addr %s197, 4
      %s199 = scalar_lea.vmem %s4, %s198
      %s200 = smul.u32 96, %s15
      %v202 = vld [vmem:[%s193] sm:$0xff]
      %v203 = vld [vmem:[%s193 + $0x8] sm:$0xff]
      %v204 = vld [vmem:[%s193 + $0x10] sm:$0xff]
      %v205 = vld [vmem:[%s193 + $0x18] sm:$0xff]
      %v206 = vld [vmem:[%s193 + $0x20] sm:$0xff]
      %v207 = vld [vmem:[%s193 + $0x28] sm:$0xff]
      %v208 = vld [vmem:[%s193 + $0x30] sm:$0xff]
      %v209 = vld [vmem:[%s193 + $0x38] sm:$0xff]
      %v210 = vld [vmem:[%s193 + $0x40] sm:$0xff]
      %v211 = vld [vmem:[%s193 + $0x48] sm:$0xff]
      %v212 = vld [vmem:[%s193 + $0x50] sm:$0xff]
      %v213 = vld [vmem:[%s193 + $0x58] sm:$0xff]
      %v214 = vld [vmem:[%s193 + $0x60] sm:$0xff]
      %v215 = vld [vmem:[%s193 + $0x68] sm:$0xff]
      %v216 = vld [vmem:[%s193 + $0x70] sm:$0xff]
      %v217 = vld [vmem:[%s193 + $0x78] sm:$0xff]
      %v218 = vld [vmem:[%s193 + $0x80] sm:$0xff]
      %v219 = vld [vmem:[%s193 + $0x88] sm:$0xff]
      %v220 = vld [vmem:[%s193 + $0x90] sm:$0xff]
      %v221 = vld [vmem:[%s193 + $0x98] sm:$0xff]
      %v222 = vld [vmem:[%s193 + $0xa0] sm:$0xff]
      %v223 = vld [vmem:[%s193 + $0xa8] sm:$0xff]
      %v224 = vld [vmem:[%s193 + $0xb0] sm:$0xff]
      %v225 = vld [vmem:[%s193 + $0xb8] sm:$0xff]
      %v226 = vld [vmem:[%s193 + $0xc0] sm:$0xff]
      %v227 = vld [vmem:[%s193 + $0xc8] sm:$0xff]
      %v228 = vld [vmem:[%s193 + $0xd0] sm:$0xff]
      %v229 = vld [vmem:[%s193 + $0xd8] sm:$0xff]
      %v230 = vld [vmem:[%s193 + $0xe0] sm:$0xff]
      %v231 = vld [vmem:[%s193 + $0xe8] sm:$0xff]
      %v232 = vld [vmem:[%s193 + $0xf0] sm:$0xff]
      %v233 = vld [vmem:[%s193 + $0xf8] sm:$0xff]
      %v234 = vld [vmem:[%s193 + $0x100] sm:$0xff]
      %v235 = vld [vmem:[%s193 + $0x108] sm:$0xff]
      %v236 = vld [vmem:[%s193 + $0x110] sm:$0xff]
      %v237 = vld [vmem:[%s193 + $0x118] sm:$0xff]
      %v238 = vld [vmem:[%s193 + $0x120] sm:$0xff]
      %v239 = vld [vmem:[%s193 + $0x128] sm:$0xff]
      %v240 = vld [vmem:[%s193 + $0x130] sm:$0xff]
      %v241 = vld [vmem:[%s193 + $0x138] sm:$0xff]
      %v242 = vld [vmem:[%s193 + $0x140] sm:$0xff]
      %v243 = vld [vmem:[%s193 + $0x148] sm:$0xff]
      %v244 = vld [vmem:[%s193 + $0x150] sm:$0xff]
      %v245 = vld [vmem:[%s193 + $0x158] sm:$0xff]
      %v246 = vld [vmem:[%s193 + $0x160] sm:$0xff]
      %v247 = vld [vmem:[%s193 + $0x168] sm:$0xff]
      %v248 = vld [vmem:[%s193 + $0x170] sm:$0xff]
      %v249 = vld [vmem:[%s193 + $0x178] sm:$0xff]
      %v250 = vld [vmem:[%s193 + $0x180] sm:$0xff]
      %v251 = vld [vmem:[%s193 + $0x188] sm:$0xff]
      %v252 = vld [vmem:[%s193 + $0x190] sm:$0xff]
      %v253 = vld [vmem:[%s193 + $0x198] sm:$0xff]
      %v254 = vld [vmem:[%s193 + $0x1a0] sm:$0xff]
      %v255 = vld [vmem:[%s193 + $0x1a8] sm:$0xff]
      %v256 = vld [vmem:[%s193 + $0x1b0] sm:$0xff]
      %v257 = vld [vmem:[%s193 + $0x1b8] sm:$0xff]
      %v258 = vld [vmem:[%s193 + $0x1c0] sm:$0xff]
      %v259 = vld [vmem:[%s193 + $0x1c8] sm:$0xff]
      %v260 = vld [vmem:[%s193 + $0x1d0] sm:$0xff]
      %v261 = vld [vmem:[%s193 + $0x1d8] sm:$0xff]
      %v262 = vld [vmem:[%s193 + $0x1e0] sm:$0xff]
      %v263 = vld [vmem:[%s193 + $0x1e8] sm:$0xff]
      %v264 = vld [vmem:[%s193 + $0x1f0] sm:$0xff]
      %v265 = vld [vmem:[%s193 + $0x1f8] sm:$0xff]
      %v266 = vld [vmem:[%s193 + $0x200] sm:$0xff]
      %v267 = vld [vmem:[%s193 + $0x208] sm:$0xff]
      %v268 = vld [vmem:[%s193 + $0x210] sm:$0xff]
      %v269 = vld [vmem:[%s193 + $0x218] sm:$0xff]
      %v270 = vld [vmem:[%s193 + $0x220] sm:$0xff]
      %v271 = vld [vmem:[%s193 + $0x228] sm:$0xff]
      %v272 = vld [vmem:[%s193 + $0x230] sm:$0xff]
      %v273 = vld [vmem:[%s193 + $0x238] sm:$0xff]
      %v274 = vld [vmem:[%s193 + $0x240] sm:$0xff]
      %v275 = vld [vmem:[%s193 + $0x248] sm:$0xff]
      %v276 = vld [vmem:[%s193 + $0x250] sm:$0xff]
      %v277 = vld [vmem:[%s193 + $0x258] sm:$0xff]
      %v278 = vld [vmem:[%s193 + $0x260] sm:$0xff]
      %v279 = vld [vmem:[%s193 + $0x268] sm:$0xff]
      %v280 = vld [vmem:[%s193 + $0x270] sm:$0xff]
      %v281 = vld [vmem:[%s193 + $0x278] sm:$0xff]
      %v282 = vld [vmem:[%s193 + $0x280] sm:$0xff]
      %v283 = vld [vmem:[%s193 + $0x288] sm:$0xff]
      %v284 = vld [vmem:[%s193 + $0x290] sm:$0xff]
      %v285 = vld [vmem:[%s193 + $0x298] sm:$0xff]
      %v286 = vld [vmem:[%s193 + $0x2a0] sm:$0xff]
      %v287 = vld [vmem:[%s193 + $0x2a8] sm:$0xff]
      %v288 = vld [vmem:[%s193 + $0x2b0] sm:$0xff]
      %v289 = vld [vmem:[%s193 + $0x2b8] sm:$0xff]
      %v290 = vld [vmem:[%s193 + $0x2c0] sm:$0xff]
      %v291 = vld [vmem:[%s193 + $0x2c8] sm:$0xff]
      %v292 = vld [vmem:[%s193 + $0x2d0] sm:$0xff]
      %v293 = vld [vmem:[%s193 + $0x2d8] sm:$0xff]
      %v294 = vld [vmem:[%s193 + $0x2e0] sm:$0xff]
      %v295 = vld [vmem:[%s193 + $0x2e8] sm:$0xff]
      %v296 = vld [vmem:[%s193 + $0x2f0] sm:$0xff]
      %v297 = vld [vmem:[%s193 + $0x2f8] sm:$0xff]
      %v298 = vld [vmem:[%s1] sm:$0x1]
      %v300 = vlaneseq
      %v301 = vshrl.u32 %v300, 7
      %v302 = vsub.s32 0, %v301
      %v303 = vrot.slane %v298, %v302
      %v305 = vadd.f32 %v202, %v303
      %v306 = vadd.f32 %v203, %v303
      %v307 = vadd.f32 %v204, %v303
      %v308 = vadd.f32 %v205, %v303
      %v309 = vadd.f32 %v206, %v303
      %v310 = vadd.f32 %v207, %v303
      %v311 = vadd.f32 %v208, %v303
      %v312 = vadd.f32 %v209, %v303
      %v313 = vadd.f32 %v210, %v303
      %v314 = vadd.f32 %v211, %v303
      %v315 = vadd.f32 %v212, %v303
      %v316 = vadd.f32 %v213, %v303
      %v317 = vadd.f32 %v214, %v303
      %v318 = vadd.f32 %v215, %v303
      %v319 = vadd.f32 %v216, %v303
      %v320 = vadd.f32 %v217, %v303
      %v321 = vadd.f32 %v218, %v303
      %v322 = vadd.f32 %v219, %v303
      %v323 = vadd.f32 %v220, %v303
      %v324 = vadd.f32 %v221, %v303
      %v325 = vadd.f32 %v222, %v303
      %v326 = vadd.f32 %v223, %v303
      %v327 = vadd.f32 %v224, %v303
      %v328 = vadd.f32 %v225, %v303
      %v329 = vadd.f32 %v226, %v303
      %v330 = vadd.f32 %v227, %v303
      %v331 = vadd.f32 %v228, %v303
      %v332 = vadd.f32 %v229, %v303
      %v333 = vadd.f32 %v230, %v303
      %v334 = vadd.f32 %v231, %v303
      %v335 = vadd.f32 %v232, %v303
      %v336 = vadd.f32 %v233, %v303
      %v337 = vadd.f32 %v234, %v303
      %v338 = vadd.f32 %v235, %v303
      %v339 = vadd.f32 %v236, %v303
      %v340 = vadd.f32 %v237, %v303
      %v341 = vadd.f32 %v238, %v303
      %v342 = vadd.f32 %v239, %v303
      %v343 = vadd.f32 %v240, %v303
      %v344 = vadd.f32 %v241, %v303
      %v345 = vadd.f32 %v242, %v303
      %v346 = vadd.f32 %v243, %v303
      %v347 = vadd.f32 %v244, %v303
      %v348 = vadd.f32 %v245, %v303
      %v349 = vadd.f32 %v246, %v303
      %v350 = vadd.f32 %v247, %v303
      %v351 = vadd.f32 %v248, %v303
      %v352 = vadd.f32 %v249, %v303
      %v353 = vadd.f32 %v250, %v303
      %v354 = vadd.f32 %v251, %v303
      %v355 = vadd.f32 %v252, %v303
      %v356 = vadd.f32 %v253, %v303
      %v357 = vadd.f32 %v254, %v303
      %v358 = vadd.f32 %v255, %v303
      %v359 = vadd.f32 %v256, %v303
      %v360 = vadd.f32 %v257, %v303
      %v361 = vadd.f32 %v258, %v303
      %v362 = vadd.f32 %v259, %v303
      %v363 = vadd.f32 %v260, %v303
      %v364 = vadd.f32 %v261, %v303
      %v365 = vadd.f32 %v262, %v303
      %v366 = vadd.f32 %v263, %v303
      %v367 = vadd.f32 %v264, %v303
      %v368 = vadd.f32 %v265, %v303
      %v369 = vadd.f32 %v266, %v303
      %v370 = vadd.f32 %v267, %v303
      %v371 = vadd.f32 %v268, %v303
      %v372 = vadd.f32 %v269, %v303
      %v373 = vadd.f32 %v270, %v303
      %v374 = vadd.f32 %v271, %v303
      %v375 = vadd.f32 %v272, %v303
      %v376 = vadd.f32 %v273, %v303
      %v377 = vadd.f32 %v274, %v303
      %v378 = vadd.f32 %v275, %v303
      %v379 = vadd.f32 %v276, %v303
      %v380 = vadd.f32 %v277, %v303
      %v381 = vadd.f32 %v278, %v303
      %v382 = vadd.f32 %v279, %v303
      %v383 = vadd.f32 %v280, %v303
      %v384 = vadd.f32 %v281, %v303
      %v385 = vadd.f32 %v282, %v303
      %v386 = vadd.f32 %v283, %v303
      %v387 = vadd.f32 %v284, %v303
      %v388 = vadd.f32 %v285, %v303
      %v389 = vadd.f32 %v286, %v303
      %v390 = vadd.f32 %v287, %v303
      %v391 = vadd.f32 %v288, %v303
      %v392 = vadd.f32 %v289, %v303
      %v393 = vadd.f32 %v290, %v303
      %v394 = vadd.f32 %v291, %v303
      %v395 = vadd.f32 %v292, %v303
      %v396 = vadd.f32 %v293, %v303
      %v397 = vadd.f32 %v294, %v303
      %v398 = vadd.f32 %v295, %v303
      %v399 = vadd.f32 %v296, %v303
      %v400 = vadd.f32 %v297, %v303
      %v401 = vmax.f32 %v305, 0.0
      %v402 = vmax.f32 %v306, 0.0
      %v403 = vmax.f32 %v307, 0.0
      %v404 = vmax.f32 %v308, 0.0
      %v405 = vmax.f32 %v309, 0.0
      %v406 = vmax.f32 %v310, 0.0
      %v407 = vmax.f32 %v311, 0.0
      %v408 = vmax.f32 %v312, 0.0
      %v409 = vmax.f32 %v313, 0.0
      %v410 = vmax.f32 %v314, 0.0
      %v411 = vmax.f32 %v315, 0.0
      %v412 = vmax.f32 %v316, 0.0
      %v413 = vmax.f32 %v317, 0.0
      %v414 = vmax.f32 %v318, 0.0
      %v415 = vmax.f32 %v319, 0.0
      %v416 = vmax.f32 %v320, 0.0
      %v417 = vmax.f32 %v321, 0.0
      %v418 = vmax.f32 %v322, 0.0
      %v419 = vmax.f32 %v323, 0.0
      %v420 = vmax.f32 %v324, 0.0
      %v421 = vmax.f32 %v325, 0.0
      %v422 = vmax.f32 %v326, 0.0
      %v423 = vmax.f32 %v327, 0.0
      %v424 = vmax.f32 %v328, 0.0
      %v425 = vmax.f32 %v329, 0.0
      %v426 = vmax.f32 %v330, 0.0
      %v427 = vmax.f32 %v331, 0.0
      %v428 = vmax.f32 %v332, 0.0
      %v429 = vmax.f32 %v333, 0.0
      %v430 = vmax.f32 %v334, 0.0
      %v431 = vmax.f32 %v335, 0.0
      %v432 = vmax.f32 %v336, 0.0
      %v433 = vmax.f32 %v337, 0.0
      %v434 = vmax.f32 %v338, 0.0
      %v435 = vmax.f32 %v339, 0.0
      %v436 = vmax.f32 %v340, 0.0
      %v437 = vmax.f32 %v341, 0.0
      %v438 = vmax.f32 %v342, 0.0
      %v439 = vmax.f32 %v343, 0.0
      %v440 = vmax.f32 %v344, 0.0
      %v441 = vmax.f32 %v345, 0.0
      %v442 = vmax.f32 %v346, 0.0
      %v443 = vmax.f32 %v347, 0.0
      %v444 = vmax.f32 %v348, 0.0
      %v445 = vmax.f32 %v349, 0.0
      %v446 = vmax.f32 %v350, 0.0
      %v447 = vmax.f32 %v351, 0.0
      %v448 = vmax.f32 %v352, 0.0
      %v449 = vmax.f32 %v353, 0.0
      %v450 = vmax.f32 %v354, 0.0
      %v451 = vmax.f32 %v355, 0.0
      %v452 = vmax.f32 %v356, 0.0
      %v453 = vmax.f32 %v357, 0.0
      %v454 = vmax.f32 %v358, 0.0
      %v455 = vmax.f32 %v359, 0.0
      %v456 = vmax.f32 %v360, 0.0
      %v457 = vmax.f32 %v361, 0.0
      %v458 = vmax.f32 %v362, 0.0
      %v459 = vmax.f32 %v363, 0.0
      %v460 = vmax.f32 %v364, 0.0
      %v461 = vmax.f32 %v365, 0.0
      %v462 = vmax.f32 %v366, 0.0
      %v463 = vmax.f32 %v367, 0.0
      %v464 = vmax.f32 %v368, 0.0
      %v465 = vmax.f32 %v369, 0.0
      %v466 = vmax.f32 %v370, 0.0
      %v467 = vmax.f32 %v371, 0.0
      %v468 = vmax.f32 %v372, 0.0
      %v469 = vmax.f32 %v373, 0.0
      %v470 = vmax.f32 %v374, 0.0
      %v471 = vmax.f32 %v375, 0.0
      %v472 = vmax.f32 %v376, 0.0
      %v473 = vmax.f32 %v377, 0.0
      %v474 = vmax.f32 %v378, 0.0
      %v475 = vmax.f32 %v379, 0.0
      %v476 = vmax.f32 %v380, 0.0
      %v477 = vmax.f32 %v381, 0.0
      %v478 = vmax.f32 %v382, 0.0
      %v479 = vmax.f32 %v383, 0.0
      %v480 = vmax.f32 %v384, 0.0
      %v481 = vmax.f32 %v385, 0.0
      %v482 = vmax.f32 %v386, 0.0
      %v483 = vmax.f32 %v387, 0.0
      %v484 = vmax.f32 %v388, 0.0
      %v485 = vmax.f32 %v389, 0.0
      %v486 = vmax.f32 %v390, 0.0
      %v487 = vmax.f32 %v391, 0.0
      %v488 = vmax.f32 %v392, 0.0
      %v489 = vmax.f32 %v393, 0.0
      %v490 = vmax.f32 %v394, 0.0
      %v491 = vmax.f32 %v395, 0.0
      %v492 = vmax.f32 %v396, 0.0
      %v493 = vmax.f32 %v397, 0.0
      %v494 = vmax.f32 %v398, 0.0
      %v495 = vmax.f32 %v399, 0.0
      %v496 = vmax.f32 %v400, 0.0
      %v497 = vpack.c.bf16 %v402, %v401
      %v498 = vpack.c.bf16 %v404, %v403
      %v499 = vpack.c.bf16 %v406, %v405
      %v500 = vpack.c.bf16 %v408, %v407
      %v501 = vpack.c.bf16 %v410, %v409
      %v502 = vpack.c.bf16 %v412, %v411
      %v503 = vpack.c.bf16 %v414, %v413
      %v504 = vpack.c.bf16 %v416, %v415
      %v505 = vpack.c.bf16 %v418, %v417
      %v506 = vpack.c.bf16 %v420, %v419
      %v507 = vpack.c.bf16 %v422, %v421
      %v508 = vpack.c.bf16 %v424, %v423
      %v509 = vpack.c.bf16 %v426, %v425
      %v510 = vpack.c.bf16 %v428, %v427
      %v511 = vpack.c.bf16 %v430, %v429
      %v512 = vpack.c.bf16 %v432, %v431
      %v513 = vpack.c.bf16 %v434, %v433
      %v514 = vpack.c.bf16 %v436, %v435
      %v515 = vpack.c.bf16 %v438, %v437
      %v516 = vpack.c.bf16 %v440, %v439
      %v517 = vpack.c.bf16 %v442, %v441
      %v518 = vpack.c.bf16 %v444, %v443
      %v519 = vpack.c.bf16 %v446, %v445
      %v520 = vpack.c.bf16 %v448, %v447
      %v521 = vpack.c.bf16 %v450, %v449
      %v522 = vpack.c.bf16 %v452, %v451
      %v523 = vpack.c.bf16 %v454, %v453
      %v524 = vpack.c.bf16 %v456, %v455
      %v525 = vpack.c.bf16 %v458, %v457
      %v526 = vpack.c.bf16 %v460, %v459
      %v527 = vpack.c.bf16 %v462, %v461
      %v528 = vpack.c.bf16 %v464, %v463
      %v529 = vpack.c.bf16 %v466, %v465
      %v530 = vpack.c.bf16 %v468, %v467
      %v531 = vpack.c.bf16 %v470, %v469
      %v532 = vpack.c.bf16 %v472, %v471
      %v533 = vpack.c.bf16 %v474, %v473
      %v534 = vpack.c.bf16 %v476, %v475
      %v535 = vpack.c.bf16 %v478, %v477
      %v536 = vpack.c.bf16 %v480, %v479
      %v537 = vpack.c.bf16 %v482, %v481
      %v538 = vpack.c.bf16 %v484, %v483
      %v539 = vpack.c.bf16 %v486, %v485
      %v540 = vpack.c.bf16 %v488, %v487
      %v541 = vpack.c.bf16 %v490, %v489
      %v542 = vpack.c.bf16 %v492, %v491
      %v543 = vpack.c.bf16 %v494, %v493
      %v544 = vpack.c.bf16 %v496, %v495
      %v545 = vld [vmem:[%s2] sm:$0xf]
      %v546 = vld [vmem:[%s2 + $0x4] sm:$0xf]
      %v547 = vld [vmem:[%s2 + $0x8] sm:$0xf]
      %v548 = vld [vmem:[%s2 + $0xc] sm:$0xf]
      %v549 = vld [vmem:[%s2 + $0x10] sm:$0xf]
      %v550 = vld [vmem:[%s2 + $0x14] sm:$0xf]
      %v551 = vld [vmem:[%s2 + $0x18] sm:$0xf]
      %v552 = vld [vmem:[%s2 + $0x1c] sm:$0xf]
      %v553 = vld [vmem:[%s3] sm:$0x1]
      %v555 = vlaneseq
      %v556 = vshrl.u32 %v555, 7
      %v557 = vsub.s32 0, %v556
      %v558 = vrot.slane %v553, %v557
      %v568 = vunpack.c.l.b16 %v545
      %v569 = vunpack.c.l.b16 %v546
      %v570 = vunpack.c.l.b16 %v547
      %v571 = vunpack.c.l.b16 %v548
      %v572 = vunpack.c.l.b16 %v549
      %v573 = vunpack.c.l.b16 %v550
      %v574 = vunpack.c.l.b16 %v551
      %v575 = vunpack.c.l.b16 %v552
      %v576 = vpack.c.b16 %v569, %v568
      %v577 = vpack.c.b16 %v571, %v570
      %v578 = vpack.c.b16 %v573, %v572
      %v579 = vpack.c.b16 %v575, %v574
      %vm584 = vcmask 523264
      %v586 = vsel %vm584, %v497, 0
      %v589 = vsel %vm584, %v498, 0
      %v592 = vsel %vm584, %v499, 0
      %v595 = vsel %vm584, %v500, 0
      %v598 = vsel %vm584, %v501, 0
      %v601 = vsel %vm584, %v502, 0
      %v604 = vsel %vm584, %v503, 0
      %v607 = vsel %vm584, %v504, 0
      %v610 = vsel %vm584, %v505, 0
      %v613 = vsel %vm584, %v506, 0
      %v616 = vsel %vm584, %v507, 0
      %v619 = vsel %vm584, %v508, 0
      %v622 = vsel %vm584, %v509, 0
      %v625 = vsel %vm584, %v510, 0
      %v628 = vsel %vm584, %v511, 0
      %v631 = vsel %vm584, %v512, 0
      %v634 = vsel %vm584, %v513, 0
      %v637 = vsel %vm584, %v514, 0
      %v640 = vsel %vm584, %v515, 0
      %v643 = vsel %vm584, %v516, 0
      %v646 = vsel %vm584, %v517, 0
      %v649 = vsel %vm584, %v518, 0
      %v652 = vsel %vm584, %v519, 0
      %v655 = vsel %vm584, %v520, 0
      %v658 = vsel %vm584, %v521, 0
      %v661 = vsel %vm584, %v522, 0
      %v664 = vsel %vm584, %v523, 0
      %v667 = vsel %vm584, %v524, 0
      %v670 = vsel %vm584, %v525, 0
      %v673 = vsel %vm584, %v526, 0
      %v676 = vsel %vm584, %v527, 0
      %v679 = vsel %vm584, %v528, 0
      %v682 = vsel %vm584, %v529, 0
      %v685 = vsel %vm584, %v530, 0
      %v688 = vsel %vm584, %v531, 0
      %v691 = vsel %vm584, %v532, 0
      %v694 = vsel %vm584, %v533, 0
      %v697 = vsel %vm584, %v534, 0
      %v700 = vsel %vm584, %v535, 0
      %v703 = vsel %vm584, %v536, 0
      %v706 = vsel %vm584, %v537, 0
      %v709 = vsel %vm584, %v538, 0
      %v712 = vsel %vm584, %v539, 0
      %v715 = vsel %vm584, %v540, 0
      %v718 = vsel %vm584, %v541, 0
      %v721 = vsel %vm584, %v542, 0
      %v724 = vsel %vm584, %v543, 0
      %v727 = vsel %vm584, %v544, 0
      %729 = vmatprep.subr.bf16.mxu0 0
      %730 = vmatpush1.bf16.msra.mxu0 %v576
      %731 = vmatprep.subr.bf16.mxu0 0
      %732 = vmatpush1.bf16.msra.mxu0 %v577
      %733 = vmatprep.subr.bf16.mxu0 0
      %734 = vmatpush1.bf16.msra.mxu0 %v578
      %735 = vmatprep.subr.bf16.mxu0 0
      %736 = vmatpush1.bf16.msra.mxu0 %v579
      %737 = vmatprep.subr.bf16.mxu0 0
      %738 = vmatpush1.bf16.msra.mxu0 0
      %739 = vmatprep.subr.bf16.mxu0 0
      %740 = vmatpush1.bf16.msra.mxu0 0
      %741 = vmatprep.subr.bf16.mxu0 0
      %742 = vmatpush1.bf16.msra.mxu0 0
      %743 = vmatprep.subr.bf16.mxu0 0
      %744 = vmatpush1.bf16.msra.mxu0 0
      %745 = vmatprep.subr.bf16.mxu0 0
      %746 = vmatpush1.bf16.msra.mxu0 0
      %747 = vmatprep.subr.bf16.mxu0 0
      %748 = vmatpush1.bf16.msra.mxu0 0
      %749 = vmatprep.subr.bf16.mxu0 0
      %750 = vmatpush1.bf16.msra.mxu0 0
      %751 = vmatprep.subr.bf16.mxu0 0
      %752 = vmatpush1.bf16.msra.mxu0 0
      %753 = vmatprep.subr.bf16.mxu0 0
      %754 = vmatpush1.bf16.msra.mxu0 0
      %755 = vmatprep.subr.bf16.mxu0 0
      %756 = vmatpush1.bf16.msra.mxu0 0
      %757 = vmatprep.subr.bf16.mxu0 0
      %758 = vmatpush1.bf16.msra.mxu0 0
      %759 = vmatprep.subr.bf16.mxu0 0
      %760 = vmatpush1.bf16.msra.mxu0 0
      %761 = vmatprep.mubr.bf16.mxu0 0
      %762 = vmatmul.mubr.bf16.gmra.mrb[0].mxu0 %v586
      %v763 = vpop.f32.mrb[0].mxu0
      %v764 = vadd.f32 %v558, %v763
      %v765 = vpop.f32.mrb[0].mxu0
      %v766 = vpop.f32.mrb[0].mxu0
      %v767 = vadd.f32 %v558, %v766
      %v768 = vpop.f32.mrb[0].mxu0
      %769 = vmatprep.mubr.bf16.mxu0 0
      %770 = vmatmul.mubr.bf16.gmra.mrb[0].mxu0 %v589
      %v771 = vpop.f32.mrb[0].mxu0
      %v772 = vadd.f32 %v558, %v771
      %v773 = vpop.f32.mrb[0].mxu0
      %v774 = vpop.f32.mrb[0].mxu0
      %v775 = vadd.f32 %v558, %v774
      %v776 = vpop.f32.mrb[0].mxu0
      %777 = vmatprep.mubr.bf16.mxu0 0
      %778 = vmatmul.mubr.bf16.gmra.mrb[0].mxu0 %v592
      %v779 = vpop.f32.mrb[0].mxu0
      %v780 = vadd.f32 %v558, %v779
      %v781 = vpop.f32.mrb[0].mxu0
      %v782 = vpop.f32.mrb[0].mxu0
      %v783 = vadd.f32 %v558, %v782
      %v784 = vpop.f32.mrb[0].mxu0
      %785 = vmatprep.mubr.bf16.mxu0 0
      %786 = vmatmul.mubr.bf16.gmra.mrb[0].mxu0 %v595
      %v787 = vpop.f32.mrb[0].mxu0
      %v788 = vadd.f32 %v558, %v787
      %v789 = vpop.f32.mrb[0].mxu0
      %v790 = vpop.f32.mrb[0].mxu0
      %v791 = vadd.f32 %v558, %v790
      %v792 = vpop.f32.mrb[0].mxu0
      %793 = vmatprep.mubr.bf16.mxu0 0
      %794 = vmatmul.mubr.bf16.gmra.mrb[0].mxu0 %v598
      %v795 = vpop.f32.mrb[0].mxu0
      %v796 = vadd.f32 %v558, %v795
      %v797 = vpop.f32.mrb[0].mxu0
      %v798 = vpop.f32.mrb[0].mxu0
      %v799 = vadd.f32 %v558, %v798
      %v800 = vpop.f32.mrb[0].mxu0
      %801 = vmatprep.mubr.bf16.mxu0 0
      %802 = vmatmul.mubr.bf16.gmra.mrb[0].mxu0 %v601
      %v803 = vpop.f32.mrb[0].mxu0
      %v804 = vadd.f32 %v558, %v803
      %v805 = vpop.f32.mrb[0].mxu0
      %v806 = vpop.f32.mrb[0].mxu0
      %v807 = vadd.f32 %v558, %v806
      %v808 = vpop.f32.mrb[0].mxu0
      %809 = vmatprep.mubr.bf16.mxu0 0
      %810 = vmatmul.mubr.bf16.gmra.mrb[0].mxu0 %v604
      %v811 = vpop.f32.mrb[0].mxu0
      %v812 = vadd.f32 %v558, %v811
      %v813 = vpop.f32.mrb[0].mxu0
      %v814 = vpop.f32.mrb[0].mxu0
      %v815 = vadd.f32 %v558, %v814
      %v816 = vpop.f32.mrb[0].mxu0
      %817 = vmatprep.mubr.bf16.mxu0 0
      %818 = vmatmul.mubr.bf16.gmra.mrb[0].mxu0 %v607
      %v819 = vpop.f32.mrb[0].mxu0
      %v820 = vadd.f32 %v558, %v819
      %v821 = vpop.f32.mrb[0].mxu0
      %v822 = vpop.f32.mrb[0].mxu0
      %v823 = vadd.f32 %v558, %v822
      %v824 = vpop.f32.mrb[0].mxu0
      %825 = vmatprep.mubr.bf16.mxu0 0
      %826 = vmatmul.mubr.bf16.gmra.mrb[0].mxu0 %v610
      %v827 = vpop.f32.mrb[0].mxu0
      %v828 = vadd.f32 %v558, %v827
      %v829 = vpop.f32.mrb[0].mxu0
      %v830 = vpop.f32.mrb[0].mxu0
      %v831 = vadd.f32 %v558, %v830
      %v832 = vpop.f32.mrb[0].mxu0
      %833 = vmatprep.mubr.bf16.mxu0 0
      %834 = vmatmul.mubr.bf16.gmra.mrb[0].mxu0 %v613
      %v835 = vpop.f32.mrb[0].mxu0
      %v836 = vadd.f32 %v558, %v835
      %v837 = vpop.f32.mrb[0].mxu0
      %v838 = vpop.f32.mrb[0].mxu0
      %v839 = vadd.f32 %v558, %v838
      %v840 = vpop.f32.mrb[0].mxu0
      %841 = vmatprep.mubr.bf16.mxu0 0
      %842 = vmatmul.mubr.bf16.gmra.mrb[0].mxu0 %v616
      %v843 = vpop.f32.mrb[0].mxu0
      %v844 = vadd.f32 %v558, %v843
      %v845 = vpop.f32.mrb[0].mxu0
      %v846 = vpop.f32.mrb[0].mxu0
      %v847 = vadd.f32 %v558, %v846
      %v848 = vpop.f32.mrb[0].mxu0
      %849 = vmatprep.mubr.bf16.mxu0 0
      %850 = vmatmul.mubr.bf16.gmra.mrb[0].mxu0 %v619
      %v851 = vpop.f32.mrb[0].mxu0
      %v852 = vadd.f32 %v558, %v851
      %v853 = vpop.f32.mrb[0].mxu0
      %v854 = vpop.f32.mrb[0].mxu0
      %v855 = vadd.f32 %v558, %v854
      %v856 = vpop.f32.mrb[0].mxu0
      %857 = vmatprep.mubr.bf16.mxu0 0
      %858 = vmatmul.mubr.bf16.gmra.mrb[0].mxu0 %v622
      %v859 = vpop.f32.mrb[0].mxu0
      %v860 = vadd.f32 %v558, %v859
      %v861 = vpop.f32.mrb[0].mxu0
      %v862 = vpop.f32.mrb[0].mxu0
      %v863 = vadd.f32 %v558, %v862
      %v864 = vpop.f32.mrb[0].mxu0
      %865 = vmatprep.mubr.bf16.mxu0 0
      %866 = vmatmul.mubr.bf16.gmra.mrb[0].mxu0 %v625
      %v867 = vpop.f32.mrb[0].mxu0
      %v868 = vadd.f32 %v558, %v867
      %v869 = vpop.f32.mrb[0].mxu0
      %v870 = vpop.f32.mrb[0].mxu0
      %v871 = vadd.f32 %v558, %v870
      %v872 = vpop.f32.mrb[0].mxu0
      %873 = vmatprep.mubr.bf16.mxu0 0
      %874 = vmatmul.mubr.bf16.gmra.mrb[0].mxu0 %v628
      %v875 = vpop.f32.mrb[0].mxu0
      %v876 = vadd.f32 %v558, %v875
      %v877 = vpop.f32.mrb[0].mxu0
      %v878 = vpop.f32.mrb[0].mxu0
      %v879 = vadd.f32 %v558, %v878
      %v880 = vpop.f32.mrb[0].mxu0
      %881 = vmatprep.mubr.bf16.mxu0 0
      %882 = vmatmul.mubr.bf16.gmra.mrb[0].mxu0 %v631
      %v883 = vpop.f32.mrb[0].mxu0
      %v884 = vadd.f32 %v558, %v883
      %v885 = vpop.f32.mrb[0].mxu0
      %v886 = vpop.f32.mrb[0].mxu0
      %v887 = vadd.f32 %v558, %v886
      %v888 = vpop.f32.mrb[0].mxu0
      %889 = vmatprep.mubr.bf16.mxu0 0
      %890 = vmatmul.mubr.bf16.gmra.mrb[0].mxu0 %v634
      %v891 = vpop.f32.mrb[0].mxu0
      %v892 = vadd.f32 %v558, %v891
      %v893 = vpop.f32.mrb[0].mxu0
      %v894 = vpop.f32.mrb[0].mxu0
      %v895 = vadd.f32 %v558, %v894
      %v896 = vpop.f32.mrb[0].mxu0
      %897 = vmatprep.mubr.bf16.mxu0 0
      %898 = vmatmul.mubr.bf16.gmra.mrb[0].mxu0 %v637
      %v899 = vpop.f32.mrb[0].mxu0
      %v900 = vadd.f32 %v558, %v899
      %v901 = vpop.f32.mrb[0].mxu0
      %v902 = vpop.f32.mrb[0].mxu0
      %v903 = vadd.f32 %v558, %v902
      %v904 = vpop.f32.mrb[0].mxu0
      %905 = vmatprep.mubr.bf16.mxu0 0
      %906 = vmatmul.mubr.bf16.gmra.mrb[0].mxu0 %v640
      %v907 = vpop.f32.mrb[0].mxu0
      %v908 = vadd.f32 %v558, %v907
      %v909 = vpop.f32.mrb[0].mxu0
      %v910 = vpop.f32.mrb[0].mxu0
      %v911 = vadd.f32 %v558, %v910
      %v912 = vpop.f32.mrb[0].mxu0
      %913 = vmatprep.mubr.bf16.mxu0 0
      %914 = vmatmul.mubr.bf16.gmra.mrb[0].mxu0 %v643
      %v915 = vpop.f32.mrb[0].mxu0
      %v916 = vadd.f32 %v558, %v915
      %v917 = vpop.f32.mrb[0].mxu0
      %v918 = vpop.f32.mrb[0].mxu0
      %v919 = vadd.f32 %v558, %v918
      %v920 = vpop.f32.mrb[0].mxu0
      %921 = vmatprep.mubr.bf16.mxu0 0
      %922 = vmatmul.mubr.bf16.gmra.mrb[0].mxu0 %v646
      %v923 = vpop.f32.mrb[0].mxu0
      %v924 = vadd.f32 %v558, %v923
      %v925 = vpop.f32.mrb[0].mxu0
      %v926 = vpop.f32.mrb[0].mxu0
      %v927 = vadd.f32 %v558, %v926
      %v928 = vpop.f32.mrb[0].mxu0
      %929 = vmatprep.mubr.bf16.mxu0 0
      %930 = vmatmul.mubr.bf16.gmra.mrb[0].mxu0 %v649
      %v931 = vpop.f32.mrb[0].mxu0
      %v932 = vadd.f32 %v558, %v931
      %v933 = vpop.f32.mrb[0].mxu0
      %v934 = vpop.f32.mrb[0].mxu0
      %v935 = vadd.f32 %v558, %v934
      %v936 = vpop.f32.mrb[0].mxu0
      %937 = vmatprep.mubr.bf16.mxu0 0
      %938 = vmatmul.mubr.bf16.gmra.mrb[0].mxu0 %v652
      %v939 = vpop.f32.mrb[0].mxu0
      %v940 = vadd.f32 %v558, %v939
      %v941 = vpop.f32.mrb[0].mxu0
      %v942 = vpop.f32.mrb[0].mxu0
      %v943 = vadd.f32 %v558, %v942
      %v944 = vpop.f32.mrb[0].mxu0
      %945 = vmatprep.mubr.bf16.mxu0 0
      %946 = vmatmul.mubr.bf16.gmra.mrb[0].mxu0 %v655
      %v947 = vpop.f32.mrb[0].mxu0
      %v948 = vadd.f32 %v558, %v947
      %v949 = vpop.f32.mrb[0].mxu0
      %v950 = vpop.f32.mrb[0].mxu0
      %v951 = vadd.f32 %v558, %v950
      %v952 = vpop.f32.mrb[0].mxu0
      %953 = vmatprep.mubr.bf16.mxu0 0
      %954 = vmatmul.mubr.bf16.gmra.mrb[0].mxu0 %v658
      %v955 = vpop.f32.mrb[0].mxu0
      %v956 = vadd.f32 %v558, %v955
      %v957 = vpop.f32.mrb[0].mxu0
      %v958 = vpop.f32.mrb[0].mxu0
      %v959 = vadd.f32 %v558, %v958
      %v960 = vpop.f32.mrb[0].mxu0
      %961 = vmatprep.mubr.bf16.mxu0 0
      %962 = vmatmul.mubr.bf16.gmra.mrb[0].mxu0 %v661
      %v963 = vpop.f32.mrb[0].mxu0
      %v964 = vadd.f32 %v558, %v963
      %v965 = vpop.f32.mrb[0].mxu0
      %v966 = vpop.f32.mrb[0].mxu0
      %v967 = vadd.f32 %v558, %v966
      %v968 = vpop.f32.mrb[0].mxu0
      %969 = vmatprep.mubr.bf16.mxu0 0
      %970 = vmatmul.mubr.bf16.gmra.mrb[0].mxu0 %v664
      %v971 = vpop.f32.mrb[0].mxu0
      %v972 = vadd.f32 %v558, %v971
      %v973 = vpop.f32.mrb[0].mxu0
      %v974 = vpop.f32.mrb[0].mxu0
      %v975 = vadd.f32 %v558, %v974
      %v976 = vpop.f32.mrb[0].mxu0
      %977 = vmatprep.mubr.bf16.mxu0 0
      %978 = vmatmul.mubr.bf16.gmra.mrb[0].mxu0 %v667
      %v979 = vpop.f32.mrb[0].mxu0
      %v980 = vadd.f32 %v558, %v979
      %v981 = vpop.f32.mrb[0].mxu0
      %v982 = vpop.f32.mrb[0].mxu0
      %v983 = vadd.f32 %v558, %v982
      %v984 = vpop.f32.mrb[0].mxu0
      %985 = vmatprep.mubr.bf16.mxu0 0
      %986 = vmatmul.mubr.bf16.gmra.mrb[0].mxu0 %v670
      %v987 = vpop.f32.mrb[0].mxu0
      %v988 = vadd.f32 %v558, %v987
      %v989 = vpop.f32.mrb[0].mxu0
      %v990 = vpop.f32.mrb[0].mxu0
      %v991 = vadd.f32 %v558, %v990
      %v992 = vpop.f32.mrb[0].mxu0
      %993 = vmatprep.mubr.bf16.mxu0 0
      %994 = vmatmul.mubr.bf16.gmra.mrb[0].mxu0 %v673
      %v995 = vpop.f32.mrb[0].mxu0
      %v996 = vadd.f32 %v558, %v995
      %v997 = vpop.f32.mrb[0].mxu0
      %v998 = vpop.f32.mrb[0].mxu0
      %v999 = vadd.f32 %v558, %v998
      %v1000 = vpop.f32.mrb[0].mxu0
      %1001 = vmatprep.mubr.bf16.mxu0 0
      %1002 = vmatmul.mubr.bf16.gmra.mrb[0].mxu0 %v676
      %v1003 = vpop.f32.mrb[0].mxu0
      %v1004 = vadd.f32 %v558, %v1003
      %v1005 = vpop.f32.mrb[0].mxu0
      %v1006 = vpop.f32.mrb[0].mxu0
      %v1007 = vadd.f32 %v558, %v1006
      %v1008 = vpop.f32.mrb[0].mxu0
      %1009 = vmatprep.mubr.bf16.mxu0 0
      %1010 = vmatmul.mubr.bf16.gmra.mrb[0].mxu0 %v679
      %v1011 = vpop.f32.mrb[0].mxu0
      %v1012 = vadd.f32 %v558, %v1011
      %v1013 = vpop.f32.mrb[0].mxu0
      %v1014 = vpop.f32.mrb[0].mxu0
      %v1015 = vadd.f32 %v558, %v1014
      %v1016 = vpop.f32.mrb[0].mxu0
      %1017 = vmatprep.mubr.bf16.mxu0 0
      %1018 = vmatmul.mubr.bf16.gmra.mrb[0].mxu0 %v682
      %v1019 = vpop.f32.mrb[0].mxu0
      %v1020 = vadd.f32 %v558, %v1019
      %v1021 = vpop.f32.mrb[0].mxu0
      %v1022 = vpop.f32.mrb[0].mxu0
      %v1023 = vadd.f32 %v558, %v1022
      %v1024 = vpop.f32.mrb[0].mxu0
      %1025 = vmatprep.mubr.bf16.mxu0 0
      %1026 = vmatmul.mubr.bf16.gmra.mrb[0].mxu0 %v685
      %v1027 = vpop.f32.mrb[0].mxu0
      %v1028 = vadd.f32 %v558, %v1027
      %v1029 = vpop.f32.mrb[0].mxu0
      %v1030 = vpop.f32.mrb[0].mxu0
      %v1031 = vadd.f32 %v558, %v1030
      %v1032 = vpop.f32.mrb[0].mxu0
      %1033 = vmatprep.mubr.bf16.mxu0 0
      %1034 = vmatmul.mubr.bf16.gmra.mrb[0].mxu0 %v688
      %v1035 = vpop.f32.mrb[0].mxu0
      %v1036 = vadd.f32 %v558, %v1035
      %v1037 = vpop.f32.mrb[0].mxu0
      %v1038 = vpop.f32.mrb[0].mxu0
      %v1039 = vadd.f32 %v558, %v1038
      %v1040 = vpop.f32.mrb[0].mxu0
      %1041 = vmatprep.mubr.bf16.mxu0 0
      %1042 = vmatmul.mubr.bf16.gmra.mrb[0].mxu0 %v691
      %v1043 = vpop.f32.mrb[0].mxu0
      %v1044 = vadd.f32 %v558, %v1043
      %v1045 = vpop.f32.mrb[0].mxu0
      %v1046 = vpop.f32.mrb[0].mxu0
      %v1047 = vadd.f32 %v558, %v1046
      %v1048 = vpop.f32.mrb[0].mxu0
      %1049 = vmatprep.mubr.bf16.mxu0 0
      %1050 = vmatmul.mubr.bf16.gmra.mrb[0].mxu0 %v694
      %v1051 = vpop.f32.mrb[0].mxu0
      %v1052 = vadd.f32 %v558, %v1051
      %v1053 = vpop.f32.mrb[0].mxu0
      %v1054 = vpop.f32.mrb[0].mxu0
      %v1055 = vadd.f32 %v558, %v1054
      %v1056 = vpop.f32.mrb[0].mxu0
      %1057 = vmatprep.mubr.bf16.mxu0 0
      %1058 = vmatmul.mubr.bf16.gmra.mrb[0].mxu0 %v697
      %v1059 = vpop.f32.mrb[0].mxu0
      %v1060 = vadd.f32 %v558, %v1059
      %v1061 = vpop.f32.mrb[0].mxu0
      %v1062 = vpop.f32.mrb[0].mxu0
      %v1063 = vadd.f32 %v558, %v1062
      %v1064 = vpop.f32.mrb[0].mxu0
      %1065 = vmatprep.mubr.bf16.mxu0 0
      %1066 = vmatmul.mubr.bf16.gmra.mrb[0].mxu0 %v700
      %v1067 = vpop.f32.mrb[0].mxu0
      %v1068 = vadd.f32 %v558, %v1067
      %v1069 = vpop.f32.mrb[0].mxu0
      %v1070 = vpop.f32.mrb[0].mxu0
      %v1071 = vadd.f32 %v558, %v1070
      %v1072 = vpop.f32.mrb[0].mxu0
      %1073 = vmatprep.mubr.bf16.mxu0 0
      %1074 = vmatmul.mubr.bf16.gmra.mrb[0].mxu0 %v703
      %v1075 = vpop.f32.mrb[0].mxu0
      %v1076 = vadd.f32 %v558, %v1075
      %v1077 = vpop.f32.mrb[0].mxu0
      %v1078 = vpop.f32.mrb[0].mxu0
      %v1079 = vadd.f32 %v558, %v1078
      %v1080 = vpop.f32.mrb[0].mxu0
      %1081 = vmatprep.mubr.bf16.mxu0 0
      %1082 = vmatmul.mubr.bf16.gmra.mrb[0].mxu0 %v706
      %v1083 = vpop.f32.mrb[0].mxu0
      %v1084 = vadd.f32 %v558, %v1083
      %v1085 = vpop.f32.mrb[0].mxu0
      %v1086 = vpop.f32.mrb[0].mxu0
      %v1087 = vadd.f32 %v558, %v1086
      %v1088 = vpop.f32.mrb[0].mxu0
      %1089 = vmatprep.mubr.bf16.mxu0 0
      %1090 = vmatmul.mubr.bf16.gmra.mrb[0].mxu0 %v709
      %v1091 = vpop.f32.mrb[0].mxu0
      %v1092 = vadd.f32 %v558, %v1091
      %v1093 = vpop.f32.mrb[0].mxu0
      %v1094 = vpop.f32.mrb[0].mxu0
      %v1095 = vadd.f32 %v558, %v1094
      %v1096 = vpop.f32.mrb[0].mxu0
      %1097 = vmatprep.mubr.bf16.mxu0 0
      %1098 = vmatmul.mubr.bf16.gmra.mrb[0].mxu0 %v712
      %v1099 = vpop.f32.mrb[0].mxu0
      %v1100 = vadd.f32 %v558, %v1099
      %v1101 = vpop.f32.mrb[0].mxu0
      %v1102 = vpop.f32.mrb[0].mxu0
      %v1103 = vadd.f32 %v558, %v1102
      %v1104 = vpop.f32.mrb[0].mxu0
      %1105 = vmatprep.mubr.bf16.mxu0 0
      %1106 = vmatmul.mubr.bf16.gmra.mrb[0].mxu0 %v715
      %v1107 = vpop.f32.mrb[0].mxu0
      %v1108 = vadd.f32 %v558, %v1107
      %v1109 = vpop.f32.mrb[0].mxu0
      %v1110 = vpop.f32.mrb[0].mxu0
      %v1111 = vadd.f32 %v558, %v1110
      %v1112 = vpop.f32.mrb[0].mxu0
      %1113 = vmatprep.mubr.bf16.mxu0 0
      %1114 = vmatmul.mubr.bf16.gmra.mrb[0].mxu0 %v718
      %v1115 = vpop.f32.mrb[0].mxu0
      %v1116 = vadd.f32 %v558, %v1115
      %v1117 = vpop.f32.mrb[0].mxu0
      %v1118 = vpop.f32.mrb[0].mxu0
      %v1119 = vadd.f32 %v558, %v1118
      %v1120 = vpop.f32.mrb[0].mxu0
      %1121 = vmatprep.mubr.bf16.mxu0 0
      %1122 = vmatmul.mubr.bf16.gmra.mrb[0].mxu0 %v721
      %v1123 = vpop.f32.mrb[0].mxu0
      %v1124 = vadd.f32 %v558, %v1123
      %v1125 = vpop.f32.mrb[0].mxu0
      %v1126 = vpop.f32.mrb[0].mxu0
      %v1127 = vadd.f32 %v558, %v1126
      %v1128 = vpop.f32.mrb[0].mxu0
      %1129 = vmatprep.mubr.bf16.mxu0 0
      %1130 = vmatmul.mubr.bf16.gmra.mrb[0].mxu0 %v724
      %v1131 = vpop.f32.mrb[0].mxu0
      %v1132 = vadd.f32 %v558, %v1131
      %v1133 = vpop.f32.mrb[0].mxu0
      %v1134 = vpop.f32.mrb[0].mxu0
      %v1135 = vadd.f32 %v558, %v1134
      %v1136 = vpop.f32.mrb[0].mxu0
      %1137 = vmatprep.mubr.bf16.mxu0 0
      %1138 = vmatmul.mubr.bf16.gmra.mrb[0].mxu0 %v727
      %v1139 = vpop.f32.mrb[0].mxu0
      %v1140 = vadd.f32 %v558, %v1139
      %v1141 = vpop.f32.mrb[0].mxu0
      %v1142 = vpop.f32.mrb[0].mxu0
      %v1143 = vadd.f32 %v558, %v1142
      %v1144 = vpop.f32.mrb[0].mxu0
      %1145 = vdwg.mxu0
      %v1146 = vpack.c.bf16 %v767, %v764
      %v1147 = vpack.c.bf16 %v775, %v772
      %v1148 = vpack.c.bf16 %v783, %v780
      %v1149 = vpack.c.bf16 %v791, %v788
      %v1150 = vpack.c.bf16 %v799, %v796
      %v1151 = vpack.c.bf16 %v807, %v804
      %v1152 = vpack.c.bf16 %v815, %v812
      %v1153 = vpack.c.bf16 %v823, %v820
      %v1154 = vpack.c.bf16 %v831, %v828
      %v1155 = vpack.c.bf16 %v839, %v836
      %v1156 = vpack.c.bf16 %v847, %v844
      %v1157 = vpack.c.bf16 %v855, %v852
      %v1158 = vpack.c.bf16 %v863, %v860
      %v1159 = vpack.c.bf16 %v871, %v868
      %v1160 = vpack.c.bf16 %v879, %v876
      %v1161 = vpack.c.bf16 %v887, %v884
      %v1162 = vpack.c.bf16 %v895, %v892
      %v1163 = vpack.c.bf16 %v903, %v900
      %v1164 = vpack.c.bf16 %v911, %v908
      %v1165 = vpack.c.bf16 %v919, %v916
      %v1166 = vpack.c.bf16 %v927, %v924
      %v1167 = vpack.c.bf16 %v935, %v932
      %v1168 = vpack.c.bf16 %v943, %v940
      %v1169 = vpack.c.bf16 %v951, %v948
      %v1170 = vpack.c.bf16 %v959, %v956
      %v1171 = vpack.c.bf16 %v967, %v964
      %v1172 = vpack.c.bf16 %v975, %v972
      %v1173 = vpack.c.bf16 %v983, %v980
      %v1174 = vpack.c.bf16 %v991, %v988
      %v1175 = vpack.c.bf16 %v999, %v996
      %v1176 = vpack.c.bf16 %v1007, %v1004
      %v1177 = vpack.c.bf16 %v1015, %v1012
      %v1178 = vpack.c.bf16 %v1023, %v1020
      %v1179 = vpack.c.bf16 %v1031, %v1028
      %v1180 = vpack.c.bf16 %v1039, %v1036
      %v1181 = vpack.c.bf16 %v1047, %v1044
      %v1182 = vpack.c.bf16 %v1055, %v1052
      %v1183 = vpack.c.bf16 %v1063, %v1060
      %v1184 = vpack.c.bf16 %v1071, %v1068
      %v1185 = vpack.c.bf16 %v1079, %v1076
      %v1186 = vpack.c.bf16 %v1087, %v1084
      %v1187 = vpack.c.bf16 %v1095, %v1092
      %v1188 = vpack.c.bf16 %v1103, %v1100
      %v1189 = vpack.c.bf16 %v1111, %v1108
      %v1190 = vpack.c.bf16 %v1119, %v1116
      %v1191 = vpack.c.bf16 %v1127, %v1124
      %v1192 = vpack.c.bf16 %v1135, %v1132
      %v1193 = vpack.c.bf16 %v1143, %v1140
      %v1242 = vunpack.c.l.b16 %v1146
      %v1243 = vunpack.c.h.b16 %v1146
      %v1244 = vunpack.c.l.b16 %v1147
      %v1245 = vunpack.c.h.b16 %v1147
      %v1246 = vunpack.c.l.b16 %v1148
      %v1247 = vunpack.c.h.b16 %v1148
      %v1248 = vunpack.c.l.b16 %v1149
      %v1249 = vunpack.c.h.b16 %v1149
      %v1250 = vunpack.c.l.b16 %v1150
      %v1251 = vunpack.c.h.b16 %v1150
      %v1252 = vunpack.c.l.b16 %v1151
      %v1253 = vunpack.c.h.b16 %v1151
      %v1254 = vunpack.c.l.b16 %v1152
      %v1255 = vunpack.c.h.b16 %v1152
      %v1256 = vunpack.c.l.b16 %v1153
      %v1257 = vunpack.c.h.b16 %v1153
      %v1258 = vunpack.c.l.b16 %v1154
      %v1259 = vunpack.c.h.b16 %v1154
      %v1260 = vunpack.c.l.b16 %v1155
      %v1261 = vunpack.c.h.b16 %v1155
      %v1262 = vunpack.c.l.b16 %v1156
      %v1263 = vunpack.c.h.b16 %v1156
      %v1264 = vunpack.c.l.b16 %v1157
      %v1265 = vunpack.c.h.b16 %v1157
      %v1266 = vunpack.c.l.b16 %v1158
      %v1267 = vunpack.c.h.b16 %v1158
      %v1268 = vunpack.c.l.b16 %v1159
      %v1269 = vunpack.c.h.b16 %v1159
      %v1270 = vunpack.c.l.b16 %v1160
      %v1271 = vunpack.c.h.b16 %v1160
      %v1272 = vunpack.c.l.b16 %v1161
      %v1273 = vunpack.c.h.b16 %v1161
      %v1274 = vunpack.c.l.b16 %v1162
      %v1275 = vunpack.c.h.b16 %v1162
      %v1276 = vunpack.c.l.b16 %v1163
      %v1277 = vunpack.c.h.b16 %v1163
      %v1278 = vunpack.c.l.b16 %v1164
      %v1279 = vunpack.c.h.b16 %v1164
      %v1280 = vunpack.c.l.b16 %v1165
      %v1281 = vunpack.c.h.b16 %v1165
      %v1282 = vunpack.c.l.b16 %v1166
      %v1283 = vunpack.c.h.b16 %v1166
      %v1284 = vunpack.c.l.b16 %v1167
      %v1285 = vunpack.c.h.b16 %v1167
      %v1286 = vunpack.c.l.b16 %v1168
      %v1287 = vunpack.c.h.b16 %v1168
      %v1288 = vunpack.c.l.b16 %v1169
      %v1289 = vunpack.c.h.b16 %v1169
      %v1290 = vunpack.c.l.b16 %v1170
      %v1291 = vunpack.c.h.b16 %v1170
      %v1292 = vunpack.c.l.b16 %v1171
      %v1293 = vunpack.c.h.b16 %v1171
      %v1294 = vunpack.c.l.b16 %v1172
      %v1295 = vunpack.c.h.b16 %v1172
      %v1296 = vunpack.c.l.b16 %v1173
      %v1297 = vunpack.c.h.b16 %v1173
      %v1298 = vunpack.c.l.b16 %v1174
      %v1299 = vunpack.c.h.b16 %v1174
      %v1300 = vunpack.c.l.b16 %v1175
      %v1301 = vunpack.c.h.b16 %v1175
      %v1302 = vunpack.c.l.b16 %v1176
      %v1303 = vunpack.c.h.b16 %v1176
      %v1304 = vunpack.c.l.b16 %v1177
      %v1305 = vunpack.c.h.b16 %v1177
      %v1306 = vunpack.c.l.b16 %v1178
      %v1307 = vunpack.c.h.b16 %v1178
      %v1308 = vunpack.c.l.b16 %v1179
      %v1309 = vunpack.c.h.b16 %v1179
      %v1310 = vunpack.c.l.b16 %v1180
      %v1311 = vunpack.c.h.b16 %v1180
      %v1312 = vunpack.c.l.b16 %v1181
      %v1313 = vunpack.c.h.b16 %v1181
      %v1314 = vunpack.c.l.b16 %v1182
      %v1315 = vunpack.c.h.b16 %v1182
      %v1316 = vunpack.c.l.b16 %v1183
      %v1317 = vunpack.c.h.b16 %v1183
      %v1318 = vunpack.c.l.b16 %v1184
      %v1319 = vunpack.c.h.b16 %v1184
      %v1320 = vunpack.c.l.b16 %v1185
      %v1321 = vunpack.c.h.b16 %v1185
      %v1322 = vunpack.c.l.b16 %v1186
      %v1323 = vunpack.c.h.b16 %v1186
      %v1324 = vunpack.c.l.b16 %v1187
      %v1325 = vunpack.c.h.b16 %v1187
      %v1326 = vunpack.c.l.b16 %v1188
      %v1327 = vunpack.c.h.b16 %v1188
      %v1328 = vunpack.c.l.b16 %v1189
      %v1329 = vunpack.c.h.b16 %v1189
      %v1330 = vunpack.c.l.b16 %v1190
      %v1331 = vunpack.c.h.b16 %v1190
      %v1332 = vunpack.c.l.b16 %v1191
      %v1333 = vunpack.c.h.b16 %v1191
      %v1334 = vunpack.c.l.b16 %v1192
      %v1335 = vunpack.c.h.b16 %v1192
      %v1336 = vunpack.c.l.b16 %v1193
      %v1337 = vunpack.c.h.b16 %v1193
      %v1338 = vpack.c.b16 %v1242, %v1242
      %v1339 = vpack.c.b16 %v1243, %v1243
      %v1340 = vpack.c.b16 %v1244, %v1244
      %v1341 = vpack.c.b16 %v1245, %v1245
      %v1342 = vpack.c.b16 %v1246, %v1246
      %v1343 = vpack.c.b16 %v1247, %v1247
      %v1344 = vpack.c.b16 %v1248, %v1248
      %v1345 = vpack.c.b16 %v1249, %v1249
      %v1346 = vpack.c.b16 %v1250, %v1250
      %v1347 = vpack.c.b16 %v1251, %v1251
      %v1348 = vpack.c.b16 %v1252, %v1252
      %v1349 = vpack.c.b16 %v1253, %v1253
      %v1350 = vpack.c.b16 %v1254, %v1254
      %v1351 = vpack.c.b16 %v1255, %v1255
      %v1352 = vpack.c.b16 %v1256, %v1256
      %v1353 = vpack.c.b16 %v1257, %v1257
      %v1354 = vpack.c.b16 %v1258, %v1258
      %v1355 = vpack.c.b16 %v1259, %v1259
      %v1356 = vpack.c.b16 %v1260, %v1260
      %v1357 = vpack.c.b16 %v1261, %v1261
      %v1358 = vpack.c.b16 %v1262, %v1262
      %v1359 = vpack.c.b16 %v1263, %v1263
      %v1360 = vpack.c.b16 %v1264, %v1264
      %v1361 = vpack.c.b16 %v1265, %v1265
      %v1362 = vpack.c.b16 %v1266, %v1266
      %v1363 = vpack.c.b16 %v1267, %v1267
      %v1364 = vpack.c.b16 %v1268, %v1268
      %v1365 = vpack.c.b16 %v1269, %v1269
      %v1366 = vpack.c.b16 %v1270, %v1270
      %v1367 = vpack.c.b16 %v1271, %v1271
      %v1368 = vpack.c.b16 %v1272, %v1272
      %v1369 = vpack.c.b16 %v1273, %v1273
      %v1370 = vpack.c.b16 %v1274, %v1274
      %v1371 = vpack.c.b16 %v1275, %v1275
      %v1372 = vpack.c.b16 %v1276, %v1276
      %v1373 = vpack.c.b16 %v1277, %v1277
      %v1374 = vpack.c.b16 %v1278, %v1278
      %v1375 = vpack.c.b16 %v1279, %v1279
      %v1376 = vpack.c.b16 %v1280, %v1280
      %v1377 = vpack.c.b16 %v1281, %v1281
      %v1378 = vpack.c.b16 %v1282, %v1282
      %v1379 = vpack.c.b16 %v1283, %v1283
      %v1380 = vpack.c.b16 %v1284, %v1284
      %v1381 = vpack.c.b16 %v1285, %v1285
      %v1382 = vpack.c.b16 %v1286, %v1286
      %v1383 = vpack.c.b16 %v1287, %v1287
      %v1384 = vpack.c.b16 %v1288, %v1288
      %v1385 = vpack.c.b16 %v1289, %v1289
      %v1386 = vpack.c.b16 %v1290, %v1290
      %v1387 = vpack.c.b16 %v1291, %v1291
      %v1388 = vpack.c.b16 %v1292, %v1292
      %v1389 = vpack.c.b16 %v1293, %v1293
      %v1390 = vpack.c.b16 %v1294, %v1294
      %v1391 = vpack.c.b16 %v1295, %v1295
      %v1392 = vpack.c.b16 %v1296, %v1296
      %v1393 = vpack.c.b16 %v1297, %v1297
      %v1394 = vpack.c.b16 %v1298, %v1298
      %v1395 = vpack.c.b16 %v1299, %v1299
      %v1396 = vpack.c.b16 %v1300, %v1300
      %v1397 = vpack.c.b16 %v1301, %v1301
      %v1398 = vpack.c.b16 %v1302, %v1302
      %v1399 = vpack.c.b16 %v1303, %v1303
      %v1400 = vpack.c.b16 %v1304, %v1304
      %v1401 = vpack.c.b16 %v1305, %v1305
      %v1402 = vpack.c.b16 %v1306, %v1306
      %v1403 = vpack.c.b16 %v1307, %v1307
      %v1404 = vpack.c.b16 %v1308, %v1308
      %v1405 = vpack.c.b16 %v1309, %v1309
      %v1406 = vpack.c.b16 %v1310, %v1310
      %v1407 = vpack.c.b16 %v1311, %v1311
      %v1408 = vpack.c.b16 %v1312, %v1312
      %v1409 = vpack.c.b16 %v1313, %v1313
      %v1410 = vpack.c.b16 %v1314, %v1314
      %v1411 = vpack.c.b16 %v1315, %v1315
      %v1412 = vpack.c.b16 %v1316, %v1316
      %v1413 = vpack.c.b16 %v1317, %v1317
      %v1414 = vpack.c.b16 %v1318, %v1318
      %v1415 = vpack.c.b16 %v1319, %v1319
      %v1416 = vpack.c.b16 %v1320, %v1320
      %v1417 = vpack.c.b16 %v1321, %v1321
      %v1418 = vpack.c.b16 %v1322, %v1322
      %v1419 = vpack.c.b16 %v1323, %v1323
      %v1420 = vpack.c.b16 %v1324, %v1324
      %v1421 = vpack.c.b16 %v1325, %v1325
      %v1422 = vpack.c.b16 %v1326, %v1326
      %v1423 = vpack.c.b16 %v1327, %v1327
      %v1424 = vpack.c.b16 %v1328, %v1328
      %v1425 = vpack.c.b16 %v1329, %v1329
      %v1426 = vpack.c.b16 %v1330, %v1330
      %v1427 = vpack.c.b16 %v1331, %v1331
      %v1428 = vpack.c.b16 %v1332, %v1332
      %v1429 = vpack.c.b16 %v1333, %v1333
      %v1430 = vpack.c.b16 %v1334, %v1334
      %v1431 = vpack.c.b16 %v1335, %v1335
      %v1432 = vpack.c.b16 %v1336, %v1336
      %v1433 = vpack.c.b16 %v1337, %v1337
      %1530 = vst [vmem:[%s199] sm:$0xf] %v1338
      %1531 = vst [vmem:[%s199 + $0x4] sm:$0xf] %v1339
      %1532 = vst [vmem:[%s199 + $0x8] sm:$0xf] %v1340
      %1533 = vst [vmem:[%s199 + $0xc] sm:$0xf] %v1341
      %1534 = vst [vmem:[%s199 + $0x10] sm:$0xf] %v1342
      %1535 = vst [vmem:[%s199 + $0x14] sm:$0xf] %v1343
      %1536 = vst [vmem:[%s199 + $0x18] sm:$0xf] %v1344
      %1537 = vst [vmem:[%s199 + $0x1c] sm:$0xf] %v1345
      %1538 = vst [vmem:[%s199 + $0x20] sm:$0xf] %v1346
      %1539 = vst [vmem:[%s199 + $0x24] sm:$0xf] %v1347
      %1540 = vst [vmem:[%s199 + $0x28] sm:$0xf] %v1348
      %1541 = vst [vmem:[%s199 + $0x2c] sm:$0xf] %v1349
      %1542 = vst [vmem:[%s199 + $0x30] sm:$0xf] %v1350
      %1543 = vst [vmem:[%s199 + $0x34] sm:$0xf] %v1351
      %1544 = vst [vmem:[%s199 + $0x38] sm:$0xf] %v1352
      %1545 = vst [vmem:[%s199 + $0x3c] sm:$0xf] %v1353
      %1546 = vst [vmem:[%s199 + $0x40] sm:$0xf] %v1354
      %1547 = vst [vmem:[%s199 + $0x44] sm:$0xf] %v1355
      %1548 = vst [vmem:[%s199 + $0x48] sm:$0xf] %v1356
      %1549 = vst [vmem:[%s199 + $0x4c] sm:$0xf] %v1357
      %1550 = vst [vmem:[%s199 + $0x50] sm:$0xf] %v1358
      %1551 = vst [vmem:[%s199 + $0x54] sm:$0xf] %v1359
      %1552 = vst [vmem:[%s199 + $0x58] sm:$0xf] %v1360
      %1553 = vst [vmem:[%s199 + $0x5c] sm:$0xf] %v1361
      %1554 = vst [vmem:[%s199 + $0x60] sm:$0xf] %v1362
      %1555 = vst [vmem:[%s199 + $0x64] sm:$0xf] %v1363
      %1556 = vst [vmem:[%s199 + $0x68] sm:$0xf] %v1364
      %1557 = vst [vmem:[%s199 + $0x6c] sm:$0xf] %v1365
      %1558 = vst [vmem:[%s199 + $0x70] sm:$0xf] %v1366
      %1559 = vst [vmem:[%s199 + $0x74] sm:$0xf] %v1367
      %1560 = vst [vmem:[%s199 + $0x78] sm:$0xf] %v1368
      %1561 = vst [vmem:[%s199 + $0x7c] sm:$0xf] %v1369
      %1562 = vst [vmem:[%s199 + $0x80] sm:$0xf] %v1370
      %1563 = vst [vmem:[%s199 + $0x84] sm:$0xf] %v1371
      %1564 = vst [vmem:[%s199 + $0x88] sm:$0xf] %v1372
      %1565 = vst [vmem:[%s199 + $0x8c] sm:$0xf] %v1373
      %1566 = vst [vmem:[%s199 + $0x90] sm:$0xf] %v1374
      %1567 = vst [vmem:[%s199 + $0x94] sm:$0xf] %v1375
      %1568 = vst [vmem:[%s199 + $0x98] sm:$0xf] %v1376
      %1569 = vst [vmem:[%s199 + $0x9c] sm:$0xf] %v1377
      %1570 = vst [vmem:[%s199 + $0xa0] sm:$0xf] %v1378
      %1571 = vst [vmem:[%s199 + $0xa4] sm:$0xf] %v1379
      %1572 = vst [vmem:[%s199 + $0xa8] sm:$0xf] %v1380
      %1573 = vst [vmem:[%s199 + $0xac] sm:$0xf] %v1381
      %1574 = vst [vmem:[%s199 + $0xb0] sm:$0xf] %v1382
      %1575 = vst [vmem:[%s199 + $0xb4] sm:$0xf] %v1383
      %1576 = vst [vmem:[%s199 + $0xb8] sm:$0xf] %v1384
      %1577 = vst [vmem:[%s199 + $0xbc] sm:$0xf] %v1385
      %1578 = vst [vmem:[%s199 + $0xc0] sm:$0xf] %v1386
      %1579 = vst [vmem:[%s199 + $0xc4] sm:$0xf] %v1387
      %1580 = vst [vmem:[%s199 + $0xc8] sm:$0xf] %v1388
      %1581 = vst [vmem:[%s199 + $0xcc] sm:$0xf] %v1389
      %1582 = vst [vmem:[%s199 + $0xd0] sm:$0xf] %v1390
      %1583 = vst [vmem:[%s199 + $0xd4] sm:$0xf] %v1391
      %1584 = vst [vmem:[%s199 + $0xd8] sm:$0xf] %v1392
      %1585 = vst [vmem:[%s199 + $0xdc] sm:$0xf] %v1393
      %1586 = vst [vmem:[%s199 + $0xe0] sm:$0xf] %v1394
      %1587 = vst [vmem:[%s199 + $0xe4] sm:$0xf] %v1395
      %1588 = vst [vmem:[%s199 + $0xe8] sm:$0xf] %v1396
      %1589 = vst [vmem:[%s199 + $0xec] sm:$0xf] %v1397
      %1590 = vst [vmem:[%s199 + $0xf0] sm:$0xf] %v1398
      %1591 = vst [vmem:[%s199 + $0xf4] sm:$0xf] %v1399
      %1592 = vst [vmem:[%s199 + $0xf8] sm:$0xf] %v1400
      %1593 = vst [vmem:[%s199 + $0xfc] sm:$0xf] %v1401
      %1594 = vst [vmem:[%s199 + $0x100] sm:$0xf] %v1402
      %1595 = vst [vmem:[%s199 + $0x104] sm:$0xf] %v1403
      %1596 = vst [vmem:[%s199 + $0x108] sm:$0xf] %v1404
      %1597 = vst [vmem:[%s199 + $0x10c] sm:$0xf] %v1405
      %1598 = vst [vmem:[%s199 + $0x110] sm:$0xf] %v1406
      %1599 = vst [vmem:[%s199 + $0x114] sm:$0xf] %v1407
      %1600 = vst [vmem:[%s199 + $0x118] sm:$0xf] %v1408
      %1601 = vst [vmem:[%s199 + $0x11c] sm:$0xf] %v1409
      %1602 = vst [vmem:[%s199 + $0x120] sm:$0xf] %v1410
      %1603 = vst [vmem:[%s199 + $0x124] sm:$0xf] %v1411
      %1604 = vst [vmem:[%s199 + $0x128] sm:$0xf] %v1412
      %1605 = vst [vmem:[%s199 + $0x12c] sm:$0xf] %v1413
      %1606 = vst [vmem:[%s199 + $0x130] sm:$0xf] %v1414
      %1607 = vst [vmem:[%s199 + $0x134] sm:$0xf] %v1415
      %1608 = vst [vmem:[%s199 + $0x138] sm:$0xf] %v1416
      %1609 = vst [vmem:[%s199 + $0x13c] sm:$0xf] %v1417
      %1610 = vst [vmem:[%s199 + $0x140] sm:$0xf] %v1418
      %1611 = vst [vmem:[%s199 + $0x144] sm:$0xf] %v1419
      %1612 = vst [vmem:[%s199 + $0x148] sm:$0xf] %v1420
      %1613 = vst [vmem:[%s199 + $0x14c] sm:$0xf] %v1421
      %1614 = vst [vmem:[%s199 + $0x150] sm:$0xf] %v1422
      %1615 = vst [vmem:[%s199 + $0x154] sm:$0xf] %v1423
      %1616 = vst [vmem:[%s199 + $0x158] sm:$0xf] %v1424
      %1617 = vst [vmem:[%s199 + $0x15c] sm:$0xf] %v1425
      %1618 = vst [vmem:[%s199 + $0x160] sm:$0xf] %v1426
      %1619 = vst [vmem:[%s199 + $0x164] sm:$0xf] %v1427
      %1620 = vst [vmem:[%s199 + $0x168] sm:$0xf] %v1428
      %1621 = vst [vmem:[%s199 + $0x16c] sm:$0xf] %v1429
      %1622 = vst [vmem:[%s199 + $0x170] sm:$0xf] %v1430
      %1623 = vst [vmem:[%s199 + $0x174] sm:$0xf] %v1431
      %1624 = vst [vmem:[%s199 + $0x178] sm:$0xf] %v1432
      %1625 = vst [vmem:[%s199 + $0x17c] sm:$0xf] %v1433
      %s1626 = smul.u32 96, %s15
      %p1627 = scmp.lt.s32.totalorder %s1626, 191
      %s1628 = scalar_select %p1627, %s1626, 191
      %s1629 = smul.addr %s1628, 4
      %s1630 = scalar_lea.vmem %s4, %s1629
      // Predicated region
      $region37: #{bevformer_v2_forward.3} parent=35 // pred_check
        %p1631 = pneg %p122
      $region38: #{bevformer_v2_forward.3} parent=35 // pred_check_branch
        %1633 = sbr.rel (%p1631) target = $region40
      $region39: #{bevformer_v2_forward.3} parent=35 // pred_region
        %s1634 = smul.u32 96, %s15
      $region40: #{bevformer_v2_forward.3} parent=35 // pred_fallthru
        _
    $region36: #{bevformer_v2_forward.3} parent=5 // pred_fallthru
      _
    %p1635 = scmp.le.s32.totalorder 2, %s10
    // Predicated region
    $region41: #{bevformer_v2_forward.3} parent=5 // pred_check
      %p1636 = pneg %p1635
    $region42: #{bevformer_v2_forward.3} parent=5 // pred_check_branch
      %1638 = sbr.rel (%p1636) target = $region44
    $region43: #{bevformer_v2_forward.3} parent=5 // pred_region
      %s1639 = ssub.s32 %s10, 2
      // Predicated region
      $region45: #{bevformer_v2_forward.3} parent=43 // pred_check
        %p1640 = pneg %p128
      $region46: #{bevformer_v2_forward.3} parent=43 // pred_check_branch
        %1642 = sbr.rel (%p1640) target = $region48
      $region47: #{bevformer_v2_forward.3} parent=43 // pred_region
        %s1643 = smul.u32 96, %s16
        %p1644 = scmp.lt.s32.totalorder %s1643, 191
        %s1645 = scalar_select %p1644, %s1643, 191
        %s1646 = smul.addr %s1645, 4
        %s1647 = scalar_lea.vmem %s4, %s1646
      $region48: #{bevformer_v2_forward.3} parent=43 // pred_fallthru
        _
    $region44: #{bevformer_v2_forward.3} parent=5 // pred_fallthru
      _
  $region6: #{bevformer_v2_forward.3} parent=0 // loop_footer
    %s14 = sadd.s32 1, %s10
  $region7: #{bevformer_v2_forward.3} parent=0 // loop_footer_branch
    %9 = sbr.rel target = $region3
  $region8: #{bevformer_v2_forward.3} parent=0 // loop_exit
    _

// kernel: bevformer_v2_forward.4
$region0: #{bevformer_v2_forward.4}
  #allocation0 [shape = 'u32[]', space=smem, size = 0x4, offset = 0x4, fixed_abs, tag = 'smem constant byte address 0x4 - core index']
  #allocation1 [shape = 'u32[144,128]{1,0:T(1,128)}', space=vmem, size = 0x12000, scoped, tag = 'internal scratch']
  #allocation2 [shape = 'bf16[64,128]{1,0:T(16,128)(2,1)}', space=vmem, size = 0x4000, scoped, tag = 'scratch operand']
  #allocation3 [shape = 'f32[64,1]{1,0:T(8,128)}', space=vmem, size = 0x8000, scoped, tag = 'scratch operand']
  #allocation4 [shape = 'f32[64,1]{1,0:T(8,128)}', space=vmem, size = 0x8000, scoped, tag = 'scratch operand']
  #allocation5 [shape = 'f32[64,128]{1,0:T(8,128)}', space=vmem, size = 0x8000, scoped, tag = 'scratch operand']
  %s0 = inlined_call_operand.vmem [shape: f32[2,64,128], index: 0, kind: input, shape index: {}]
  %s1 = inlined_call_operand.vmem [shape: bf16[2,512,128], index: 1, kind: input, shape index: {}]
  %s2 = inlined_call_operand.vmem [shape: bf16[4,128,128], index: 2, kind: input, shape index: {}]
  %s3 = inlined_call_operand.vmem [shape: f32[8,128], index: 3, kind: input, shape index: {}]
  %s4 = inlined_call_operand.vmem [shape: bf16[128,256], index: 4, kind: input, shape index: {}]
  %s5 = inlined_call_operand.vmem [shape: f32[1,256], index: 5, kind: input, shape index: {}]
  %s6 = inlined_call_operand.vmem [shape: bf16[256,128], index: 6, kind: input, shape index: {}]
  %s7 = inlined_call_operand.vmem [shape: f32[2,64,128], index: 7, kind: output, shape index: {}]
  %s8 = sld [smem:[#allocation0]]
  $region69: #{bevformer_v2_forward.4} parent=0
    _
  %s10 = ssub.s32 1, %s8
  %s11 = scalar_select 0, %s10, %s8
  loop: start=0, step=1, limit=6
  $region2: #{bevformer_v2_forward.4} parent=0 // loop_pre_header
    _
  $region3: #{bevformer_v2_forward.4} parent=0 // loop_header
    %s13 = sphi 0, %s17
    %p14 = scmp.ge.s32.totalorder %s13, 6
    %s20 = sphi 0, %s32
    %s21 = sphi 0, %s28
    %s22 = sphi 0, %s20
    %s23 = sphi 0, %s21
    %s24 = sphi 0, %s22
    %s25 = sphi 0, %s23
    %s35 = sphi 0, %s37
    %s38 = sphi 0, %s35
    %s39 = sphi 0, %s38
    %s55 = sphi 0, %s39
    %s63 = sphi 0, %s65
    %s66 = sphi 0, %s63
    %s67 = sphi 0, %s66
    %s83 = sphi 0, %s67
    %s87 = sphi 0, %s87
    %s89 = sphi 0, %s87
    %s90 = sphi 0, %s89
    %s104 = sphi 0, %s90
    %s108 = sphi 0, %s108
    %s110 = sphi 0, %s108
    %s111 = sphi 0, %s110
    %s125 = sphi 0, %s111
    %s129 = sphi 0, %s129
    %s131 = sphi 0, %s129
    %s132 = sphi 0, %s131
    %s146 = sphi 0, %s132
    %s150 = sphi 0, %s150
    %s152 = sphi 0, %s150
    %s153 = sphi 0, %s152
    %s167 = sphi 0, %s153
    %s171 = sphi 0, %s171
    %s173 = sphi 0, %s171
    %s174 = sphi 0, %s173
    %s188 = sphi 0, %s174
    %s194 = sphi 0, %s196
    %s197 = sphi 0, %s194
    %s198 = sphi 0, %s197
    %s214 = sphi 0, %s198
  $region4: #{bevformer_v2_forward.4} parent=0 // loop_header_branch
    %16 = sbr.rel (%p14) target = $region8
  $region5: #{bevformer_v2_forward.4} parent=0 // loop_body
    %s18 = ssub.s32 %s13, 1
    %s19 = ssub.s32 %s13, 2
    %s26 = sadd.s32 1, %s21
    %p27 = scmp.ge.s32.totalorder %s26, 2
    %s28 = scalar_select %p27, 0, %s26
    %s29 = sadd.s32 1, %s20
    %s30 = scalar_select %p27, %s29, %s20
    %p31 = scmp.ge.s32.totalorder %s30, 2
    %s32 = scalar_select %p31, 0, %s30
    %s33 = ssub.s32 %s20, %s32
    %p34 = scmp.eq.s32.totalorder %s33, 0
    %s36 = sadd.s32 %s35, 1
    %s37 = scalar_select %p34, %s35, %s36
    %p40 = pneg %p34
    %p41 = scmp.eq.s32.totalorder %s13, 3
    %p42 = por %p40, %p41
    %p43 = scmp.ne.s32.totalorder %s35, %s38
    %p44 = scmp.eq.s32.totalorder %s13, 0
    %p45 = por %p43, %p44
    %p46 = scmp.ne.s32.totalorder %s35, %s38
    %p47 = scmp.eq.s32.totalorder %s18, 3
    %p48 = por %p46, %p47
    %p49 = scmp.ne.s32.totalorder %s38, %s39
    %p50 = scmp.eq.s32.totalorder %s18, 0
    %p51 = por %p49, %p50
    %p52 = scmp.ne.s32.totalorder %s38, %s39
    %p53 = scmp.eq.s32.totalorder %s19, 3
    %p54 = por %p52, %p53
    %p56 = scmp.ne.s32.totalorder %s39, %s55
    %p57 = scmp.eq.s32.totalorder %s19, 0
    %p58 = por %p56, %p57
    %s59 = ssub.s32 %s20, %s32
    %s60 = ssub.s32 %s21, %s28
    %s61 = sor.u32 %s59, %s60
    %p62 = scmp.eq.s32.totalorder %s61, 0
    %s64 = sadd.s32 %s63, 1
    %s65 = scalar_select %p62, %s63, %s64
    %p68 = pneg %p62
    %p69 = scmp.eq.s32.totalorder %s13, 3
    %p70 = por %p68, %p69
    %p71 = scmp.ne.s32.totalorder %s63, %s66
    %p72 = scmp.eq.s32.totalorder %s13, 0
    %p73 = por %p71, %p72
    %p74 = scmp.ne.s32.totalorder %s63, %s66
    %p75 = scmp.eq.s32.totalorder %s18, 3
    %p76 = por %p74, %p75
    %p77 = scmp.ne.s32.totalorder %s66, %s67
    %p78 = scmp.eq.s32.totalorder %s18, 0
    %p79 = por %p77, %p78
    %p80 = scmp.ne.s32.totalorder %s66, %s67
    %p81 = scmp.eq.s32.totalorder %s19, 3
    %p82 = por %p80, %p81
    %p84 = scmp.ne.s32.totalorder %s67, %s83
    %p85 = scmp.eq.s32.totalorder %s19, 0
    %p86 = por %p84, %p85
    %s88 = sadd.s32 %s87, 1
    %p91 = scmp.eq.s32.totalorder %s13, 3
    %p92 = scmp.ne.s32.totalorder %s87, %s89
    %p93 = scmp.eq.s32.totalorder %s13, 0
    %p94 = por %p92, %p93
    %p95 = scmp.ne.s32.totalorder %s87, %s89
    %p96 = scmp.eq.s32.totalorder %s18, 3
    %p97 = por %p95, %p96
    %p98 = scmp.ne.s32.totalorder %s89, %s90
    %p99 = scmp.eq.s32.totalorder %s18, 0
    %p100 = por %p98, %p99
    %p101 = scmp.ne.s32.totalorder %s89, %s90
    %p102 = scmp.eq.s32.totalorder %s19, 3
    %p103 = por %p101, %p102
    %p105 = scmp.ne.s32.totalorder %s90, %s104
    %p106 = scmp.eq.s32.totalorder %s19, 0
    %p107 = por %p105, %p106
    %s109 = sadd.s32 %s108, 1
    %p112 = scmp.eq.s32.totalorder %s13, 3
    %p113 = scmp.ne.s32.totalorder %s108, %s110
    %p114 = scmp.eq.s32.totalorder %s13, 0
    %p115 = por %p113, %p114
    %p116 = scmp.ne.s32.totalorder %s108, %s110
    %p117 = scmp.eq.s32.totalorder %s18, 3
    %p118 = por %p116, %p117
    %p119 = scmp.ne.s32.totalorder %s110, %s111
    %p120 = scmp.eq.s32.totalorder %s18, 0
    %p121 = por %p119, %p120
    %p122 = scmp.ne.s32.totalorder %s110, %s111
    %p123 = scmp.eq.s32.totalorder %s19, 3
    %p124 = por %p122, %p123
    %p126 = scmp.ne.s32.totalorder %s111, %s125
    %p127 = scmp.eq.s32.totalorder %s19, 0
    %p128 = por %p126, %p127
    %s130 = sadd.s32 %s129, 1
    %p133 = scmp.eq.s32.totalorder %s13, 3
    %p134 = scmp.ne.s32.totalorder %s129, %s131
    %p135 = scmp.eq.s32.totalorder %s13, 0
    %p136 = por %p134, %p135
    %p137 = scmp.ne.s32.totalorder %s129, %s131
    %p138 = scmp.eq.s32.totalorder %s18, 3
    %p139 = por %p137, %p138
    %p140 = scmp.ne.s32.totalorder %s131, %s132
    %p141 = scmp.eq.s32.totalorder %s18, 0
    %p142 = por %p140, %p141
    %p143 = scmp.ne.s32.totalorder %s131, %s132
    %p144 = scmp.eq.s32.totalorder %s19, 3
    %p145 = por %p143, %p144
    %p147 = scmp.ne.s32.totalorder %s132, %s146
    %p148 = scmp.eq.s32.totalorder %s19, 0
    %p149 = por %p147, %p148
    %s151 = sadd.s32 %s150, 1
    %p154 = scmp.eq.s32.totalorder %s13, 3
    %p155 = scmp.ne.s32.totalorder %s150, %s152
    %p156 = scmp.eq.s32.totalorder %s13, 0
    %p157 = por %p155, %p156
    %p158 = scmp.ne.s32.totalorder %s150, %s152
    %p159 = scmp.eq.s32.totalorder %s18, 3
    %p160 = por %p158, %p159
    %p161 = scmp.ne.s32.totalorder %s152, %s153
    %p162 = scmp.eq.s32.totalorder %s18, 0
    %p163 = por %p161, %p162
    %p164 = scmp.ne.s32.totalorder %s152, %s153
    %p165 = scmp.eq.s32.totalorder %s19, 3
    %p166 = por %p164, %p165
    %p168 = scmp.ne.s32.totalorder %s153, %s167
    %p169 = scmp.eq.s32.totalorder %s19, 0
    %p170 = por %p168, %p169
    %s172 = sadd.s32 %s171, 1
    %p175 = scmp.eq.s32.totalorder %s13, 3
    %p176 = scmp.ne.s32.totalorder %s171, %s173
    %p177 = scmp.eq.s32.totalorder %s13, 0
    %p178 = por %p176, %p177
    %p179 = scmp.ne.s32.totalorder %s171, %s173
    %p180 = scmp.eq.s32.totalorder %s18, 3
    %p181 = por %p179, %p180
    %p182 = scmp.ne.s32.totalorder %s173, %s174
    %p183 = scmp.eq.s32.totalorder %s18, 0
    %p184 = por %p182, %p183
    %p185 = scmp.ne.s32.totalorder %s173, %s174
    %p186 = scmp.eq.s32.totalorder %s19, 3
    %p187 = por %p185, %p186
    %p189 = scmp.ne.s32.totalorder %s174, %s188
    %p190 = scmp.eq.s32.totalorder %s19, 0
    %p191 = por %p189, %p190
    %s192 = ssub.s32 %s20, %s32
    %p193 = scmp.eq.s32.totalorder %s192, 0
    %s195 = sadd.s32 %s194, 1
    %s196 = scalar_select %p193, %s194, %s195
    %p199 = pneg %p193
    %p200 = scmp.eq.s32.totalorder %s13, 3
    %p201 = por %p199, %p200
    %p202 = scmp.ne.s32.totalorder %s194, %s197
    %p203 = scmp.eq.s32.totalorder %s13, 0
    %p204 = por %p202, %p203
    %p205 = scmp.ne.s32.totalorder %s194, %s197
    %p206 = scmp.eq.s32.totalorder %s18, 3
    %p207 = por %p205, %p206
    %p208 = scmp.ne.s32.totalorder %s197, %s198
    %p209 = scmp.eq.s32.totalorder %s18, 0
    %p210 = por %p208, %p209
    %p211 = scmp.ne.s32.totalorder %s197, %s198
    %p212 = scmp.eq.s32.totalorder %s19, 3
    %p213 = por %p211, %p212
    %p215 = scmp.ne.s32.totalorder %s198, %s214
    %p216 = scmp.eq.s32.totalorder %s19, 0
    %p217 = por %p215, %p216
    %p218 = scmp.le.s32.totalorder 1, %s13
    %p219 = scmp.lt.s32.totalorder %s13, 5
    %p220 = pnand %p218, %p219
    %p221 = pneg %p220
    // Predicated region
    $region9: #{bevformer_v2_forward.4} parent=5 // pred_check
      _
    $region10: #{bevformer_v2_forward.4} parent=5 // pred_check_branch
      %223 = sbr.rel (%p220) target = $region12
    $region11: #{bevformer_v2_forward.4} parent=5 // pred_region
      %s224 = ssub.s32 %s13, 1
      // Predicated region
      $region13: #{bevformer_v2_forward.4} parent=11 // pred_check
        %p225 = pneg %p100
      $region14: #{bevformer_v2_forward.4} parent=11 // pred_check_branch
        %227 = sbr.rel (%p225) target = $region16
      $region15: #{bevformer_v2_forward.4} parent=11 // pred_region
        _
      $region16: #{bevformer_v2_forward.4} parent=11 // pred_fallthru
        _
      // Predicated region
      $region17: #{bevformer_v2_forward.4} parent=11 // pred_check
        %p228 = pneg %p121
      $region18: #{bevformer_v2_forward.4} parent=11 // pred_check_branch
        %230 = sbr.rel (%p228) target = $region20
      $region19: #{bevformer_v2_forward.4} parent=11 // pred_region
        _
      $region20: #{bevformer_v2_forward.4} parent=11 // pred_fallthru
        _
      // Predicated region
      $region21: #{bevformer_v2_forward.4} parent=11 // pred_check
        %p231 = pneg %p142
      $region22: #{bevformer_v2_forward.4} parent=11 // pred_check_branch
        %233 = sbr.rel (%p231) target = $region24
      $region23: #{bevformer_v2_forward.4} parent=11 // pred_region
        _
      $region24: #{bevformer_v2_forward.4} parent=11 // pred_fallthru
        _
      // Predicated region
      $region25: #{bevformer_v2_forward.4} parent=11 // pred_check
        %p234 = pneg %p163
      $region26: #{bevformer_v2_forward.4} parent=11 // pred_check_branch
        %236 = sbr.rel (%p234) target = $region28
      $region27: #{bevformer_v2_forward.4} parent=11 // pred_region
        _
      $region28: #{bevformer_v2_forward.4} parent=11 // pred_fallthru
        _
      // Predicated region
      $region29: #{bevformer_v2_forward.4} parent=11 // pred_check
        %p237 = pneg %p184
      $region30: #{bevformer_v2_forward.4} parent=11 // pred_check_branch
        %239 = sbr.rel (%p237) target = $region32
      $region31: #{bevformer_v2_forward.4} parent=11 // pred_region
        _
      $region32: #{bevformer_v2_forward.4} parent=11 // pred_fallthru
        _
    $region12: #{bevformer_v2_forward.4} parent=5 // pred_fallthru
      _
    %p240 = scmp.lt.s32.totalorder %s13, 4
    // Predicated region
    $region33: #{bevformer_v2_forward.4} parent=5 // pred_check
      %p241 = pneg %p240
    $region34: #{bevformer_v2_forward.4} parent=5 // pred_check_branch
      %243 = sbr.rel (%p241) target = $region36
    $region35: #{bevformer_v2_forward.4} parent=5 // pred_region
      // Predicated region
      $region37: #{bevformer_v2_forward.4} parent=35 // pred_check
        %p244 = pneg %p45
      $region38: #{bevformer_v2_forward.4} parent=35 // pred_check_branch
        %246 = sbr.rel (%p244) target = $region40
      $region39: #{bevformer_v2_forward.4} parent=35 // pred_region
        %p247 = scmp.lt.s32.totalorder %s20, 1
        %s248 = scalar_select %p247, %s20, 1
        %s249 = smul.addr %s248, 8
        %s250 = smul.addr %s249, 8
        %s251 = scalar_lea.vmem %s0, %s250
      $region40: #{bevformer_v2_forward.4} parent=35 // pred_fallthru
        _
      // Predicated region
      $region41: #{bevformer_v2_forward.4} parent=35 // pred_check
        %p252 = pneg %p73
      $region42: #{bevformer_v2_forward.4} parent=35 // pred_check_branch
        %254 = sbr.rel (%p252) target = $region44
      $region43: #{bevformer_v2_forward.4} parent=35 // pred_region
        %s255 = smul.u32 32, %s21
        %p256 = scmp.lt.s32.totalorder %s20, 1
        %s257 = scalar_select %p256, %s20, 1
        %p258 = scmp.lt.s32.totalorder %s255, 63
        %s259 = scalar_select %p258, %s255, 63
        %s260 = smul.addr %s257, 64
        %s261 = sadd.s32 %s259, %s260
        %s262 = smul.addr %s261, 4
        %s263 = scalar_lea.vmem %s1, %s262
        %s264 = smul.u32 32, %s21
      $region44: #{bevformer_v2_forward.4} parent=35 // pred_fallthru
        _
    $region36: #{bevformer_v2_forward.4} parent=5 // pred_fallthru
      _
    %p265 = scmp.le.s32.totalorder 1, %s13
    %p266 = scmp.lt.s32.totalorder %s13, 5
    %p267 = pnand %p265, %p266
    %p268 = pneg %p267
    // Predicated region
    $region45: #{bevformer_v2_forward.4} parent=5 // pred_check
      _
    $region46: #{bevformer_v2_forward.4} parent=5 // pred_check_branch
      %270 = sbr.rel (%p267) target = $region48
    $region47: #{bevformer_v2_forward.4} parent=5 // pred_region
      %s271 = ssub.s32 %s13, 1
      %p272 = scmp.lt.s32.totalorder %s22, 1
      %s273 = scalar_select %p272, %s22, 1
      %s274 = smul.addr %s273, 8
      %s275 = smul.addr %s274, 8
      %s276 = scalar_lea.vmem %s0, %s275
      %p277 = pneg %p51
      %p278 = pneg %p48
      %s279 = smul.u32 32, %s23
      %p280 = scmp.lt.s32.totalorder %s22, 1
      %s281 = scalar_select %p280, %s22, 1
      %p282 = scmp.lt.s32.totalorder %s279, 63
      %s283 = scalar_select %p282, %s279, 63
      %s284 = smul.addr %s281, 64
      %s285 = sadd.s32 %s283, %s284
      %s286 = smul.addr %s285, 4
      %s287 = scalar_lea.vmem %s1, %s286
      %p288 = pneg %p79
      %p289 = pneg %p76
      %p290 = pneg %p100
      %p291 = pneg %p97
      %p292 = pneg %p121
      %p293 = pneg %p118
      %p294 = pneg %p142
      %p295 = pneg %p139
      %p296 = pneg %p163
      %p297 = pneg %p160
      %p298 = pneg %p184
      %p299 = pneg %p181
      %p300 = pneg %p210
      %p301 = pneg %p207
      %p302 = scmp.lt.s32.totalorder %s22, 1
      %s303 = scalar_select %p302, %s22, 1
      %s304 = smul.addr %s303, 8
      %s305 = smul.addr %s304, 8
      %s306 = scalar_lea.vmem %s7, %s305
      %p307 = scmp.lt.s32.totalorder %s22, 1
      %s308 = scalar_select %p307, %s22, 1
      %s309 = smul.addr %s308, 8
      %s310 = smul.addr %s309, 8
      %s311 = scalar_lea.vmem %s0, %s310
      %s312 = smul.u32 32, %s23
      %p313 = scmp.lt.s32.totalorder %s22, 1
      %s314 = scalar_select %p313, %s22, 1
      %p315 = scmp.lt.s32.totalorder %s312, 63
      %s316 = scalar_select %p315, %s312, 63
      %s317 = smul.addr %s314, 64
      %s318 = sadd.s32 %s316, %s317
      %s319 = smul.addr %s318, 4
      %s320 = scalar_lea.vmem %s1, %s319
      %s321 = smul.u32 32, %s23
      %p322 = scmp.lt.s32.totalorder %s22, 1
      %s323 = scalar_select %p322, %s22, 1
      %s324 = smul.addr %s323, 8
      %s325 = smul.addr %s324, 8
      %s326 = scalar_lea.vmem %s7, %s325
      %p328 = scmp.eq.s32.totalorder %s23, 0
      // Predicated region
      $region49: #{bevformer_v2_forward.4} parent=47 // pred_check
        %p329 = pneg %p328
      $region50: #{bevformer_v2_forward.4} parent=47 // pred_check_branch
        %331 = sbr.rel (%p329) target = $region52
      $region51: #{bevformer_v2_forward.4} parent=47 // pred_region
        %v332 = vld [vmem:[%s311] sm:$0xff]
        %v333 = vld [vmem:[%s311 + $0x8] sm:$0xff]
        %v334 = vld [vmem:[%s311 + $0x10] sm:$0xff]
        %v335 = vld [vmem:[%s311 + $0x18] sm:$0xff]
        %v336 = vld [vmem:[%s311 + $0x20] sm:$0xff]
        %v337 = vld [vmem:[%s311 + $0x28] sm:$0xff]
        %v338 = vld [vmem:[%s311 + $0x30] sm:$0xff]
        %v339 = vld [vmem:[%s311 + $0x38] sm:$0xff]
        %v340 = vpack.c.bf16 %v333, %v332
        %v341 = vpack.c.bf16 %v335, %v334
        %v342 = vpack.c.bf16 %v337, %v336
        %v343 = vpack.c.bf16 %v339, %v338
        %v344 = vld [vmem:[%s2] sm:$0xf]
        %v345 = vld [vmem:[%s2 + $0x4] sm:$0xf]
        %v346 = vld [vmem:[%s2 + $0x8] sm:$0xf]
        %v347 = vld [vmem:[%s2 + $0xc] sm:$0xf]
        %v348 = vld [vmem:[%s2 + $0x10] sm:$0xf]
        %v349 = vld [vmem:[%s2 + $0x14] sm:$0xf]
        %v350 = vld [vmem:[%s2 + $0x18] sm:$0xf]
        %v351 = vld [vmem:[%s2 + $0x1c] sm:$0xf]
        %v352 = vld [vmem:[%s2 + $0x20] sm:$0xf]
        %v353 = vld [vmem:[%s2 + $0x24] sm:$0xf]
        %v354 = vld [vmem:[%s2 + $0x28] sm:$0xf]
        %v355 = vld [vmem:[%s2 + $0x2c] sm:$0xf]
        %v356 = vld [vmem:[%s2 + $0x30] sm:$0xf]
        %v357 = vld [vmem:[%s2 + $0x34] sm:$0xf]
        %v358 = vld [vmem:[%s2 + $0x38] sm:$0xf]
        %v359 = vld [vmem:[%s2 + $0x3c] sm:$0xf]
        %v360 = vld [vmem:[%s3] sm:$0x1]
        %v361 = vlaneseq
        %v362 = vshrl.u32 %v361, 7
        %v363 = vsub.s32 0, %v362
        %v364 = vrot.slane %v360, %v363
        %v381 = vunpack.c.l.b16 %v344
        %v382 = vunpack.c.l.b16 %v345
        %v383 = vunpack.c.l.b16 %v346
        %v384 = vunpack.c.l.b16 %v347
        %v385 = vunpack.c.l.b16 %v348
        %v386 = vunpack.c.l.b16 %v349
        %v387 = vunpack.c.l.b16 %v350
        %v388 = vunpack.c.l.b16 %v351
        %v389 = vunpack.c.l.b16 %v352
        %v390 = vunpack.c.l.b16 %v353
        %v391 = vunpack.c.l.b16 %v354
        %v392 = vunpack.c.l.b16 %v355
        %v393 = vunpack.c.l.b16 %v356
        %v394 = vunpack.c.l.b16 %v357
        %v395 = vunpack.c.l.b16 %v358
        %v396 = vunpack.c.l.b16 %v359
        %v397 = vpack.c.b16 %v382, %v381
        %v398 = vpack.c.b16 %v384, %v383
        %v399 = vpack.c.b16 %v386, %v385
        %v400 = vpack.c.b16 %v388, %v387
        %v401 = vpack.c.b16 %v390, %v389
        %v402 = vpack.c.b16 %v392, %v391
        %v403 = vpack.c.b16 %v394, %v393
        %v404 = vpack.c.b16 %v396, %v395
        %413 = vmatprep.subr.bf16.mxu0 0
        %414 = vmatpush1.bf16.msra.mxu0 %v397
        %415 = vmatprep.subr.bf16.mxu0 0
        %416 = vmatpush1.bf16.msra.mxu0 %v398
        %417 = vmatprep.subr.bf16.mxu0 0
        %418 = vmatpush1.bf16.msra.mxu0 %v399
        %419 = vmatprep.subr.bf16.mxu0 0
        %420 = vmatpush1.bf16.msra.mxu0 %v400
        %421 = vmatprep.subr.bf16.mxu0 0
        %422 = vmatpush1.bf16.msra.mxu0 %v401
        %423 = vmatprep.subr.bf16.mxu0 0
        %424 = vmatpush1.bf16.msra.mxu0 %v402
        %425 = vmatprep.subr.bf16.mxu0 0
        %426 = vmatpush1.bf16.msra.mxu0 %v403
        %427 = vmatprep.subr.bf16.mxu0 0
        %428 = vmatpush1.bf16.msra.mxu0 %v404
        %429 = vmatprep.subr.bf16.mxu0 0
        %430 = vmatpush1.bf16.msra.mxu0 0
        %431 = vmatprep.subr.bf16.mxu0 0
        %432 = vmatpush1.bf16.msra.mxu0 0
        %433 = vmatprep.subr.bf16.mxu0 0
        %434 = vmatpush1.bf16.msra.mxu0 0
        %435 = vmatprep.subr.bf16.mxu0 0
        %436 = vmatpush1.bf16.msra.mxu0 0
        %437 = vmatprep.subr.bf16.mxu0 0
        %438 = vmatpush1.bf16.msra.mxu0 0
        %439 = vmatprep.subr.bf16.mxu0 0
        %440 = vmatpush1.bf16.msra.mxu0 0
        %441 = vmatprep.subr.bf16.mxu0 0
        %442 = vmatpush1.bf16.msra.mxu0 0
        %443 = vmatprep.subr.bf16.mxu0 0
        %444 = vmatpush1.bf16.msra.mxu0 0
        %445 = vmatprep.mubr.bf16.mxu0 0
        %446 = vmatmul.mubr.bf16.gmra.mrb[0].mxu0 %v340
        %v447 = vpop.f32.mrb[0].mxu0
        %v448 = vadd.f32 %v364, %v447
        %v449 = vpop.f32.mrb[0].mxu0
        %v450 = vpop.f32.mrb[0].mxu0
        %v451 = vadd.f32 %v364, %v450
        %v452 = vpop.f32.mrb[0].mxu0
        %453 = vmatprep.mubr.bf16.mxu0 0
        %454 = vmatmul.mubr.bf16.gmra.mrb[0].mxu0 %v341
        %v455 = vpop.f32.mrb[0].mxu0
        %v456 = vadd.f32 %v364, %v455
        %v457 = vpop.f32.mrb[0].mxu0
        %v458 = vpop.f32.mrb[0].mxu0
        %v459 = vadd.f32 %v364, %v458
        %v460 = vpop.f32.mrb[0].mxu0
        %461 = vmatprep.mubr.bf16.mxu0 0
        %462 = vmatmul.mubr.bf16.gmra.mrb[0].mxu0 %v342
        %v463 = vpop.f32.mrb[0].mxu0
        %v464 = vadd.f32 %v364, %v463
        %v465 = vpop.f32.mrb[0].mxu0
        %v466 = vpop.f32.mrb[0].mxu0
        %v467 = vadd.f32 %v364, %v466
        %v468 = vpop.f32.mrb[0].mxu0
        %469 = vmatprep.mubr.bf16.mxu0 0
        %470 = vmatmul.mubr.bf16.gmra.mrb[0].mxu0 %v343
        %v471 = vpop.f32.mrb[0].mxu0
        %v472 = vadd.f32 %v364, %v471
        %v473 = vpop.f32.mrb[0].mxu0
        %v474 = vpop.f32.mrb[0].mxu0
        %v475 = vadd.f32 %v364, %v474
        %v476 = vpop.f32.mrb[0].mxu0
        %477 = vdwg.mxu0
        %v478 = vmul.f32 %v448, 0.088388346
        %v479 = vmul.f32 %v451, 0.088388346
        %v480 = vmul.f32 %v456, 0.088388346
        %v481 = vmul.f32 %v459, 0.088388346
        %v482 = vmul.f32 %v464, 0.088388346
        %v483 = vmul.f32 %v467, 0.088388346
        %v484 = vmul.f32 %v472, 0.088388346
        %v485 = vmul.f32 %v475, 0.088388346
        %v486 = vpack.c.bf16 %v479, %v478
        %v487 = vpack.c.bf16 %v481, %v480
        %v488 = vpack.c.bf16 %v483, %v482
        %v489 = vpack.c.bf16 %v485, %v484
        %s490 = scalar_lea.vmem %s2, 64
        %v491 = vld [vmem:[%s490] sm:$0xf]
        %v492 = vld [vmem:[%s490 + $0x4] sm:$0xf]
        %v493 = vld [vmem:[%s490 + $0x8] sm:$0xf]
        %v494 = vld [vmem:[%s490 + $0xc] sm:$0xf]
        %v495 = vld [vmem:[%s490 + $0x10] sm:$0xf]
        %v496 = vld [vmem:[%s490 + $0x14] sm:$0xf]
        %v497 = vld [vmem:[%s490 + $0x18] sm:$0xf]
        %v498 = vld [vmem:[%s490 + $0x1c] sm:$0xf]
        %v499 = vld [vmem:[%s490 + $0x20] sm:$0xf]
        %v500 = vld [vmem:[%s490 + $0x24] sm:$0xf]
        %v501 = vld [vmem:[%s490 + $0x28] sm:$0xf]
        %v502 = vld [vmem:[%s490 + $0x2c] sm:$0xf]
        %v503 = vld [vmem:[%s490 + $0x30] sm:$0xf]
        %v504 = vld [vmem:[%s490 + $0x34] sm:$0xf]
        %v505 = vld [vmem:[%s490 + $0x38] sm:$0xf]
        %v506 = vld [vmem:[%s490 + $0x3c] sm:$0xf]
        %v523 = vunpack.c.l.b16 %v491
        %v524 = vunpack.c.l.b16 %v492
        %v525 = vunpack.c.l.b16 %v493
        %v526 = vunpack.c.l.b16 %v494
        %v527 = vunpack.c.l.b16 %v495
        %v528 = vunpack.c.l.b16 %v496
        %v529 = vunpack.c.l.b16 %v497
        %v530 = vunpack.c.l.b16 %v498
        %v531 = vunpack.c.l.b16 %v499
        %v532 = vunpack.c.l.b16 %v500
        %v533 = vunpack.c.l.b16 %v501
        %v534 = vunpack.c.l.b16 %v502
        %v535 = vunpack.c.l.b16 %v503
        %v536 = vunpack.c.l.b16 %v504
        %v537 = vunpack.c.l.b16 %v505
        %v538 = vunpack.c.l.b16 %v506
        %v539 = vpack.c.b16 %v524, %v523
        %v540 = vpack.c.b16 %v526, %v525
        %v541 = vpack.c.b16 %v528, %v527
        %v542 = vpack.c.b16 %v530, %v529
        %v543 = vpack.c.b16 %v532, %v531
        %v544 = vpack.c.b16 %v534, %v533
        %v545 = vpack.c.b16 %v536, %v535
        %v546 = vpack.c.b16 %v538, %v537
        %555 = vmatprep.subr.bf16.mxu0 0
        %556 = vmatpush1.bf16.msra.mxu0 %v539
        %557 = vmatprep.subr.bf16.mxu0 0
        %558 = vmatpush1.bf16.msra.mxu0 %v540
        %559 = vmatprep.subr.bf16.mxu0 0
        %560 = vmatpush1.bf16.msra.mxu0 %v541
        %561 = vmatprep.subr.bf16.mxu0 0
        %562 = vmatpush1.bf16.msra.mxu0 %v542
        %563 = vmatprep.subr.bf16.mxu0 0
        %564 = vmatpush1.bf16.msra.mxu0 %v543
        %565 = vmatprep.subr.bf16.mxu0 0
        %566 = vmatpush1.bf16.msra.mxu0 %v544
        %567 = vmatprep.subr.bf16.mxu0 0
        %568 = vmatpush1.bf16.msra.mxu0 %v545
        %569 = vmatprep.subr.bf16.mxu0 0
        %570 = vmatpush1.bf16.msra.mxu0 %v546
        %571 = vmatprep.subr.bf16.mxu0 0
        %572 = vmatpush1.bf16.msra.mxu0 0
        %573 = vmatprep.subr.bf16.mxu0 0
        %574 = vmatpush1.bf16.msra.mxu0 0
        %575 = vmatprep.subr.bf16.mxu0 0
        %576 = vmatpush1.bf16.msra.mxu0 0
        %577 = vmatprep.subr.bf16.mxu0 0
        %578 = vmatpush1.bf16.msra.mxu0 0
        %579 = vmatprep.subr.bf16.mxu0 0
        %580 = vmatpush1.bf16.msra.mxu0 0
        %581 = vmatprep.subr.bf16.mxu0 0
        %582 = vmatpush1.bf16.msra.mxu0 0
        %583 = vmatprep.subr.bf16.mxu0 0
        %584 = vmatpush1.bf16.msra.mxu0 0
        %585 = vmatprep.subr.bf16.mxu0 0
        %586 = vmatpush1.bf16.msra.mxu0 0
        %587 = vmatprep.mubr.bf16.mxu0 0
        %588 = vmatmul.mubr.bf16.gmra.mrb[0].mxu0 %v486
        %v589 = vpop.f32.mrb[0].mxu0
        %v590 = vadd.f32 0.0, %v589
        %v591 = vpop.f32.mrb[0].mxu0
        %v592 = vpop.f32.mrb[0].mxu0
        %v593 = vadd.f32 0.0, %v592
        %v594 = vpop.f32.mrb[0].mxu0
        %595 = vmatprep.mubr.bf16.mxu0 0
        %596 = vmatmul.mubr.bf16.gmra.mrb[0].mxu0 %v487
        %v597 = vpop.f32.mrb[0].mxu0
        %v598 = vadd.f32 0.0, %v597
        %v599 = vpop.f32.mrb[0].mxu0
        %v600 = vpop.f32.mrb[0].mxu0
        %v601 = vadd.f32 0.0, %v600
        %v602 = vpop.f32.mrb[0].mxu0
        %603 = vmatprep.mubr.bf16.mxu0 0
        %604 = vmatmul.mubr.bf16.gmra.mrb[0].mxu0 %v488
        %v605 = vpop.f32.mrb[0].mxu0
        %v606 = vadd.f32 0.0, %v605
        %v607 = vpop.f32.mrb[0].mxu0
        %v608 = vpop.f32.mrb[0].mxu0
        %v609 = vadd.f32 0.0, %v608
        %v610 = vpop.f32.mrb[0].mxu0
        %611 = vmatprep.mubr.bf16.mxu0 0
        %612 = vmatmul.mubr.bf16.gmra.mrb[0].mxu0 %v489
        %v613 = vpop.f32.mrb[0].mxu0
        %v614 = vadd.f32 0.0, %v613
        %v615 = vpop.f32.mrb[0].mxu0
        %v616 = vpop.f32.mrb[0].mxu0
        %v617 = vadd.f32 0.0, %v616
        %v618 = vpop.f32.mrb[0].mxu0
        %619 = vdwg.mxu0
        %v620 = vpack.c.bf16 %v593, %v590
        %v621 = vpack.c.bf16 %v601, %v598
        %v622 = vpack.c.bf16 %v609, %v606
        %v623 = vpack.c.bf16 %v617, %v614
        %624 = vst [vmem:[#allocation2] sm:$0xff] %v620
        %625 = vst [vmem:[#allocation2 + $0x8] sm:$0xff] %v621
        %626 = vst [vmem:[#allocation2 + $0x10] sm:$0xff] %v622
        %627 = vst [vmem:[#allocation2 + $0x18] sm:$0xff] %v623
        %vm628 = vcmask 7168
        %629 = vst.msk [vmem:[#allocation3] sm:$0xff] %vm628, -inf
        %630 = vst.msk [vmem:[#allocation3 + $0x8] sm:$0xff] %vm628, -inf
        %631 = vst.msk [vmem:[#allocation3 + $0x10] sm:$0xff] %vm628, -inf
        %632 = vst.msk [vmem:[#allocation3 + $0x18] sm:$0xff] %vm628, -inf
        %633 = vst.msk [vmem:[#allocation3 + $0x20] sm:$0xff] %vm628, -inf
        %634 = vst.msk [vmem:[#allocation3 + $0x28] sm:$0xff] %vm628, -inf
        %635 = vst.msk [vmem:[#allocation3 + $0x30] sm:$0xff] %vm628, -inf
        %636 = vst.msk [vmem:[#allocation3 + $0x38] sm:$0xff] %vm628, -inf
        %637 = vst.msk [vmem:[#allocation4] sm:$0xff] %vm628, 0.0
        %638 = vst.msk [vmem:[#allocation4 + $0x8] sm:$0xff] %vm628, 0.0
        %639 = vst.msk [vmem:[#allocation4 + $0x10] sm:$0xff] %vm628, 0.0
        %640 = vst.msk [vmem:[#allocation4 + $0x18] sm:$0xff] %vm628, 0.0
        %641 = vst.msk [vmem:[#allocation4 + $0x20] sm:$0xff] %vm628, 0.0
        %642 = vst.msk [vmem:[#allocation4 + $0x28] sm:$0xff] %vm628, 0.0
        %643 = vst.msk [vmem:[#allocation4 + $0x30] sm:$0xff] %vm628, 0.0
        %644 = vst.msk [vmem:[#allocation4 + $0x38] sm:$0xff] %vm628, 0.0
        %645 = vst [vmem:[#allocation5] sm:$0xff] 0.0
        %646 = vst [vmem:[#allocation5 + $0x8] sm:$0xff] 0.0
        %647 = vst [vmem:[#allocation5 + $0x10] sm:$0xff] 0.0
        %648 = vst [vmem:[#allocation5 + $0x18] sm:$0xff] 0.0
        %649 = vst [vmem:[#allocation5 + $0x20] sm:$0xff] 0.0
        %650 = vst [vmem:[#allocation5 + $0x28] sm:$0xff] 0.0
        %651 = vst [vmem:[#allocation5 + $0x30] sm:$0xff] 0.0
        %652 = vst [vmem:[#allocation5 + $0x38] sm:$0xff] 0.0
      $region52: #{bevformer_v2_forward.4} parent=47 // pred_fallthru
        _
      %v653 = vld [vmem:[%s320] sm:$0xf]
      %v654 = vld [vmem:[%s320 + $0x4] sm:$0xf]
      %v655 = vld [vmem:[%s320 + $0x8] sm:$0xf]
      %v656 = vld [vmem:[%s320 + $0xc] sm:$0xf]
      %v657 = vld [vmem:[%s320 + $0x10] sm:$0xf]
      %v658 = vld [vmem:[%s320 + $0x14] sm:$0xf]
      %v659 = vld [vmem:[%s320 + $0x18] sm:$0xf]
      %v660 = vld [vmem:[%s320 + $0x1c] sm:$0xf]
      %v661 = vld [vmem:[%s320 + $0x20] sm:$0xf]
      %v662 = vld [vmem:[%s320 + $0x24] sm:$0xf]
      %v663 = vld [vmem:[%s320 + $0x28] sm:$0xf]
      %v664 = vld [vmem:[%s320 + $0x2c] sm:$0xf]
      %v665 = vld [vmem:[%s320 + $0x30] sm:$0xf]
      %v666 = vld [vmem:[%s320 + $0x34] sm:$0xf]
      %v667 = vld [vmem:[%s320 + $0x38] sm:$0xf]
      %v668 = vld [vmem:[%s320 + $0x3c] sm:$0xf]
      %v669 = vld [vmem:[%s320 + $0x40] sm:$0xf]
      %v670 = vld [vmem:[%s320 + $0x44] sm:$0xf]
      %v671 = vld [vmem:[%s320 + $0x48] sm:$0xf]
      %v672 = vld [vmem:[%s320 + $0x4c] sm:$0xf]
      %v673 = vld [vmem:[%s320 + $0x50] sm:$0xf]
      %v674 = vld [vmem:[%s320 + $0x54] sm:$0xf]
      %v675 = vld [vmem:[%s320 + $0x58] sm:$0xf]
      %v676 = vld [vmem:[%s320 + $0x5c] sm:$0xf]
      %v677 = vld [vmem:[%s320 + $0x60] sm:$0xf]
      %v678 = vld [vmem:[%s320 + $0x64] sm:$0xf]
      %v679 = vld [vmem:[%s320 + $0x68] sm:$0xf]
      %v680 = vld [vmem:[%s320 + $0x6c] sm:$0xf]
      %v681 = vld [vmem:[%s320 + $0x70] sm:$0xf]
      %v682 = vld [vmem:[%s320 + $0x74] sm:$0xf]
      %v683 = vld [vmem:[%s320 + $0x78] sm:$0xf]
      %v684 = vld [vmem:[%s320 + $0x7c] sm:$0xf]
      %v685 = vld [vmem:[#allocation2] sm:$0xff]
      %v686 = vld [vmem:[#allocation2 + $0x8] sm:$0xff]
      %v687 = vld [vmem:[#allocation2 + $0x10] sm:$0xff]
      %v688 = vld [vmem:[#allocation2 + $0x18] sm:$0xff]
      %v721 = vunpack.c.l.b16 %v653
      %v722 = vunpack.c.l.b16 %v654
      %v723 = vunpack.c.l.b16 %v655
      %v724 = vunpack.c.l.b16 %v656
      %v725 = vunpack.c.l.b16 %v657
      %v726 = vunpack.c.l.b16 %v658
      %v727 = vunpack.c.l.b16 %v659
      %v728 = vunpack.c.l.b16 %v660
      %v729 = vunpack.c.l.b16 %v661
      %v730 = vunpack.c.l.b16 %v662
      %v731 = vunpack.c.l.b16 %v663
      %v732 = vunpack.c.l.b16 %v664
      %v733 = vunpack.c.l.b16 %v665
      %v734 = vunpack.c.l.b16 %v666
      %v735 = vunpack.c.l.b16 %v667
      %v736 = vunpack.c.l.b16 %v668
      %v737 = vunpack.c.l.b16 %v669
      %v738 = vunpack.c.l.b16 %v670
      %v739 = vunpack.c.l.b16 %v671
      %v740 = vunpack.c.l.b16 %v672
      %v741 = vunpack.c.l.b16 %v673
      %v742 = vunpack.c.l.b16 %v674
      %v743 = vunpack.c.l.b16 %v675
      %v744 = vunpack.c.l.b16 %v676
      %v745 = vunpack.c.l.b16 %v677
      %v746 = vunpack.c.l.b16 %v678
      %v747 = vunpack.c.l.b16 %v679
      %v748 = vunpack.c.l.b16 %v680
      %v749 = vunpack.c.l.b16 %v681
      %v750 = vunpack.c.l.b16 %v682
      %v751 = vunpack.c.l.b16 %v683
      %v752 = vunpack.c.l.b16 %v684
      %v753 = vpack.c.b16 %v722, %v721
      %v754 = vpack.c.b16 %v724, %v723
      %v755 = vpack.c.b16 %v726, %v725
      %v756 = vpack.c.b16 %v728, %v727
      %v757 = vpack.c.b16 %v730, %v729
      %v758 = vpack.c.b16 %v732, %v731
      %v759 = vpack.c.b16 %v734, %v733
      %v760 = vpack.c.b16 %v736, %v735
      %v761 = vpack.c.b16 %v738, %v737
      %v762 = vpack.c.b16 %v740, %v739
      %v763 = vpack.c.b16 %v742, %v741
      %v764 = vpack.c.b16 %v744, %v743
      %v765 = vpack.c.b16 %v746, %v745
      %v766 = vpack.c.b16 %v748, %v747
      %v767 = vpack.c.b16 %v750, %v749
      %v768 = vpack.c.b16 %v752, %v751
      %785 = vmatprep.subr.bf16.mxu0 0
      %786 = vmatpush1.bf16.xpose.msra.mxu0 %v753
      %787 = vmatprep.subr.bf16.mxu0 0
      %788 = vmatpush1.bf16.xpose.msra.mxu0 %v754
      %789 = vmatprep.subr.bf16.mxu0 0
      %790 = vmatpush1.bf16.xpose.msra.mxu0 %v755
      %791 = vmatprep.subr.bf16.mxu0 0
      %792 = vmatpush1.bf16.xpose.msra.mxu0 %v756
      %793 = vmatprep.subr.bf16.mxu0 0
      %794 = vmatpush1.bf16.xpose.msra.mxu0 %v757
      %795 = vmatprep.subr.bf16.mxu0 0
      %796 = vmatpush1.bf16.xpose.msra.mxu0 %v758
      %797 = vmatprep.subr.bf16.mxu0 0
      %798 = vmatpush1.bf16.xpose.msra.mxu0 %v759
      %799 = vmatprep.subr.bf16.mxu0 0
      %800 = vmatpush1.bf16.xpose.msra.mxu0 %v760
      %801 = vmatprep.subr.bf16.mxu0 0
      %802 = vmatpush1.bf16.xpose.msra.mxu0 %v761
      %803 = vmatprep.subr.bf16.mxu0 0
      %804 = vmatpush1.bf16.xpose.msra.mxu0 %v762
      %805 = vmatprep.subr.bf16.mxu0 0
      %806 = vmatpush1.bf16.xpose.msra.mxu0 %v763
      %807 = vmatprep.subr.bf16.mxu0 0
      %808 = vmatpush1.bf16.xpose.msra.mxu0 %v764
      %809 = vmatprep.subr.bf16.mxu0 0
      %810 = vmatpush1.bf16.xpose.msra.mxu0 %v765
      %811 = vmatprep.subr.bf16.mxu0 0
      %812 = vmatpush1.bf16.xpose.msra.mxu0 %v766
      %813 = vmatprep.subr.bf16.mxu0 0
      %814 = vmatpush1.bf16.xpose.msra.mxu0 %v767
      %815 = vmatprep.subr.bf16.mxu0 0
      %816 = vmatpush1.bf16.xpose.msra.mxu0 %v768
      %817 = vmatprep.mubr.bf16.mxu0 0
      %818 = vmatmul.mubr.bf16.gmra.mrb[0].mxu0 %v685
      %v819 = vpop.f32.mrb[0].mxu0
      %v820 = vadd.f32 0.0, %v819
      %v821 = vpop.f32.mrb[0].mxu0
      %v822 = vadd.f32 0.0, %v821
      %v823 = vpop.f32.mrb[0].mxu0
      %v824 = vadd.f32 0.0, %v823
      %v825 = vpop.f32.mrb[0].mxu0
      %v826 = vadd.f32 0.0, %v825
      %827 = vmatprep.mubr.bf16.mxu0 0
      %828 = vmatmul.mubr.bf16.gmra.mrb[0].mxu0 %v686
      %v829 = vpop.f32.mrb[0].mxu0
      %v830 = vadd.f32 0.0, %v829
      %v831 = vpop.f32.mrb[0].mxu0
      %v832 = vadd.f32 0.0, %v831
      %v833 = vpop.f32.mrb[0].mxu0
      %v834 = vadd.f32 0.0, %v833
      %v835 = vpop.f32.mrb[0].mxu0
      %v836 = vadd.f32 0.0, %v835
      %837 = vmatprep.mubr.bf16.mxu0 0
      %838 = vmatmul.mubr.bf16.gmra.mrb[0].mxu0 %v687
      %v839 = vpop.f32.mrb[0].mxu0
      %v840 = vadd.f32 0.0, %v839
      %v841 = vpop.f32.mrb[0].mxu0
      %v842 = vadd.f32 0.0, %v841
      %v843 = vpop.f32.mrb[0].mxu0
      %v844 = vadd.f32 0.0, %v843
      %v845 = vpop.f32.mrb[0].mxu0
      %v846 = vadd.f32 0.0, %v845
      %847 = vmatprep.mubr.bf16.mxu0 0
      %848 = vmatmul.mubr.bf16.gmra.mrb[0].mxu0 %v688
      %v849 = vpop.f32.mrb[0].mxu0
      %v850 = vadd.f32 0.0, %v849
      %v851 = vpop.f32.mrb[0].mxu0
      %v852 = vadd.f32 0.0, %v851
      %v853 = vpop.f32.mrb[0].mxu0
      %v854 = vadd.f32 0.0, %v853
      %v855 = vpop.f32.mrb[0].mxu0
      %v856 = vadd.f32 0.0, %v855
      %857 = vdwg.mxu0
      %v858 = vlaneseq
      %v859 = vand.u32 %v858, 127
      %v860 = vadd.s32 %v859, 128
      %s861 = smul.u32 %s23, 256
      %v862 = vstv %s861
      %v863 = vadd.s32 %v859, %v862
      %v864 = vadd.s32 %v860, %v862
      %vm865 = vcmp.lt.s32.totalorder %v863, 384
      %vm866 = vcmp.lt.s32.totalorder %v864, 384
      %v867 = vsel %vm865, %v820, -inf
      %v868 = vsel %vm866, %v822, -inf
      %v869 = vsel %vm865, %v824, -inf
      %v870 = vsel %vm866, %v826, -inf
      %v871 = vsel %vm865, %v830, -inf
      %v872 = vsel %vm866, %v832, -inf
      %v873 = vsel %vm865, %v834, -inf
      %v874 = vsel %vm866, %v836, -inf
      %v875 = vsel %vm865, %v840, -inf
      %v876 = vsel %vm866, %v842, -inf
      %v877 = vsel %vm865, %v844, -inf
      %v878 = vsel %vm866, %v846, -inf
      %v879 = vsel %vm865, %v850, -inf
      %v880 = vsel %vm866, %v852, -inf
      %v881 = vsel %vm865, %v854, -inf
      %v882 = vsel %vm866, %v856, -inf
      %v883 = vld [vmem:[#allocation3] sm:$0xff]
      %v884 = vld [vmem:[#allocation3 + $0x8] sm:$0xff]
      %v885 = vld [vmem:[#allocation3 + $0x10] sm:$0xff]
      %v886 = vld [vmem:[#allocation3 + $0x18] sm:$0xff]
      %v887 = vld [vmem:[#allocation3 + $0x20] sm:$0xff]
      %v888 = vld [vmem:[#allocation3 + $0x28] sm:$0xff]
      %v889 = vld [vmem:[#allocation3 + $0x30] sm:$0xff]
      %v890 = vld [vmem:[#allocation3 + $0x38] sm:$0xff]
      %v891 = vmax.f32 %v867, %v868
      %892 = vmax.xlane.f32.xlu0 %v891
      %v893 = vpop.xlane.xlu0 %892
      %v894 = vmax.f32 %v869, %v870
      %895 = vmax.xlane.f32.xlu0 %v894
      %v896 = vpop.xlane.xlu0 %895
      %v897 = vmax.f32 %v871, %v872
      %898 = vmax.xlane.f32.xlu0 %v897
      %v899 = vpop.xlane.xlu0 %898
      %v900 = vmax.f32 %v873, %v874
      %901 = vmax.xlane.f32.xlu0 %v900
      %v902 = vpop.xlane.xlu0 %901
      %v903 = vmax.f32 %v875, %v876
      %904 = vmax.xlane.f32.xlu0 %v903
      %v905 = vpop.xlane.xlu0 %904
      %v906 = vmax.f32 %v877, %v878
      %907 = vmax.xlane.f32.xlu0 %v906
      %v908 = vpop.xlane.xlu0 %907
      %v909 = vmax.f32 %v879, %v880
      %910 = vmax.xlane.f32.xlu0 %v909
      %v911 = vpop.xlane.xlu0 %910
      %v912 = vmax.f32 %v881, %v882
      %913 = vmax.xlane.f32.xlu0 %v912
      %v914 = vpop.xlane.xlu0 %913
      %v915 = vmax.f32 %v883, %v893
      %v916 = vmax.f32 %v884, %v896
      %v917 = vmax.f32 %v885, %v899
      %v918 = vmax.f32 %v886, %v902
      %v919 = vmax.f32 %v887, %v905
      %v920 = vmax.f32 %v888, %v908
      %v921 = vmax.f32 %v889, %v911
      %v922 = vmax.f32 %v890, %v914
      %v923 = vsub.f32 %v883, %v915
      %v924 = vsub.f32 %v884, %v916
      %v925 = vsub.f32 %v885, %v917
      %v926 = vsub.f32 %v886, %v918
      %v927 = vsub.f32 %v887, %v919
      %v928 = vsub.f32 %v888, %v920
      %v929 = vsub.f32 %v889, %v921
      %v930 = vsub.f32 %v890, %v922
      %v931 = vmul.f32 %v923, 1.442695
      %v932 = vpow.pop %v931
      %v933 = vmul.f32 %v924, 1.442695
      %v934 = vpow.pop %v933
      %v935 = vmul.f32 %v925, 1.442695
      %v936 = vpow.pop %v935
      %v937 = vmul.f32 %v926, 1.442695
      %v938 = vpow.pop %v937
      %v939 = vmul.f32 %v927, 1.442695
      %v940 = vpow.pop %v939
      %v941 = vmul.f32 %v928, 1.442695
      %v942 = vpow.pop %v941
      %v943 = vmul.f32 %v929, 1.442695
      %v944 = vpow.pop %v943
      %v945 = vmul.f32 %v930, 1.442695
      %v946 = vpow.pop %v945
      %948 = vset.pattern.permute.xlu0 0
      %949 = vperm.xlu0 %948, %v915
      %v950 = vpop.permute.xlu0 %949
      %953 = vset.pattern.permute.xlu0 0
      %954 = vperm.xlu0 %953, %v916
      %v955 = vpop.permute.xlu0 %954
      %958 = vset.pattern.permute.xlu0 0
      %959 = vperm.xlu0 %958, %v917
      %v960 = vpop.permute.xlu0 %959
      %963 = vset.pattern.permute.xlu0 0
      %964 = vperm.xlu0 %963, %v918
      %v965 = vpop.permute.xlu0 %964
      %968 = vset.pattern.permute.xlu0 0
      %969 = vperm.xlu0 %968, %v919
      %v970 = vpop.permute.xlu0 %969
      %973 = vset.pattern.permute.xlu0 0
      %974 = vperm.xlu0 %973, %v920
      %v975 = vpop.permute.xlu0 %974
      %978 = vset.pattern.permute.xlu0 0
      %979 = vperm.xlu0 %978, %v921
      %v980 = vpop.permute.xlu0 %979
      %983 = vset.pattern.permute.xlu0 0
      %984 = vperm.xlu0 %983, %v922
      %v985 = vpop.permute.xlu0 %984
      %v987 = vsub.f32 %v867, %v950
      %v988 = vsub.f32 %v868, %v950
      %v989 = vsub.f32 %v869, %v955
      %v990 = vsub.f32 %v870, %v955
      %v991 = vsub.f32 %v871, %v960
      %v992 = vsub.f32 %v872, %v960
      %v993 = vsub.f32 %v873, %v965
      %v994 = vsub.f32 %v874, %v965
      %v995 = vsub.f32 %v875, %v970
      %v996 = vsub.f32 %v876, %v970
      %v997 = vsub.f32 %v877, %v975
      %v998 = vsub.f32 %v878, %v975
      %v999 = vsub.f32 %v879, %v980
      %v1000 = vsub.f32 %v880, %v980
      %v1001 = vsub.f32 %v881, %v985
      %v1002 = vsub.f32 %v882, %v985
      %v1003 = vmul.f32 %v987, 1.442695
      %v1004 = vpow.pop %v1003
      %v1005 = vmul.f32 %v988, 1.442695
      %v1006 = vpow.pop %v1005
      %v1007 = vmul.f32 %v989, 1.442695
      %v1008 = vpow.pop %v1007
      %v1009 = vmul.f32 %v990, 1.442695
      %v1010 = vpow.pop %v1009
      %v1011 = vmul.f32 %v991, 1.442695
      %v1012 = vpow.pop %v1011
      %v1013 = vmul.f32 %v992, 1.442695
      %v1014 = vpow.pop %v1013
      %v1015 = vmul.f32 %v993, 1.442695
      %v1016 = vpow.pop %v1015
      %v1017 = vmul.f32 %v994, 1.442695
      %v1018 = vpow.pop %v1017
      %v1019 = vmul.f32 %v995, 1.442695
      %v1020 = vpow.pop %v1019
      %v1021 = vmul.f32 %v996, 1.442695
      %v1022 = vpow.pop %v1021
      %v1023 = vmul.f32 %v997, 1.442695
      %v1024 = vpow.pop %v1023
      %v1025 = vmul.f32 %v998, 1.442695
      %v1026 = vpow.pop %v1025
      %v1027 = vmul.f32 %v999, 1.442695
      %v1028 = vpow.pop %v1027
      %v1029 = vmul.f32 %v1000, 1.442695
      %v1030 = vpow.pop %v1029
      %v1031 = vmul.f32 %v1001, 1.442695
      %v1032 = vpow.pop %v1031
      %v1033 = vmul.f32 %v1002, 1.442695
      %v1034 = vpow.pop %v1033
      %v1035 = vld [vmem:[#allocation4] sm:$0xff]
      %v1036 = vld [vmem:[#allocation4 + $0x8] sm:$0xff]
      %v1037 = vld [vmem:[#allocation4 + $0x10] sm:$0xff]
      %v1038 = vld [vmem:[#allocation4 + $0x18] sm:$0xff]
      %v1039 = vld [vmem:[#allocation4 + $0x20] sm:$0xff]
      %v1040 = vld [vmem:[#allocation4 + $0x28] sm:$0xff]
      %v1041 = vld [vmem:[#allocation4 + $0x30] sm:$0xff]
      %v1042 = vld [vmem:[#allocation4 + $0x38] sm:$0xff]
      %v1043 = vmul.f32 %v932, %v1035
      %v1044 = vmul.f32 %v934, %v1036
      %v1045 = vmul.f32 %v936, %v1037
      %v1046 = vmul.f32 %v938, %v1038
      %v1047 = vmul.f32 %v940, %v1039
      %v1048 = vmul.f32 %v942, %v1040
      %v1049 = vmul.f32 %v944, %v1041
      %v1050 = vmul.f32 %v946, %v1042
      %v1051 = vadd.f32 %v1004, %v1006
      %1052 = vadd.xlane.f32.xlu0 %v1051
      %v1053 = vpop.xlane.xlu0 %1052
      %v1054 = vadd.f32 %v1008, %v1010
      %1055 = vadd.xlane.f32.xlu0 %v1054
      %v1056 = vpop.xlane.xlu0 %1055
      %v1057 = vadd.f32 %v1012, %v1014
      %1058 = vadd.xlane.f32.xlu0 %v1057
      %v1059 = vpop.xlane.xlu0 %1058
      %v1060 = vadd.f32 %v1016, %v1018
      %1061 = vadd.xlane.f32.xlu0 %v1060
      %v1062 = vpop.xlane.xlu0 %1061
      %v1063 = vadd.f32 %v1020, %v1022
      %1064 = vadd.xlane.f32.xlu0 %v1063
      %v1065 = vpop.xlane.xlu0 %1064
      %v1066 = vadd.f32 %v1024, %v1026
      %1067 = vadd.xlane.f32.xlu0 %v1066
      %v1068 = vpop.xlane.xlu0 %1067
      %v1069 = vadd.f32 %v1028, %v1030
      %1070 = vadd.xlane.f32.xlu0 %v1069
      %v1071 = vpop.xlane.xlu0 %1070
      %v1072 = vadd.f32 %v1032, %v1034
      %1073 = vadd.xlane.f32.xlu0 %v1072
      %v1074 = vpop.xlane.xlu0 %1073
      %v1075 = vadd.f32 %v1043, %v1053
      %v1076 = vadd.f32 %v1044, %v1056
      %v1077 = vadd.f32 %v1045, %v1059
      %v1078 = vadd.f32 %v1046, %v1062
      %v1079 = vadd.f32 %v1047, %v1065
      %v1080 = vadd.f32 %v1048, %v1068
      %v1081 = vadd.f32 %v1049, %v1071
      %v1082 = vadd.f32 %v1050, %v1074
      %vm1083 = vcmask 7168
      %1084 = vst.msk [vmem:[#allocation4] sm:$0xff] %vm1083, %v1075
      %1085 = vst.msk [vmem:[#allocation4 + $0x8] sm:$0xff] %vm1083, %v1076
      %1086 = vst.msk [vmem:[#allocation4 + $0x10] sm:$0xff] %vm1083, %v1077
      %1087 = vst.msk [vmem:[#allocation4 + $0x18] sm:$0xff] %vm1083, %v1078
      %1088 = vst.msk [vmem:[#allocation4 + $0x20] sm:$0xff] %vm1083, %v1079
      %1089 = vst.msk [vmem:[#allocation4 + $0x28] sm:$0xff] %vm1083, %v1080
      %1090 = vst.msk [vmem:[#allocation4 + $0x30] sm:$0xff] %vm1083, %v1081
      %1091 = vst.msk [vmem:[#allocation4 + $0x38] sm:$0xff] %vm1083, %v1082
      %v1092 = vld [vmem:[#allocation5] sm:$0xff]
      %v1093 = vld [vmem:[#allocation5 + $0x8] sm:$0xff]
      %v1094 = vld [vmem:[#allocation5 + $0x10] sm:$0xff]
      %v1095 = vld [vmem:[#allocation5 + $0x18] sm:$0xff]
      %v1096 = vld [vmem:[#allocation5 + $0x20] sm:$0xff]
      %v1097 = vld [vmem:[#allocation5 + $0x28] sm:$0xff]
      %v1098 = vld [vmem:[#allocation5 + $0x30] sm:$0xff]
      %v1099 = vld [vmem:[#allocation5 + $0x38] sm:$0xff]
      %1101 = vset.pattern.permute.xlu0 0
      %1102 = vperm.xlu0 %1101, %v932
      %v1103 = vpop.permute.xlu0 %1102
      %1106 = vset.pattern.permute.xlu0 0
      %1107 = vperm.xlu0 %1106, %v934
      %v1108 = vpop.permute.xlu0 %1107
      %1111 = vset.pattern.permute.xlu0 0
      %1112 = vperm.xlu0 %1111, %v936
      %v1113 = vpop.permute.xlu0 %1112
      %1116 = vset.pattern.permute.xlu0 0
      %1117 = vperm.xlu0 %1116, %v938
      %v1118 = vpop.permute.xlu0 %1117
      %1121 = vset.pattern.permute.xlu0 0
      %1122 = vperm.xlu0 %1121, %v940
      %v1123 = vpop.permute.xlu0 %1122
      %1126 = vset.pattern.permute.xlu0 0
      %1127 = vperm.xlu0 %1126, %v942
      %v1128 = vpop.permute.xlu0 %1127
      %1131 = vset.pattern.permute.xlu0 0
      %1132 = vperm.xlu0 %1131, %v944
      %v1133 = vpop.permute.xlu0 %1132
      %1136 = vset.pattern.permute.xlu0 0
      %1137 = vperm.xlu0 %1136, %v946
      %v1138 = vpop.permute.xlu0 %1137
      %v1140 = vmul.f32 %v1103, %v1092
      %v1141 = vmul.f32 %v1108, %v1093
      %v1142 = vmul.f32 %v1113, %v1094
      %v1143 = vmul.f32 %v1118, %v1095
      %v1144 = vmul.f32 %v1123, %v1096
      %v1145 = vmul.f32 %v1128, %v1097
      %v1146 = vmul.f32 %v1133, %v1098
      %v1147 = vmul.f32 %v1138, %v1099
      %v1148 = vpack.c.bf16 %v1008, %v1004
      %v1149 = vpack.c.bf16 %v1010, %v1006
      %v1150 = vpack.c.bf16 %v1016, %v1012
      %v1151 = vpack.c.bf16 %v1018, %v1014
      %v1152 = vpack.c.bf16 %v1024, %v1020
      %v1153 = vpack.c.bf16 %v1026, %v1022
      %v1154 = vpack.c.bf16 %v1032, %v1028
      %v1155 = vpack.c.bf16 %v1034, %v1030
      %1156 = vmatprep.subr.bf16.mxu0 0
      %1157 = vmatpush1.bf16.msra.mxu0 %v753
      %1158 = vmatprep.subr.bf16.mxu0 0
      %1159 = vmatpush1.bf16.msra.mxu0 %v754
      %1160 = vmatprep.subr.bf16.mxu0 0
      %1161 = vmatpush1.bf16.msra.mxu0 %v755
      %1162 = vmatprep.subr.bf16.mxu0 0
      %1163 = vmatpush1.bf16.msra.mxu0 %v756
      %1164 = vmatprep.subr.bf16.mxu0 0
      %1165 = vmatpush1.bf16.msra.mxu0 %v757
      %1166 = vmatprep.subr.bf16.mxu0 0
      %1167 = vmatpush1.bf16.msra.mxu0 %v758
      %1168 = vmatprep.subr.bf16.mxu0 0
      %1169 = vmatpush1.bf16.msra.mxu0 %v759
      %1170 = vmatprep.subr.bf16.mxu0 0
      %1171 = vmatpush1.bf16.msra.mxu0 %v760
      %1172 = vmatprep.subr.bf16.mxu0 0
      %1173 = vmatpush1.bf16.msra.mxu0 %v761
      %1174 = vmatprep.subr.bf16.mxu0 0
      %1175 = vmatpush1.bf16.msra.mxu0 %v762
      %1176 = vmatprep.subr.bf16.mxu0 0
      %1177 = vmatpush1.bf16.msra.mxu0 %v763
      %1178 = vmatprep.subr.bf16.mxu0 0
      %1179 = vmatpush1.bf16.msra.mxu0 %v764
      %1180 = vmatprep.subr.bf16.mxu0 0
      %1181 = vmatpush1.bf16.msra.mxu0 %v765
      %1182 = vmatprep.subr.bf16.mxu0 0
      %1183 = vmatpush1.bf16.msra.mxu0 %v766
      %1184 = vmatprep.subr.bf16.mxu0 0
      %1185 = vmatpush1.bf16.msra.mxu0 %v767
      %1186 = vmatprep.subr.bf16.mxu0 0
      %1187 = vmatpush1.bf16.msra.mxu0 %v768
      %1188 = vmatprep.mubr.bf16.mxu0 %v1149
      %1189 = vmatmul.mubr.bf16.gmra.mrb[0].mxu0 %v1148
      %v1190 = vpop.f32.mrb[0].mxu0
      %v1191 = vadd.f32 0.0, %v1190
      %v1192 = vpop.f32.mrb[0].mxu0
      %v1193 = vpop.f32.mrb[0].mxu0
      %v1194 = vadd.f32 0.0, %v1193
      %v1195 = vpop.f32.mrb[0].mxu0
      %1196 = vmatprep.mubr.bf16.mxu0 %v1151
      %1197 = vmatmul.mubr.bf16.gmra.mrb[0].mxu0 %v1150
      %v1198 = vpop.f32.mrb[0].mxu0
      %v1199 = vadd.f32 0.0, %v1198
      %v1200 = vpop.f32.mrb[0].mxu0
      %v1201 = vpop.f32.mrb[0].mxu0
      %v1202 = vadd.f32 0.0, %v1201
      %v1203 = vpop.f32.mrb[0].mxu0
      %1204 = vmatprep.mubr.bf16.mxu0 %v1153
      %1205 = vmatmul.mubr.bf16.gmra.mrb[0].mxu0 %v1152
      %v1206 = vpop.f32.mrb[0].mxu0
      %v1207 = vadd.f32 0.0, %v1206
      %v1208 = vpop.f32.mrb[0].mxu0
      %v1209 = vpop.f32.mrb[0].mxu0
      %v1210 = vadd.f32 0.0, %v1209
      %v1211 = vpop.f32.mrb[0].mxu0
      %1212 = vmatprep.mubr.bf16.mxu0 %v1155
      %1213 = vmatmul.mubr.bf16.gmra.mrb[0].mxu0 %v1154
      %v1214 = vpop.f32.mrb[0].mxu0
      %v1215 = vadd.f32 0.0, %v1214
      %v1216 = vpop.f32.mrb[0].mxu0
      %v1217 = vpop.f32.mrb[0].mxu0
      %v1218 = vadd.f32 0.0, %v1217
      %v1219 = vpop.f32.mrb[0].mxu0
      %1220 = vdwg.mxu0
      %v1221 = vadd.f32 %v1140, %v1191
      %v1222 = vadd.f32 %v1141, %v1194
      %v1223 = vadd.f32 %v1142, %v1199
      %v1224 = vadd.f32 %v1143, %v1202
      %v1225 = vadd.f32 %v1144, %v1207
      %v1226 = vadd.f32 %v1145, %v1210
      %v1227 = vadd.f32 %v1146, %v1215
      %v1228 = vadd.f32 %v1147, %v1218
      %1229 = vst [vmem:[#allocation5] sm:$0xff] %v1221
      %1230 = vst [vmem:[#allocation5 + $0x8] sm:$0xff] %v1222
      %1231 = vst [vmem:[#allocation5 + $0x10] sm:$0xff] %v1223
      %1232 = vst [vmem:[#allocation5 + $0x18] sm:$0xff] %v1224
      %1233 = vst [vmem:[#allocation5 + $0x20] sm:$0xff] %v1225
      %1234 = vst [vmem:[#allocation5 + $0x28] sm:$0xff] %v1226
      %1235 = vst [vmem:[#allocation5 + $0x30] sm:$0xff] %v1227
      %1236 = vst [vmem:[#allocation5 + $0x38] sm:$0xff] %v1228
      %1237 = vst.msk [vmem:[#allocation3] sm:$0xff] %vm1083, %v915
      %1238 = vst.msk [vmem:[#allocation3 + $0x8] sm:$0xff] %vm1083, %v916
      %1239 = vst.msk [vmem:[#allocation3 + $0x10] sm:$0xff] %vm1083, %v917
      %1240 = vst.msk [vmem:[#allocation3 + $0x18] sm:$0xff] %vm1083, %v918
      %1241 = vst.msk [vmem:[#allocation3 + $0x20] sm:$0xff] %vm1083, %v919
      %1242 = vst.msk [vmem:[#allocation3 + $0x28] sm:$0xff] %vm1083, %v920
      %1243 = vst.msk [vmem:[#allocation3 + $0x30] sm:$0xff] %vm1083, %v921
      %1244 = vst.msk [vmem:[#allocation3 + $0x38] sm:$0xff] %vm1083, %v922
      %p1245 = scmp.eq.s32.totalorder %s23, 1
      // Predicated region
      $region53: #{bevformer_v2_forward.4} parent=47 // pred_check
        %p1246 = pneg %p1245
      $region54: #{bevformer_v2_forward.4} parent=47 // pred_check_branch
        %1248 = sbr.rel (%p1246) target = $region56
      $region55: #{bevformer_v2_forward.4} parent=47 // pred_region
        %v1249 = vld [vmem:[%s311] sm:$0xff]
        %v1250 = vld [vmem:[%s311 + $0x8] sm:$0xff]
        %v1251 = vld [vmem:[%s311 + $0x10] sm:$0xff]
        %v1252 = vld [vmem:[%s311 + $0x18] sm:$0xff]
        %v1253 = vld [vmem:[%s311 + $0x20] sm:$0xff]
        %v1254 = vld [vmem:[%s311 + $0x28] sm:$0xff]
        %v1255 = vld [vmem:[%s311 + $0x30] sm:$0xff]
        %v1256 = vld [vmem:[%s311 + $0x38] sm:$0xff]
        %v1257 = vld [vmem:[#allocation4] sm:$0xff]
        %v1258 = vld [vmem:[#allocation4 + $0x8] sm:$0xff]
        %v1259 = vld [vmem:[#allocation4 + $0x10] sm:$0xff]
        %v1260 = vld [vmem:[#allocation4 + $0x18] sm:$0xff]
        %v1261 = vld [vmem:[#allocation4 + $0x20] sm:$0xff]
        %v1262 = vld [vmem:[#allocation4 + $0x28] sm:$0xff]
        %v1263 = vld [vmem:[#allocation4 + $0x30] sm:$0xff]
        %v1264 = vld [vmem:[#allocation4 + $0x38] sm:$0xff]
        %v1265 = vrcp.pop %v1257
        %v1266 = vrcp.pop %v1258
        %v1267 = vrcp.pop %v1259
        %v1268 = vrcp.pop %v1260
        %v1269 = vrcp.pop %v1261
        %v1270 = vrcp.pop %v1262
        %v1271 = vrcp.pop %v1263
        %v1272 = vrcp.pop %v1264
        %v1273 = vld [vmem:[#allocation5] sm:$0xff]
        %v1274 = vld [vmem:[#allocation5 + $0x8] sm:$0xff]
        %v1275 = vld [vmem:[#allocation5 + $0x10] sm:$0xff]
        %v1276 = vld [vmem:[#allocation5 + $0x18] sm:$0xff]
        %v1277 = vld [vmem:[#allocation5 + $0x20] sm:$0xff]
        %v1278 = vld [vmem:[#allocation5 + $0x28] sm:$0xff]
        %v1279 = vld [vmem:[#allocation5 + $0x30] sm:$0xff]
        %v1280 = vld [vmem:[#allocation5 + $0x38] sm:$0xff]
        %v1281 = vpack.c.bf16 %v1274, %v1273
        %v1282 = vpack.c.bf16 %v1276, %v1275
        %v1283 = vpack.c.bf16 %v1278, %v1277
        %v1284 = vpack.c.bf16 %v1280, %v1279
        %s1285 = scalar_lea.vmem %s2, 128
        %v1286 = vld [vmem:[%s1285] sm:$0xf]
        %v1287 = vld [vmem:[%s1285 + $0x4] sm:$0xf]
        %v1288 = vld [vmem:[%s1285 + $0x8] sm:$0xf]
        %v1289 = vld [vmem:[%s1285 + $0xc] sm:$0xf]
        %v1290 = vld [vmem:[%s1285 + $0x10] sm:$0xf]
        %v1291 = vld [vmem:[%s1285 + $0x14] sm:$0xf]
        %v1292 = vld [vmem:[%s1285 + $0x18] sm:$0xf]
        %v1293 = vld [vmem:[%s1285 + $0x1c] sm:$0xf]
        %v1294 = vld [vmem:[%s1285 + $0x20] sm:$0xf]
        %v1295 = vld [vmem:[%s1285 + $0x24] sm:$0xf]
        %v1296 = vld [vmem:[%s1285 + $0x28] sm:$0xf]
        %v1297 = vld [vmem:[%s1285 + $0x2c] sm:$0xf]
        %v1298 = vld [vmem:[%s1285 + $0x30] sm:$0xf]
        %v1299 = vld [vmem:[%s1285 + $0x34] sm:$0xf]
        %v1300 = vld [vmem:[%s1285 + $0x38] sm:$0xf]
        %v1301 = vld [vmem:[%s1285 + $0x3c] sm:$0xf]
        %v1318 = vunpack.c.l.b16 %v1286
        %v1319 = vunpack.c.l.b16 %v1287
        %v1320 = vunpack.c.l.b16 %v1288
        %v1321 = vunpack.c.l.b16 %v1289
        %v1322 = vunpack.c.l.b16 %v1290
        %v1323 = vunpack.c.l.b16 %v1291
        %v1324 = vunpack.c.l.b16 %v1292
        %v1325 = vunpack.c.l.b16 %v1293
        %v1326 = vunpack.c.l.b16 %v1294
        %v1327 = vunpack.c.l.b16 %v1295
        %v1328 = vunpack.c.l.b16 %v1296
        %v1329 = vunpack.c.l.b16 %v1297
        %v1330 = vunpack.c.l.b16 %v1298
        %v1331 = vunpack.c.l.b16 %v1299
        %v1332 = vunpack.c.l.b16 %v1300
        %v1333 = vunpack.c.l.b16 %v1301
        %v1334 = vpack.c.b16 %v1319, %v1318
        %v1335 = vpack.c.b16 %v1321, %v1320
        %v1336 = vpack.c.b16 %v1323, %v1322
        %v1337 = vpack.c.b16 %v1325, %v1324
        %v1338 = vpack.c.b16 %v1327, %v1326
        %v1339 = vpack.c.b16 %v1329, %v1328
        %v1340 = vpack.c.b16 %v1331, %v1330
        %v1341 = vpack.c.b16 %v1333, %v1332
        %1350 = vmatprep.subr.bf16.mxu0 0
        %1351 = vmatpush1.bf16.msra.mxu0 %v1334
        %1352 = vmatprep.subr.bf16.mxu0 0
        %1353 = vmatpush1.bf16.msra.mxu0 %v1335
        %1354 = vmatprep.subr.bf16.mxu0 0
        %1355 = vmatpush1.bf16.msra.mxu0 %v1336
        %1356 = vmatprep.subr.bf16.mxu0 0
        %1357 = vmatpush1.bf16.msra.mxu0 %v1337
        %1358 = vmatprep.subr.bf16.mxu0 0
        %1359 = vmatpush1.bf16.msra.mxu0 %v1338
        %1360 = vmatprep.subr.bf16.mxu0 0
        %1361 = vmatpush1.bf16.msra.mxu0 %v1339
        %1362 = vmatprep.subr.bf16.mxu0 0
        %1363 = vmatpush1.bf16.msra.mxu0 %v1340
        %1364 = vmatprep.subr.bf16.mxu0 0
        %1365 = vmatpush1.bf16.msra.mxu0 %v1341
        %1366 = vmatprep.subr.bf16.mxu0 0
        %1367 = vmatpush1.bf16.msra.mxu0 0
        %1368 = vmatprep.subr.bf16.mxu0 0
        %1369 = vmatpush1.bf16.msra.mxu0 0
        %1370 = vmatprep.subr.bf16.mxu0 0
        %1371 = vmatpush1.bf16.msra.mxu0 0
        %1372 = vmatprep.subr.bf16.mxu0 0
        %1373 = vmatpush1.bf16.msra.mxu0 0
        %1374 = vmatprep.subr.bf16.mxu0 0
        %1375 = vmatpush1.bf16.msra.mxu0 0
        %1376 = vmatprep.subr.bf16.mxu0 0
        %1377 = vmatpush1.bf16.msra.mxu0 0
        %1378 = vmatprep.subr.bf16.mxu0 0
        %1379 = vmatpush1.bf16.msra.mxu0 0
        %1380 = vmatprep.subr.bf16.mxu0 0
        %1381 = vmatpush1.bf16.msra.mxu0 0
        %1382 = vmatprep.mubr.bf16.mxu0 0
        %1383 = vmatmul.mubr.bf16.gmra.mrb[0].mxu0 %v1281
        %v1384 = vpop.f32.mrb[0].mxu0
        %v1385 = vadd.f32 0.0, %v1384
        %v1386 = vpop.f32.mrb[0].mxu0
        %v1387 = vpop.f32.mrb[0].mxu0
        %v1388 = vadd.f32 0.0, %v1387
        %v1389 = vpop.f32.mrb[0].mxu0
        %1390 = vmatprep.mubr.bf16.mxu0 0
        %1391 = vmatmul.mubr.bf16.gmra.mrb[0].mxu0 %v1282
        %v1392 = vpop.f32.mrb[0].mxu0
        %v1393 = vadd.f32 0.0, %v1392
        %v1394 = vpop.f32.mrb[0].mxu0
        %v1395 = vpop.f32.mrb[0].mxu0
        %v1396 = vadd.f32 0.0, %v1395
        %v1397 = vpop.f32.mrb[0].mxu0
        %1398 = vmatprep.mubr.bf16.mxu0 0
        %1399 = vmatmul.mubr.bf16.gmra.mrb[0].mxu0 %v1283
        %v1400 = vpop.f32.mrb[0].mxu0
        %v1401 = vadd.f32 0.0, %v1400
        %v1402 = vpop.f32.mrb[0].mxu0
        %v1403 = vpop.f32.mrb[0].mxu0
        %v1404 = vadd.f32 0.0, %v1403
        %v1405 = vpop.f32.mrb[0].mxu0
        %1406 = vmatprep.mubr.bf16.mxu0 0
        %1407 = vmatmul.mubr.bf16.gmra.mrb[0].mxu0 %v1284
        %v1408 = vpop.f32.mrb[0].mxu0
        %v1409 = vadd.f32 0.0, %v1408
        %v1410 = vpop.f32.mrb[0].mxu0
        %v1411 = vpop.f32.mrb[0].mxu0
        %v1412 = vadd.f32 0.0, %v1411
        %v1413 = vpop.f32.mrb[0].mxu0
        %1414 = vdwg.mxu0
        %1416 = vset.pattern.permute.xlu0 0
        %1417 = vperm.xlu0 %1416, %v1265
        %v1418 = vpop.permute.xlu0 %1417
        %1421 = vset.pattern.permute.xlu0 0
        %1422 = vperm.xlu0 %1421, %v1266
        %v1423 = vpop.permute.xlu0 %1422
        %1426 = vset.pattern.permute.xlu0 0
        %1427 = vperm.xlu0 %1426, %v1267
        %v1428 = vpop.permute.xlu0 %1427
        %1431 = vset.pattern.permute.xlu0 0
        %1432 = vperm.xlu0 %1431, %v1268
        %v1433 = vpop.permute.xlu0 %1432
        %1436 = vset.pattern.permute.xlu0 0
        %1437 = vperm.xlu0 %1436, %v1269
        %v1438 = vpop.permute.xlu0 %1437
        %1441 = vset.pattern.permute.xlu0 0
        %1442 = vperm.xlu0 %1441, %v1270
        %v1443 = vpop.permute.xlu0 %1442
        %1446 = vset.pattern.permute.xlu0 0
        %1447 = vperm.xlu0 %1446, %v1271
        %v1448 = vpop.permute.xlu0 %1447
        %1451 = vset.pattern.permute.xlu0 0
        %1452 = vperm.xlu0 %1451, %v1272
        %v1453 = vpop.permute.xlu0 %1452
        %v1455 = vmul.f32 %v1385, %v1418
        %v1456 = vmul.f32 %v1388, %v1423
        %v1457 = vmul.f32 %v1393, %v1428
        %v1458 = vmul.f32 %v1396, %v1433
        %v1459 = vmul.f32 %v1401, %v1438
        %v1460 = vmul.f32 %v1404, %v1443
        %v1461 = vmul.f32 %v1409, %v1448
        %v1462 = vmul.f32 %v1412, %v1453
        %v1463 = vld [vmem:[%s3 + $0x1] sm:$0x1]
        %v1464 = vlaneseq
        %v1465 = vshrl.u32 %v1464, 7
        %v1466 = vsub.s32 0, %v1465
        %v1467 = vrot.slane %v1463, %v1466
        %v1468 = vadd.f32 %v1455, %v1467
        %v1469 = vadd.f32 %v1456, %v1467
        %v1470 = vadd.f32 %v1457, %v1467
        %v1471 = vadd.f32 %v1458, %v1467
        %v1472 = vadd.f32 %v1459, %v1467
        %v1473 = vadd.f32 %v1460, %v1467
        %v1474 = vadd.f32 %v1461, %v1467
        %v1475 = vadd.f32 %v1462, %v1467
        %v1476 = vpack.c.bf16 %v1469, %v1468
        %v1477 = vpack.c.bf16 %v1471, %v1470
        %v1478 = vpack.c.bf16 %v1473, %v1472
        %v1479 = vpack.c.bf16 %v1475, %v1474
        %s1480 = scalar_lea.vmem %s2, 192
        %v1481 = vld [vmem:[%s1480] sm:$0xf]
        %v1482 = vld [vmem:[%s1480 + $0x4] sm:$0xf]
        %v1483 = vld [vmem:[%s1480 + $0x8] sm:$0xf]
        %v1484 = vld [vmem:[%s1480 + $0xc] sm:$0xf]
        %v1485 = vld [vmem:[%s1480 + $0x10] sm:$0xf]
        %v1486 = vld [vmem:[%s1480 + $0x14] sm:$0xf]
        %v1487 = vld [vmem:[%s1480 + $0x18] sm:$0xf]
        %v1488 = vld [vmem:[%s1480 + $0x1c] sm:$0xf]
        %v1489 = vld [vmem:[%s1480 + $0x20] sm:$0xf]
        %v1490 = vld [vmem:[%s1480 + $0x24] sm:$0xf]
        %v1491 = vld [vmem:[%s1480 + $0x28] sm:$0xf]
        %v1492 = vld [vmem:[%s1480 + $0x2c] sm:$0xf]
        %v1493 = vld [vmem:[%s1480 + $0x30] sm:$0xf]
        %v1494 = vld [vmem:[%s1480 + $0x34] sm:$0xf]
        %v1495 = vld [vmem:[%s1480 + $0x38] sm:$0xf]
        %v1496 = vld [vmem:[%s1480 + $0x3c] sm:$0xf]
        %v1497 = vld [vmem:[%s3 + $0x2] sm:$0x1]
        %v1498 = vlaneseq
        %v1499 = vshrl.u32 %v1498, 7
        %v1500 = vsub.s32 0, %v1499
        %v1501 = vrot.slane %v1497, %v1500
        %v1518 = vunpack.c.l.b16 %v1481
        %v1519 = vunpack.c.l.b16 %v1482
        %v1520 = vunpack.c.l.b16 %v1483
        %v1521 = vunpack.c.l.b16 %v1484
        %v1522 = vunpack.c.l.b16 %v1485
        %v1523 = vunpack.c.l.b16 %v1486
        %v1524 = vunpack.c.l.b16 %v1487
        %v1525 = vunpack.c.l.b16 %v1488
        %v1526 = vunpack.c.l.b16 %v1489
        %v1527 = vunpack.c.l.b16 %v1490
        %v1528 = vunpack.c.l.b16 %v1491
        %v1529 = vunpack.c.l.b16 %v1492
        %v1530 = vunpack.c.l.b16 %v1493
        %v1531 = vunpack.c.l.b16 %v1494
        %v1532 = vunpack.c.l.b16 %v1495
        %v1533 = vunpack.c.l.b16 %v1496
        %v1534 = vpack.c.b16 %v1519, %v1518
        %v1535 = vpack.c.b16 %v1521, %v1520
        %v1536 = vpack.c.b16 %v1523, %v1522
        %v1537 = vpack.c.b16 %v1525, %v1524
        %v1538 = vpack.c.b16 %v1527, %v1526
        %v1539 = vpack.c.b16 %v1529, %v1528
        %v1540 = vpack.c.b16 %v1531, %v1530
        %v1541 = vpack.c.b16 %v1533, %v1532
        %1550 = vmatprep.subr.bf16.mxu0 0
        %1551 = vmatpush1.bf16.msra.mxu0 %v1534
        %1552 = vmatprep.subr.bf16.mxu0 0
        %1553 = vmatpush1.bf16.msra.mxu0 %v1535
        %1554 = vmatprep.subr.bf16.mxu0 0
        %1555 = vmatpush1.bf16.msra.mxu0 %v1536
        %1556 = vmatprep.subr.bf16.mxu0 0
        %1557 = vmatpush1.bf16.msra.mxu0 %v1537
        %1558 = vmatprep.subr.bf16.mxu0 0
        %1559 = vmatpush1.bf16.msra.mxu0 %v1538
        %1560 = vmatprep.subr.bf16.mxu0 0
        %1561 = vmatpush1.bf16.msra.mxu0 %v1539
        %1562 = vmatprep.subr.bf16.mxu0 0
        %1563 = vmatpush1.bf16.msra.mxu0 %v1540
        %1564 = vmatprep.subr.bf16.mxu0 0
        %1565 = vmatpush1.bf16.msra.mxu0 %v1541
        %1566 = vmatprep.subr.bf16.mxu0 0
        %1567 = vmatpush1.bf16.msra.mxu0 0
        %1568 = vmatprep.subr.bf16.mxu0 0
        %1569 = vmatpush1.bf16.msra.mxu0 0
        %1570 = vmatprep.subr.bf16.mxu0 0
        %1571 = vmatpush1.bf16.msra.mxu0 0
        %1572 = vmatprep.subr.bf16.mxu0 0
        %1573 = vmatpush1.bf16.msra.mxu0 0
        %1574 = vmatprep.subr.bf16.mxu0 0
        %1575 = vmatpush1.bf16.msra.mxu0 0
        %1576 = vmatprep.subr.bf16.mxu0 0
        %1577 = vmatpush1.bf16.msra.mxu0 0
        %1578 = vmatprep.subr.bf16.mxu0 0
        %1579 = vmatpush1.bf16.msra.mxu0 0
        %1580 = vmatprep.subr.bf16.mxu0 0
        %1581 = vmatpush1.bf16.msra.mxu0 0
        %1582 = vmatprep.mubr.bf16.mxu0 0
        %1583 = vmatmul.mubr.bf16.gmra.mrb[0].mxu0 %v1476
        %v1584 = vpop.f32.mrb[0].mxu0
        %v1585 = vadd.f32 %v1501, %v1584
        %v1586 = vpop.f32.mrb[0].mxu0
        %v1587 = vpop.f32.mrb[0].mxu0
        %v1588 = vadd.f32 %v1501, %v1587
        %v1589 = vpop.f32.mrb[0].mxu0
        %1590 = vmatprep.mubr.bf16.mxu0 0
        %1591 = vmatmul.mubr.bf16.gmra.mrb[0].mxu0 %v1477
        %v1592 = vpop.f32.mrb[0].mxu0
        %v1593 = vadd.f32 %v1501, %v1592
        %v1594 = vpop.f32.mrb[0].mxu0
        %v1595 = vpop.f32.mrb[0].mxu0
        %v1596 = vadd.f32 %v1501, %v1595
        %v1597 = vpop.f32.mrb[0].mxu0
        %1598 = vmatprep.mubr.bf16.mxu0 0
        %1599 = vmatmul.mubr.bf16.gmra.mrb[0].mxu0 %v1478
        %v1600 = vpop.f32.mrb[0].mxu0
        %v1601 = vadd.f32 %v1501, %v1600
        %v1602 = vpop.f32.mrb[0].mxu0
        %v1603 = vpop.f32.mrb[0].mxu0
        %v1604 = vadd.f32 %v1501, %v1603
        %v1605 = vpop.f32.mrb[0].mxu0
        %1606 = vmatprep.mubr.bf16.mxu0 0
        %1607 = vmatmul.mubr.bf16.gmra.mrb[0].mxu0 %v1479
        %v1608 = vpop.f32.mrb[0].mxu0
        %v1609 = vadd.f32 %v1501, %v1608
        %v1610 = vpop.f32.mrb[0].mxu0
        %v1611 = vpop.f32.mrb[0].mxu0
        %v1612 = vadd.f32 %v1501, %v1611
        %v1613 = vpop.f32.mrb[0].mxu0
        %1614 = vdwg.mxu0
        %v1615 = vadd.f32 %v1585, %v1249
        %v1616 = vadd.f32 %v1588, %v1250
        %v1617 = vadd.f32 %v1593, %v1251
        %v1618 = vadd.f32 %v1596, %v1252
        %v1619 = vadd.f32 %v1601, %v1253
        %v1620 = vadd.f32 %v1604, %v1254
        %v1621 = vadd.f32 %v1609, %v1255
        %v1622 = vadd.f32 %v1612, %v1256
        %1623 = vadd.xlane.f32.xlu0 %v1615
        %v1624 = vpop.xlane.xlu0 %1623
        %1625 = vadd.xlane.f32.xlu0 %v1616
        %v1626 = vpop.xlane.xlu0 %1625
        %1627 = vadd.xlane.f32.xlu0 %v1617
        %v1628 = vpop.xlane.xlu0 %1627
        %1629 = vadd.xlane.f32.xlu0 %v1618
        %v1630 = vpop.xlane.xlu0 %1629
        %1631 = vadd.xlane.f32.xlu0 %v1619
        %v1632 = vpop.xlane.xlu0 %1631
        %1633 = vadd.xlane.f32.xlu0 %v1620
        %v1634 = vpop.xlane.xlu0 %1633
        %1635 = vadd.xlane.f32.xlu0 %v1621
        %v1636 = vpop.xlane.xlu0 %1635
        %1637 = vadd.xlane.f32.xlu0 %v1622
        %v1638 = vpop.xlane.xlu0 %1637
        %v1639 = vrcp.pop 128.0
        %v1640 = vmul.f32 %v1624, %v1639
        %v1641 = vmul.f32 %v1626, %v1639
        %v1642 = vmul.f32 %v1628, %v1639
        %v1643 = vmul.f32 %v1630, %v1639
        %v1644 = vmul.f32 %v1632, %v1639
        %v1645 = vmul.f32 %v1634, %v1639
        %v1646 = vmul.f32 %v1636, %v1639
        %v1647 = vmul.f32 %v1638, %v1639
        %v1648 = vsub.f32 %v1615, %v1640
        %v1649 = vsub.f32 %v1616, %v1641
        %v1650 = vsub.f32 %v1617, %v1642
        %v1651 = vsub.f32 %v1618, %v1643
        %v1652 = vsub.f32 %v1619, %v1644
        %v1653 = vsub.f32 %v1620, %v1645
        %v1654 = vsub.f32 %v1621, %v1646
        %v1655 = vsub.f32 %v1622, %v1647
        %v1656 = vmul.f32 %v1648, %v1648
        %v1657 = vmul.f32 %v1649, %v1649
        %v1658 = vmul.f32 %v1650, %v1650
        %v1659 = vmul.f32 %v1651, %v1651
        %v1660 = vmul.f32 %v1652, %v1652
        %v1661 = vmul.f32 %v1653, %v1653
        %v1662 = vmul.f32 %v1654, %v1654
        %v1663 = vmul.f32 %v1655, %v1655
        %1664 = vadd.xlane.f32.xlu0 %v1656
        %v1665 = vpop.xlane.xlu0 %1664
        %1666 = vadd.xlane.f32.xlu0 %v1657
        %v1667 = vpop.xlane.xlu0 %1666
        %1668 = vadd.xlane.f32.xlu0 %v1658
        %v1669 = vpop.xlane.xlu0 %1668
        %1670 = vadd.xlane.f32.xlu0 %v1659
        %v1671 = vpop.xlane.xlu0 %1670
        %1672 = vadd.xlane.f32.xlu0 %v1660
        %v1673 = vpop.xlane.xlu0 %1672
        %1674 = vadd.xlane.f32.xlu0 %v1661
        %v1675 = vpop.xlane.xlu0 %1674
        %1676 = vadd.xlane.f32.xlu0 %v1662
        %v1677 = vpop.xlane.xlu0 %1676
        %1678 = vadd.xlane.f32.xlu0 %v1663
        %v1679 = vpop.xlane.xlu0 %1678
        %v1680 = vmul.f32 %v1665, %v1639
        %v1681 = vmul.f32 %v1667, %v1639
        %v1682 = vmul.f32 %v1669, %v1639
        %v1683 = vmul.f32 %v1671, %v1639
        %v1684 = vmul.f32 %v1673, %v1639
        %v1685 = vmul.f32 %v1675, %v1639
        %v1686 = vmul.f32 %v1677, %v1639
        %v1687 = vmul.f32 %v1679, %v1639
        %v1688 = vadd.f32 %v1680, 1e-05
        %v1689 = vadd.f32 %v1681, 1e-05
        %v1690 = vadd.f32 %v1682, 1e-05
        %v1691 = vadd.f32 %v1683, 1e-05
        %v1692 = vadd.f32 %v1684, 1e-05
        %v1693 = vadd.f32 %v1685, 1e-05
        %v1694 = vadd.f32 %v1686, 1e-05
        %v1695 = vadd.f32 %v1687, 1e-05
        %v1696 = vrsqrt.pop %v1688
        %v1697 = vrsqrt.pop %v1689
        %v1698 = vrsqrt.pop %v1690
        %v1699 = vrsqrt.pop %v1691
        %v1700 = vrsqrt.pop %v1692
        %v1701 = vrsqrt.pop %v1693
        %v1702 = vrsqrt.pop %v1694
        %v1703 = vrsqrt.pop %v1695
        %v1704 = vmul.f32 %v1648, %v1696
        %v1705 = vmul.f32 %v1649, %v1697
        %v1706 = vmul.f32 %v1650, %v1698
        %v1707 = vmul.f32 %v1651, %v1699
        %v1708 = vmul.f32 %v1652, %v1700
        %v1709 = vmul.f32 %v1653, %v1701
        %v1710 = vmul.f32 %v1654, %v1702
        %v1711 = vmul.f32 %v1655, %v1703
        %v1712 = vld [vmem:[%s3 + $0x3] sm:$0x1]
        %v1713 = vlaneseq
        %v1714 = vshrl.u32 %v1713, 7
        %v1715 = vsub.s32 0, %v1714
        %v1716 = vrot.slane %v1712, %v1715
        %v1717 = vmul.f32 %v1704, %v1716
        %v1718 = vmul.f32 %v1705, %v1716
        %v1719 = vmul.f32 %v1706, %v1716
        %v1720 = vmul.f32 %v1707, %v1716
        %v1721 = vmul.f32 %v1708, %v1716
        %v1722 = vmul.f32 %v1709, %v1716
        %v1723 = vmul.f32 %v1710, %v1716
        %v1724 = vmul.f32 %v1711, %v1716
        %v1725 = vld [vmem:[%s3 + $0x4] sm:$0x1]
        %v1726 = vlaneseq
        %v1727 = vshrl.u32 %v1726, 7
        %v1728 = vsub.s32 0, %v1727
        %v1729 = vrot.slane %v1725, %v1728
        %v1730 = vadd.f32 %v1717, %v1729
        %v1731 = vadd.f32 %v1718, %v1729
        %v1732 = vadd.f32 %v1719, %v1729
        %v1733 = vadd.f32 %v1720, %v1729
        %v1734 = vadd.f32 %v1721, %v1729
        %v1735 = vadd.f32 %v1722, %v1729
        %v1736 = vadd.f32 %v1723, %v1729
        %v1737 = vadd.f32 %v1724, %v1729
        %v1738 = vpack.c.bf16 %v1731, %v1730
        %v1739 = vpack.c.bf16 %v1733, %v1732
        %v1740 = vpack.c.bf16 %v1735, %v1734
        %v1741 = vpack.c.bf16 %v1737, %v1736
        %v1742 = vld [vmem:[%s4] sm:$0xff]
        %v1743 = vld [vmem:[%s4 + $0x8] sm:$0xff]
        %v1744 = vld [vmem:[%s4 + $0x10] sm:$0xff]
        %v1745 = vld [vmem:[%s4 + $0x18] sm:$0xff]
        %v1746 = vld [vmem:[%s4 + $0x20] sm:$0xff]
        %v1747 = vld [vmem:[%s4 + $0x28] sm:$0xff]
        %v1748 = vld [vmem:[%s4 + $0x30] sm:$0xff]
        %v1749 = vld [vmem:[%s4 + $0x38] sm:$0xff]
        %v1750 = vld [vmem:[%s4 + $0x40] sm:$0xff]
        %v1751 = vld [vmem:[%s4 + $0x48] sm:$0xff]
        %v1752 = vld [vmem:[%s4 + $0x50] sm:$0xff]
        %v1753 = vld [vmem:[%s4 + $0x58] sm:$0xff]
        %v1754 = vld [vmem:[%s4 + $0x60] sm:$0xff]
        %v1755 = vld [vmem:[%s4 + $0x68] sm:$0xff]
        %v1756 = vld [vmem:[%s4 + $0x70] sm:$0xff]
        %v1757 = vld [vmem:[%s4 + $0x78] sm:$0xff]
        %v1758 = vld [vmem:[%s5] sm:$0x3]
        %v1760 = vlaneseq
        %v1761 = vshrl.u32 %v1760, 7
        %v1762 = vsub.s32 0, %v1761
        %v1763 = vrot.slane %v1758, %v1762
        %v1764 = vlaneseq
        %v1765 = vshrl.u32 %v1764, 7
        %v1766 = vsub.s32 1, %v1765
        %v1767 = vrot.slane %v1758, %v1766
        %v1786 = vunpack.c.l.b16 %v1742
        %v1787 = vunpack.c.h.b16 %v1742
        %v1788 = vunpack.c.l.b16 %v1743
        %v1789 = vunpack.c.h.b16 %v1743
        %v1790 = vunpack.c.l.b16 %v1744
        %v1791 = vunpack.c.h.b16 %v1744
        %v1792 = vunpack.c.l.b16 %v1745
        %v1793 = vunpack.c.h.b16 %v1745
        %v1794 = vunpack.c.l.b16 %v1746
        %v1795 = vunpack.c.h.b16 %v1746
        %v1796 = vunpack.c.l.b16 %v1747
        %v1797 = vunpack.c.h.b16 %v1747
        %v1798 = vunpack.c.l.b16 %v1748
        %v1799 = vunpack.c.h.b16 %v1748
        %v1800 = vunpack.c.l.b16 %v1749
        %v1801 = vunpack.c.h.b16 %v1749
        %v1802 = vunpack.c.l.b16 %v1750
        %v1803 = vunpack.c.h.b16 %v1750
        %v1804 = vunpack.c.l.b16 %v1751
        %v1805 = vunpack.c.h.b16 %v1751
        %v1806 = vunpack.c.l.b16 %v1752
        %v1807 = vunpack.c.h.b16 %v1752
        %v1808 = vunpack.c.l.b16 %v1753
        %v1809 = vunpack.c.h.b16 %v1753
        %v1810 = vunpack.c.l.b16 %v1754
        %v1811 = vunpack.c.h.b16 %v1754
        %v1812 = vunpack.c.l.b16 %v1755
        %v1813 = vunpack.c.h.b16 %v1755
        %v1814 = vunpack.c.l.b16 %v1756
        %v1815 = vunpack.c.h.b16 %v1756
        %v1816 = vunpack.c.l.b16 %v1757
        %v1817 = vunpack.c.h.b16 %v1757
        %v1818 = vpack.c.b16 %v1788, %v1786
        %v1819 = vpack.c.b16 %v1789, %v1787
        %v1820 = vpack.c.b16 %v1792, %v1790
        %v1821 = vpack.c.b16 %v1793, %v1791
        %v1822 = vpack.c.b16 %v1796, %v1794
        %v1823 = vpack.c.b16 %v1797, %v1795
        %v1824 = vpack.c.b16 %v1800, %v1798
        %v1825 = vpack.c.b16 %v1801, %v1799
        %v1826 = vpack.c.b16 %v1804, %v1802
        %v1827 = vpack.c.b16 %v1805, %v1803
        %v1828 = vpack.c.b16 %v1808, %v1806
        %v1829 = vpack.c.b16 %v1809, %v1807
        %v1830 = vpack.c.b16 %v1812, %v1810
        %v1831 = vpack.c.b16 %v1813, %v1811
        %v1832 = vpack.c.b16 %v1816, %v1814
        %v1833 = vpack.c.b16 %v1817, %v1815
        %1850 = vmatprep.subr.bf16.mxu0 %v1819
        %1851 = vmatpush1.bf16.msra.mxu0 %v1818
        %1852 = vmatprep.subr.bf16.mxu0 %v1821
        %1853 = vmatpush1.bf16.msra.mxu0 %v1820
        %1854 = vmatprep.subr.bf16.mxu0 %v1823
        %1855 = vmatpush1.bf16.msra.mxu0 %v1822
        %1856 = vmatprep.subr.bf16.mxu0 %v1825
        %1857 = vmatpush1.bf16.msra.mxu0 %v1824
        %1858 = vmatprep.subr.bf16.mxu0 %v1827
        %1859 = vmatpush1.bf16.msra.mxu0 %v1826
        %1860 = vmatprep.subr.bf16.mxu0 %v1829
        %1861 = vmatpush1.bf16.msra.mxu0 %v1828
        %1862 = vmatprep.subr.bf16.mxu0 %v1831
        %1863 = vmatpush1.bf16.msra.mxu0 %v1830
        %1864 = vmatprep.subr.bf16.mxu0 %v1833
        %1865 = vmatpush1.bf16.msra.mxu0 %v1832
        %1866 = vmatprep.subr.bf16.mxu0 0
        %1867 = vmatpush1.bf16.msra.mxu0 0
        %1868 = vmatprep.subr.bf16.mxu0 0
        %1869 = vmatpush1.bf16.msra.mxu0 0
        %1870 = vmatprep.subr.bf16.mxu0 0
        %1871 = vmatpush1.bf16.msra.mxu0 0
        %1872 = vmatprep.subr.bf16.mxu0 0
        %1873 = vmatpush1.bf16.msra.mxu0 0
        %1874 = vmatprep.subr.bf16.mxu0 0
        %1875 = vmatpush1.bf16.msra.mxu0 0
        %1876 = vmatprep.subr.bf16.mxu0 0
        %1877 = vmatpush1.bf16.msra.mxu0 0
        %1878 = vmatprep.subr.bf16.mxu0 0
        %1879 = vmatpush1.bf16.msra.mxu0 0
        %1880 = vmatprep.subr.bf16.mxu0 0
        %1881 = vmatpush1.bf16.msra.mxu0 0
        %1882 = vmatprep.mubr.bf16.mxu0 0
        %1883 = vmatmul.mubr.bf16.gmra.mrb[0].mxu0 %v1738
        %v1884 = vpop.f32.mrb[0].mxu0
        %v1885 = vadd.f32 %v1763, %v1884
        %v1886 = vpop.f32.mrb[0].mxu0
        %v1887 = vadd.f32 %v1767, %v1886
        %v1888 = vpop.f32.mrb[0].mxu0
        %v1889 = vadd.f32 %v1763, %v1888
        %v1890 = vpop.f32.mrb[0].mxu0
        %v1891 = vadd.f32 %v1767, %v1890
        %1892 = vmatprep.mubr.bf16.mxu0 0
        %1893 = vmatmul.mubr.bf16.gmra.mrb[0].mxu0 %v1739
        %v1894 = vpop.f32.mrb[0].mxu0
        %v1895 = vadd.f32 %v1763, %v1894
        %v1896 = vpop.f32.mrb[0].mxu0
        %v1897 = vadd.f32 %v1767, %v1896
        %v1898 = vpop.f32.mrb[0].mxu0
        %v1899 = vadd.f32 %v1763, %v1898
        %v1900 = vpop.f32.mrb[0].mxu0
        %v1901 = vadd.f32 %v1767, %v1900
        %1902 = vmatprep.mubr.bf16.mxu0 0
        %1903 = vmatmul.mubr.bf16.gmra.mrb[0].mxu0 %v1740
        %v1904 = vpop.f32.mrb[0].mxu0
        %v1905 = vadd.f32 %v1763, %v1904
        %v1906 = vpop.f32.mrb[0].mxu0
        %v1907 = vadd.f32 %v1767, %v1906
        %v1908 = vpop.f32.mrb[0].mxu0
        %v1909 = vadd.f32 %v1763, %v1908
        %v1910 = vpop.f32.mrb[0].mxu0
        %v1911 = vadd.f32 %v1767, %v1910
        %1912 = vmatprep.mubr.bf16.mxu0 0
        %1913 = vmatmul.mubr.bf16.gmra.mrb[0].mxu0 %v1741
        %v1914 = vpop.f32.mrb[0].mxu0
        %v1915 = vadd.f32 %v1763, %v1914
        %v1916 = vpop.f32.mrb[0].mxu0
        %v1917 = vadd.f32 %v1767, %v1916
        %v1918 = vpop.f32.mrb[0].mxu0
        %v1919 = vadd.f32 %v1763, %v1918
        %v1920 = vpop.f32.mrb[0].mxu0
        %v1921 = vadd.f32 %v1767, %v1920
        %1922 = vdwg.mxu0
        %v1923 = vmax.f32 %v1885, 0.0
        %v1924 = vmax.f32 %v1887, 0.0
        %v1925 = vmax.f32 %v1889, 0.0
        %v1926 = vmax.f32 %v1891, 0.0
        %v1927 = vmax.f32 %v1895, 0.0
        %v1928 = vmax.f32 %v1897, 0.0
        %v1929 = vmax.f32 %v1899, 0.0
        %v1930 = vmax.f32 %v1901, 0.0
        %v1931 = vmax.f32 %v1905, 0.0
        %v1932 = vmax.f32 %v1907, 0.0
        %v1933 = vmax.f32 %v1909, 0.0
        %v1934 = vmax.f32 %v1911, 0.0
        %v1935 = vmax.f32 %v1915, 0.0
        %v1936 = vmax.f32 %v1917, 0.0
        %v1937 = vmax.f32 %v1919, 0.0
        %v1938 = vmax.f32 %v1921, 0.0
        %v1939 = vpack.c.bf16 %v1925, %v1923
        %v1940 = vpack.c.bf16 %v1926, %v1924
        %v1941 = vpack.c.bf16 %v1929, %v1927
        %v1942 = vpack.c.bf16 %v1930, %v1928
        %v1943 = vpack.c.bf16 %v1933, %v1931
        %v1944 = vpack.c.bf16 %v1934, %v1932
        %v1945 = vpack.c.bf16 %v1937, %v1935
        %v1946 = vpack.c.bf16 %v1938, %v1936
        %v1947 = vld [vmem:[%s6] sm:$0xf]
        %v1948 = vld [vmem:[%s6 + $0x4] sm:$0xf]
        %v1949 = vld [vmem:[%s6 + $0x8] sm:$0xf]
        %v1950 = vld [vmem:[%s6 + $0xc] sm:$0xf]
        %v1951 = vld [vmem:[%s6 + $0x10] sm:$0xf]
        %v1952 = vld [vmem:[%s6 + $0x14] sm:$0xf]
        %v1953 = vld [vmem:[%s6 + $0x18] sm:$0xf]
        %v1954 = vld [vmem:[%s6 + $0x1c] sm:$0xf]
        %v1955 = vld [vmem:[%s6 + $0x20] sm:$0xf]
        %v1956 = vld [vmem:[%s6 + $0x24] sm:$0xf]
        %v1957 = vld [vmem:[%s6 + $0x28] sm:$0xf]
        %v1958 = vld [vmem:[%s6 + $0x2c] sm:$0xf]
        %v1959 = vld [vmem:[%s6 + $0x30] sm:$0xf]
        %v1960 = vld [vmem:[%s6 + $0x34] sm:$0xf]
        %v1961 = vld [vmem:[%s6 + $0x38] sm:$0xf]
        %v1962 = vld [vmem:[%s6 + $0x3c] sm:$0xf]
        %v1963 = vld [vmem:[%s6 + $0x40] sm:$0xf]
        %v1964 = vld [vmem:[%s6 + $0x44] sm:$0xf]
        %v1965 = vld [vmem:[%s6 + $0x48] sm:$0xf]
        %v1966 = vld [vmem:[%s6 + $0x4c] sm:$0xf]
        %v1967 = vld [vmem:[%s6 + $0x50] sm:$0xf]
        %v1968 = vld [vmem:[%s6 + $0x54] sm:$0xf]
        %v1969 = vld [vmem:[%s6 + $0x58] sm:$0xf]
        %v1970 = vld [vmem:[%s6 + $0x5c] sm:$0xf]
        %v1971 = vld [vmem:[%s6 + $0x60] sm:$0xf]
        %v1972 = vld [vmem:[%s6 + $0x64] sm:$0xf]
        %v1973 = vld [vmem:[%s6 + $0x68] sm:$0xf]
        %v1974 = vld [vmem:[%s6 + $0x6c] sm:$0xf]
        %v1975 = vld [vmem:[%s6 + $0x70] sm:$0xf]
        %v1976 = vld [vmem:[%s6 + $0x74] sm:$0xf]
        %v1977 = vld [vmem:[%s6 + $0x78] sm:$0xf]
        %v1978 = vld [vmem:[%s6 + $0x7c] sm:$0xf]
        %v1979 = vld [vmem:[%s3 + $0x5] sm:$0x1]
        %v1980 = vlaneseq
        %v1981 = vshrl.u32 %v1980, 7
        %v1982 = vsub.s32 0, %v1981
        %v1983 = vrot.slane %v1979, %v1982
        %v2016 = vunpack.c.l.b16 %v1947
        %v2017 = vunpack.c.l.b16 %v1948
        %v2018 = vunpack.c.l.b16 %v1949
        %v2019 = vunpack.c.l.b16 %v1950
        %v2020 = vunpack.c.l.b16 %v1951
        %v2021 = vunpack.c.l.b16 %v1952
        %v2022 = vunpack.c.l.b16 %v1953
        %v2023 = vunpack.c.l.b16 %v1954
        %v2024 = vunpack.c.l.b16 %v1955
        %v2025 = vunpack.c.l.b16 %v1956
        %v2026 = vunpack.c.l.b16 %v1957
        %v2027 = vunpack.c.l.b16 %v1958
        %v2028 = vunpack.c.l.b16 %v1959
        %v2029 = vunpack.c.l.b16 %v1960
        %v2030 = vunpack.c.l.b16 %v1961
        %v2031 = vunpack.c.l.b16 %v1962
        %v2032 = vunpack.c.l.b16 %v1963
        %v2033 = vunpack.c.l.b16 %v1964
        %v2034 = vunpack.c.l.b16 %v1965
        %v2035 = vunpack.c.l.b16 %v1966
        %v2036 = vunpack.c.l.b16 %v1967
        %v2037 = vunpack.c.l.b16 %v1968
        %v2038 = vunpack.c.l.b16 %v1969
        %v2039 = vunpack.c.l.b16 %v1970
        %v2040 = vunpack.c.l.b16 %v1971
        %v2041 = vunpack.c.l.b16 %v1972
        %v2042 = vunpack.c.l.b16 %v1973
        %v2043 = vunpack.c.l.b16 %v1974
        %v2044 = vunpack.c.l.b16 %v1975
        %v2045 = vunpack.c.l.b16 %v1976
        %v2046 = vunpack.c.l.b16 %v1977
        %v2047 = vunpack.c.l.b16 %v1978
        %v2048 = vpack.c.b16 %v2017, %v2016
        %v2049 = vpack.c.b16 %v2019, %v2018
        %v2050 = vpack.c.b16 %v2021, %v2020
        %v2051 = vpack.c.b16 %v2023, %v2022
        %v2052 = vpack.c.b16 %v2025, %v2024
        %v2053 = vpack.c.b16 %v2027, %v2026
        %v2054 = vpack.c.b16 %v2029, %v2028
        %v2055 = vpack.c.b16 %v2031, %v2030
        %v2056 = vpack.c.b16 %v2033, %v2032
        %v2057 = vpack.c.b16 %v2035, %v2034
        %v2058 = vpack.c.b16 %v2037, %v2036
        %v2059 = vpack.c.b16 %v2039, %v2038
        %v2060 = vpack.c.b16 %v2041, %v2040
        %v2061 = vpack.c.b16 %v2043, %v2042
        %v2062 = vpack.c.b16 %v2045, %v2044
        %v2063 = vpack.c.b16 %v2047, %v2046
        %2080 = vmatprep.subr.bf16.mxu0 0
        %2081 = vmatpush1.bf16.msra.mxu0 %v2048
        %2082 = vmatprep.subr.bf16.mxu0 0
        %2083 = vmatpush1.bf16.msra.mxu0 %v2049
        %2084 = vmatprep.subr.bf16.mxu0 0
        %2085 = vmatpush1.bf16.msra.mxu0 %v2050
        %2086 = vmatprep.subr.bf16.mxu0 0
        %2087 = vmatpush1.bf16.msra.mxu0 %v2051
        %2088 = vmatprep.subr.bf16.mxu0 0
        %2089 = vmatpush1.bf16.msra.mxu0 %v2052
        %2090 = vmatprep.subr.bf16.mxu0 0
        %2091 = vmatpush1.bf16.msra.mxu0 %v2053
        %2092 = vmatprep.subr.bf16.mxu0 0
        %2093 = vmatpush1.bf16.msra.mxu0 %v2054
        %2094 = vmatprep.subr.bf16.mxu0 0
        %2095 = vmatpush1.bf16.msra.mxu0 %v2055
        %2096 = vmatprep.subr.bf16.mxu0 0
        %2097 = vmatpush1.bf16.msra.mxu0 %v2056
        %2098 = vmatprep.subr.bf16.mxu0 0
        %2099 = vmatpush1.bf16.msra.mxu0 %v2057
        %2100 = vmatprep.subr.bf16.mxu0 0
        %2101 = vmatpush1.bf16.msra.mxu0 %v2058
        %2102 = vmatprep.subr.bf16.mxu0 0
        %2103 = vmatpush1.bf16.msra.mxu0 %v2059
        %2104 = vmatprep.subr.bf16.mxu0 0
        %2105 = vmatpush1.bf16.msra.mxu0 %v2060
        %2106 = vmatprep.subr.bf16.mxu0 0
        %2107 = vmatpush1.bf16.msra.mxu0 %v2061
        %2108 = vmatprep.subr.bf16.mxu0 0
        %2109 = vmatpush1.bf16.msra.mxu0 %v2062
        %2110 = vmatprep.subr.bf16.mxu0 0
        %2111 = vmatpush1.bf16.msra.mxu0 %v2063
        %2112 = vmatprep.mubr.bf16.mxu0 %v1940
        %2113 = vmatmul.mubr.bf16.gmra.mrb[0].mxu0 %v1939
        %v2114 = vpop.f32.mrb[0].mxu0
        %v2115 = vadd.f32 %v1983, %v2114
        %v2116 = vpop.f32.mrb[0].mxu0
        %v2117 = vpop.f32.mrb[0].mxu0
        %v2118 = vadd.f32 %v1983, %v2117
        %v2119 = vpop.f32.mrb[0].mxu0
        %2120 = vmatprep.mubr.bf16.mxu0 %v1942
        %2121 = vmatmul.mubr.bf16.gmra.mrb[0].mxu0 %v1941
        %v2122 = vpop.f32.mrb[0].mxu0
        %v2123 = vadd.f32 %v1983, %v2122
        %v2124 = vpop.f32.mrb[0].mxu0
        %v2125 = vpop.f32.mrb[0].mxu0
        %v2126 = vadd.f32 %v1983, %v2125
        %v2127 = vpop.f32.mrb[0].mxu0
        %2128 = vmatprep.mubr.bf16.mxu0 %v1944
        %2129 = vmatmul.mubr.bf16.gmra.mrb[0].mxu0 %v1943
        %v2130 = vpop.f32.mrb[0].mxu0
        %v2131 = vadd.f32 %v1983, %v2130
        %v2132 = vpop.f32.mrb[0].mxu0
        %v2133 = vpop.f32.mrb[0].mxu0
        %v2134 = vadd.f32 %v1983, %v2133
        %v2135 = vpop.f32.mrb[0].mxu0
        %2136 = vmatprep.mubr.bf16.mxu0 %v1946
        %2137 = vmatmul.mubr.bf16.gmra.mrb[0].mxu0 %v1945
        %v2138 = vpop.f32.mrb[0].mxu0
        %v2139 = vadd.f32 %v1983, %v2138
        %v2140 = vpop.f32.mrb[0].mxu0
        %v2141 = vpop.f32.mrb[0].mxu0
        %v2142 = vadd.f32 %v1983, %v2141
        %v2143 = vpop.f32.mrb[0].mxu0
        %2144 = vdwg.mxu0
        %v2145 = vadd.f32 %v2115, %v1730
        %v2146 = vadd.f32 %v2118, %v1731
        %v2147 = vadd.f32 %v2123, %v1732
        %v2148 = vadd.f32 %v2126, %v1733
        %v2149 = vadd.f32 %v2131, %v1734
        %v2150 = vadd.f32 %v2134, %v1735
        %v2151 = vadd.f32 %v2139, %v1736
        %v2152 = vadd.f32 %v2142, %v1737
        %2153 = vadd.xlane.f32.xlu0 %v2145
        %v2154 = vpop.xlane.xlu0 %2153
        %2155 = vadd.xlane.f32.xlu0 %v2146
        %v2156 = vpop.xlane.xlu0 %2155
        %2157 = vadd.xlane.f32.xlu0 %v2147
        %v2158 = vpop.xlane.xlu0 %2157
        %2159 = vadd.xlane.f32.xlu0 %v2148
        %v2160 = vpop.xlane.xlu0 %2159
        %2161 = vadd.xlane.f32.xlu0 %v2149
        %v2162 = vpop.xlane.xlu0 %2161
        %2163 = vadd.xlane.f32.xlu0 %v2150
        %v2164 = vpop.xlane.xlu0 %2163
        %2165 = vadd.xlane.f32.xlu0 %v2151
        %v2166 = vpop.xlane.xlu0 %2165
        %2167 = vadd.xlane.f32.xlu0 %v2152
        %v2168 = vpop.xlane.xlu0 %2167
        %v2169 = vmul.f32 %v2154, %v1639
        %v2170 = vmul.f32 %v2156, %v1639
        %v2171 = vmul.f32 %v2158, %v1639
        %v2172 = vmul.f32 %v2160, %v1639
        %v2173 = vmul.f32 %v2162, %v1639
        %v2174 = vmul.f32 %v2164, %v1639
        %v2175 = vmul.f32 %v2166, %v1639
        %v2176 = vmul.f32 %v2168, %v1639
        %v2177 = vsub.f32 %v2145, %v2169
        %v2178 = vsub.f32 %v2146, %v2170
        %v2179 = vsub.f32 %v2147, %v2171
        %v2180 = vsub.f32 %v2148, %v2172
        %v2181 = vsub.f32 %v2149, %v2173
        %v2182 = vsub.f32 %v2150, %v2174
        %v2183 = vsub.f32 %v2151, %v2175
        %v2184 = vsub.f32 %v2152, %v2176
        %v2185 = vmul.f32 %v2177, %v2177
        %v2186 = vmul.f32 %v2178, %v2178
        %v2187 = vmul.f32 %v2179, %v2179
        %v2188 = vmul.f32 %v2180, %v2180
        %v2189 = vmul.f32 %v2181, %v2181
        %v2190 = vmul.f32 %v2182, %v2182
        %v2191 = vmul.f32 %v2183, %v2183
        %v2192 = vmul.f32 %v2184, %v2184
        %2193 = vadd.xlane.f32.xlu0 %v2185
        %v2194 = vpop.xlane.xlu0 %2193
        %2195 = vadd.xlane.f32.xlu0 %v2186
        %v2196 = vpop.xlane.xlu0 %2195
        %2197 = vadd.xlane.f32.xlu0 %v2187
        %v2198 = vpop.xlane.xlu0 %2197
        %2199 = vadd.xlane.f32.xlu0 %v2188
        %v2200 = vpop.xlane.xlu0 %2199
        %2201 = vadd.xlane.f32.xlu0 %v2189
        %v2202 = vpop.xlane.xlu0 %2201
        %2203 = vadd.xlane.f32.xlu0 %v2190
        %v2204 = vpop.xlane.xlu0 %2203
        %2205 = vadd.xlane.f32.xlu0 %v2191
        %v2206 = vpop.xlane.xlu0 %2205
        %2207 = vadd.xlane.f32.xlu0 %v2192
        %v2208 = vpop.xlane.xlu0 %2207
        %v2209 = vmul.f32 %v2194, %v1639
        %v2210 = vmul.f32 %v2196, %v1639
        %v2211 = vmul.f32 %v2198, %v1639
        %v2212 = vmul.f32 %v2200, %v1639
        %v2213 = vmul.f32 %v2202, %v1639
        %v2214 = vmul.f32 %v2204, %v1639
        %v2215 = vmul.f32 %v2206, %v1639
        %v2216 = vmul.f32 %v2208, %v1639
        %v2217 = vadd.f32 %v2209, 1e-05
        %v2218 = vadd.f32 %v2210, 1e-05
        %v2219 = vadd.f32 %v2211, 1e-05
        %v2220 = vadd.f32 %v2212, 1e-05
        %v2221 = vadd.f32 %v2213, 1e-05
        %v2222 = vadd.f32 %v2214, 1e-05
        %v2223 = vadd.f32 %v2215, 1e-05
        %v2224 = vadd.f32 %v2216, 1e-05
        %v2225 = vrsqrt.pop %v2217
        %v2226 = vrsqrt.pop %v2218
        %v2227 = vrsqrt.pop %v2219
        %v2228 = vrsqrt.pop %v2220
        %v2229 = vrsqrt.pop %v2221
        %v2230 = vrsqrt.pop %v2222
        %v2231 = vrsqrt.pop %v2223
        %v2232 = vrsqrt.pop %v2224
        %v2233 = vmul.f32 %v2177, %v2225
        %v2234 = vmul.f32 %v2178, %v2226
        %v2235 = vmul.f32 %v2179, %v2227
        %v2236 = vmul.f32 %v2180, %v2228
        %v2237 = vmul.f32 %v2181, %v2229
        %v2238 = vmul.f32 %v2182, %v2230
        %v2239 = vmul.f32 %v2183, %v2231
        %v2240 = vmul.f32 %v2184, %v2232
        %v2241 = vld [vmem:[%s3 + $0x6] sm:$0x1]
        %v2242 = vlaneseq
        %v2243 = vshrl.u32 %v2242, 7
        %v2244 = vsub.s32 0, %v2243
        %v2245 = vrot.slane %v2241, %v2244
        %v2246 = vmul.f32 %v2233, %v2245
        %v2247 = vmul.f32 %v2234, %v2245
        %v2248 = vmul.f32 %v2235, %v2245
        %v2249 = vmul.f32 %v2236, %v2245
        %v2250 = vmul.f32 %v2237, %v2245
        %v2251 = vmul.f32 %v2238, %v2245
        %v2252 = vmul.f32 %v2239, %v2245
        %v2253 = vmul.f32 %v2240, %v2245
        %v2254 = vld [vmem:[%s3 + $0x7] sm:$0x1]
        %v2255 = vlaneseq
        %v2256 = vshrl.u32 %v2255, 7
        %v2257 = vsub.s32 0, %v2256
        %v2258 = vrot.slane %v2254, %v2257
        %v2259 = vadd.f32 %v2246, %v2258
        %v2260 = vadd.f32 %v2247, %v2258
        %v2261 = vadd.f32 %v2248, %v2258
        %v2262 = vadd.f32 %v2249, %v2258
        %v2263 = vadd.f32 %v2250, %v2258
        %v2264 = vadd.f32 %v2251, %v2258
        %v2265 = vadd.f32 %v2252, %v2258
        %v2266 = vadd.f32 %v2253, %v2258
        %2267 = vst [vmem:[%s326] sm:$0xff] %v2259
        %2268 = vst [vmem:[%s326 + $0x8] sm:$0xff] %v2260
        %2269 = vst [vmem:[%s326 + $0x10] sm:$0xff] %v2261
        %2270 = vst [vmem:[%s326 + $0x18] sm:$0xff] %v2262
        %2271 = vst [vmem:[%s326 + $0x20] sm:$0xff] %v2263
        %2272 = vst [vmem:[%s326 + $0x28] sm:$0xff] %v2264
        %2273 = vst [vmem:[%s326 + $0x30] sm:$0xff] %v2265
        %2274 = vst [vmem:[%s326 + $0x38] sm:$0xff] %v2266
      $region56: #{bevformer_v2_forward.4} parent=47 // pred_fallthru
        _
      %p2275 = scmp.lt.s32.totalorder %s22, 1
      %s2276 = scalar_select %p2275, %s22, 1
      %s2277 = smul.addr %s2276, 8
      %s2278 = smul.addr %s2277, 8
      %s2279 = scalar_lea.vmem %s7, %s2278
      // Predicated region
      $region57: #{bevformer_v2_forward.4} parent=47 // pred_check
        %p2280 = pneg %p207
      $region58: #{bevformer_v2_forward.4} parent=47 // pred_check_branch
        %2282 = sbr.rel (%p2280) target = $region60
      $region59: #{bevformer_v2_forward.4} parent=47 // pred_region
        _
      $region60: #{bevformer_v2_forward.4} parent=47 // pred_fallthru
        _
    $region48: #{bevformer_v2_forward.4} parent=5 // pred_fallthru
      _
    %p2283 = scmp.le.s32.totalorder 2, %s13
    // Predicated region
    $region61: #{bevformer_v2_forward.4} parent=5 // pred_check
      %p2284 = pneg %p2283
    $region62: #{bevformer_v2_forward.4} parent=5 // pred_check_branch
      %2286 = sbr.rel (%p2284) target = $region64
    $region63: #{bevformer_v2_forward.4} parent=5 // pred_region
      %s2287 = ssub.s32 %s13, 2
      // Predicated region
      $region65: #{bevformer_v2_forward.4} parent=63 // pred_check
        %p2288 = pneg %p213
      $region66: #{bevformer_v2_forward.4} parent=63 // pred_check_branch
        %2290 = sbr.rel (%p2288) target = $region68
      $region67: #{bevformer_v2_forward.4} parent=63 // pred_region
        %p2291 = scmp.lt.s32.totalorder %s24, 1
        %s2292 = scalar_select %p2291, %s24, 1
        %s2293 = smul.addr %s2292, 8
        %s2294 = smul.addr %s2293, 8
        %s2295 = scalar_lea.vmem %s7, %s2294
      $region68: #{bevformer_v2_forward.4} parent=63 // pred_fallthru
        _
    $region64: #{bevformer_v2_forward.4} parent=5 // pred_fallthru
      _
  $region6: #{bevformer_v2_forward.4} parent=0 // loop_footer
    %s17 = sadd.s32 1, %s13
  $region7: #{bevformer_v2_forward.4} parent=0 // loop_footer_branch
    %12 = sbr.rel target = $region3
  $region8: #{bevformer_v2_forward.4} parent=0 // loop_exit
    _

</llo_original>
